<compile_context>
chip_gen: v5e
topology: v5e:2x2
jax: 0.10.0
libtpu: 0.0.40
codegen_flags: <defaults>
</compile_context>

<pallas_src>
import functools
import numpy as np
import jax
import jax.numpy as jnp
from jax import lax
from jax.experimental import pallas as pl
from jax.experimental.pallas import tpu as pltpu

EPS = 1e-5


# ------------------------------ Pallas kernel ------------------------------- #

def _fused_conv_body(x_ref, stats_ref, w_ref, o_ref, pad_ref, *,
                     D, res_ref=None, wid_ref=None):
    """One batch element:  BN -> ReLU -> conv3x3x3 (+ optional fused residual).

    x_ref    : (1, D, HW*Cin)          raw input slab, one batch element (f32)
    stats_ref: (2, HW*Cin)             row 0: mean, row 1: rsqrt(var+eps), tiled over (h, w)
    w_ref    : (3, HW*Cin, HW*Cout)    depth-tap weights, (h, w) taps + zero pad pre-unrolled (bf16)
    res_ref  : (1, D, HW*Cr)           residual input slab (raw x), optional (f32)
    wid_ref  : (HW*Cr, HW*Cout)        unrolled spectral-normalized 1x1x1 identity conv, optional
    o_ref    : (1, D, HW*Cout)         output slab (f32, lane-dense)
    pad_ref  : (D + 2, HW*Cin)         VMEM scratch: normalized rows with zero depth halo
    """
    mean = stats_ref[0:1, :]
    inv_std = stats_ref[1:2, :]
    Ki = pad_ref.shape[1]

    # --- BN + ReLU, one vectorized VPU pass over the whole (D, HW*Cin) slab (f32). ---
    y = jnp.maximum((x_ref[0] - mean) * inv_std, 0.0)

    # --- Zero depth halo + interior rows into the scratch slab. ---
    zero_row = jnp.zeros((1, Ki), jnp.float32)
    pad_ref[0:1, :] = zero_row
    pad_ref[D + 1:D + 2, :] = zero_row
    pad_ref[1:D + 1, :] = y

    # --- 3 fat MXU pushes: (D, HW*Cin) @ (HW*Cin, HW*Cout), bf16 in / f32 accumulate. ---
    acc = jnp.zeros(o_ref.shape[1:], jnp.float32)
    for kd in range(3):
        lhs = pad_ref[kd:kd + D, :].astype(jnp.bfloat16)
        acc += jnp.dot(lhs, w_ref[kd], preferred_element_type=jnp.float32)

    # --- fused residual epilogue (second conv only). ---
    if res_ref is not None:
        xres = res_ref[0]                                        # (D, HW*Cr) f32
        if wid_ref is not None:
            acc += jnp.dot(xres, wid_ref[...], preferred_element_type=jnp.float32)
        else:
            acc += xres
    o_ref[0] = acc.astype(o_ref.dtype)


# ------------------------------ Pallas wrapper ------------------------------- #

def _fused_bn_relu_conv(x_flat, stats, wb, *, D, HW, Cin, Cout,
                        residual=None, wid=None):
    """x_flat: (N, D, HW*Cin) f32; stats: (2, HW*Cin) f32; wb: (3, HW*Cin, HW*Cout) bf16.
       residual: (N, D, HW*Cr) f32 or None; wid: (HW*Cr, HW*Cout) f32 or None.
       Returns (N, D, HW*Cout) f32."""
    N = x_flat.shape[0]
    Ki, Ko = HW * Cin, HW * Cout

    has_res = residual is not None
    has_wid = wid is not None

    body = functools.partial(_fused_conv_body, D=D)
    if has_res and has_wid:
        def kernel(x_ref, s_ref, w_ref, r_ref, wid_ref, o_ref, pad_ref):
            body(x_ref, s_ref, w_ref, o_ref, pad_ref, res_ref=r_ref, wid_ref=wid_ref)
    elif has_res:
        def kernel(x_ref, s_ref, w_ref, r_ref, o_ref, pad_ref):
            body(x_ref, s_ref, w_ref, o_ref, pad_ref, res_ref=r_ref)
    else:
        def kernel(x_ref, s_ref, w_ref, o_ref, pad_ref):
            body(x_ref, s_ref, w_ref, o_ref, pad_ref)

    in_specs = [
        pl.BlockSpec((1, D, Ki), lambda n: (n, 0, 0)),           # per-batch raw input slab
        pl.BlockSpec((2, Ki), lambda n: (0, 0)),                 # BN stats (resident)
        pl.BlockSpec((3, Ki, Ko), lambda n: (0, 0, 0)),          # unrolled weights (resident)
    ]
    operands = [x_flat, stats, wb]
    if has_res:
        Kr = residual.shape[-1]
        in_specs.append(pl.BlockSpec((1, D, Kr), lambda n: (n, 0, 0)))
        operands.append(residual)
        if has_wid:
            in_specs.append(pl.BlockSpec((Kr, Ko), lambda n: (0, 0)))
            operands.append(wid)

    flops = 2 * N * D * 3 * Ki * Ko                              # dense matmul work
    bytes_accessed = (x_flat.size * x_flat.dtype.itemsize
                      + N * D * Ko * 4
                      + wb.size * wb.dtype.itemsize
                      + stats.size * stats.dtype.itemsize)
    if has_res:
        bytes_accessed += residual.size * residual.dtype.itemsize
        if has_wid:
            flops += 2 * N * D * residual.shape[-1] * Ko
            bytes_accessed += wid.size * wid.dtype.itemsize

    return pl.pallas_call(
        kernel,
        out_shape=jax.ShapeDtypeStruct((N, D, Ko), jnp.float32),
        grid=(N,),
        in_specs=in_specs,
        out_specs=pl.BlockSpec((1, D, Ko), lambda n: (n, 0, 0)),
        scratch_shapes=[pltpu.VMEM((D + 2, Ki), jnp.float32)],
        compiler_params=pltpu.CompilerParams(
            dimension_semantics=("parallel",),
            vmem_limit_bytes=64 * 1024 * 1024),
        cost_estimate=pl.CostEstimate(flops=int(flops), transcendentals=0,
                                      bytes_accessed=int(bytes_accessed)),
    )(*operands)


# --------------------------- JAX-side glue (tiny) ---------------------------- #

def _bn_stats(x5d, HW):
    """Global (training-mode) BatchNorm statistics over (N, D, H, W), tiled over (h, w)."""
    mean = jnp.mean(x5d, axis=(0, 1, 2, 3))
    var = jnp.mean(jnp.square(x5d - mean), axis=(0, 1, 2, 3))     # biased variance
    inv = lax.rsqrt(var + EPS)
    return jnp.stack([jnp.tile(mean, HW), jnp.tile(inv, HW)]).astype(jnp.float32)


def _unroll_conv_weight(w_dhwio, H, W):
    """(3, 3, 3, Cin, Cout) -> (3, H*W*Cin, H*W*Cout): (h, w) taps + zero padding folded in."""
    k = jnp.arange(3)
    SH = (jnp.arange(H)[None, :, None] ==
          (jnp.arange(H)[None, None, :] + k[:, None, None] - 1)).astype(w_dhwio.dtype)  # (3,H,H)
    SW = (jnp.arange(W)[None, :, None] ==
          (jnp.arange(W)[None, None, :] + k[:, None, None] - 1)).astype(w_dhwio.dtype)  # (3,W,W)
    Cin, Cout = w_dhwio.shape[3], w_dhwio.shape[4]
    WB = jnp.einsum('axp,byq,dabco->dxycpqo', SH, SW, w_dhwio)     # (3,H,W,Cin,H,W,Cout)
    return WB.reshape(3, H * W * Cin, H * W * Cout)


def _unroll_id_weight(w_id, HW):
    """(Cin, Cout) -> block-diagonal (HW*Cin, HW*Cout) for the 1x1x1 identity conv."""
    eye = jnp.eye(HW, dtype=w_id.dtype)
    Cin, Cout = w_id.shape
    return jnp.einsum('xy,co->xcyo', eye, w_id).reshape(HW * Cin, HW * Cout)


# ------------------------------- Forward pass -------------------------------- #

@jax.jit
def resnet_block_forward(x_ncdhw, w1, w2, w_id):
    # NCDHW -> NDHWC
    x = jnp.transpose(x_ncdhw, (0, 2, 3, 4, 1))
    N, D, H, W, Cin = x.shape
    Cmid, Cout = w1.shape[-1], w2.shape[-1]
    HW = H * W

    x_flat = x.reshape(N, D, HW * Cin)

    # Stage 1: BN1 + ReLU + conv1 (fused)
    stats1 = _bn_stats(x, HW)
    wb1 = _unroll_conv_weight(w1, H, W).astype(jnp.bfloat16)
    h1 = _fused_bn_relu_conv(x_flat, stats1, wb1, D=D, HW=HW, Cin=Cin, Cout=Cmid)

    # Stage 2: BN2 + ReLU + conv2 + residual (fused)
    stats2 = _bn_stats(h1.reshape(N, D, H, W, Cmid), HW)
    wb2 = _unroll_conv_weight(w2, H, W).astype(jnp.bfloat16)
    wid_b = None if w_id is None else _unroll_id_weight(w_id, HW)
    out_flat = _fused_bn_relu_conv(h1, stats2, wb2, D=D, HW=HW, Cin=Cmid, Cout=Cout,
                                   residual=x_flat, wid=wid_b)

    out = out_flat.reshape(N, D, H, W, Cout)
    return jnp.transpose(out, (0, 4, 1, 2, 3))                     # NDHWC -> NCDHW


# ----------------------------- Parameter setup ------------------------------- #

def spectral_normalize(w, key, n_iter=1, eps=1e-12):
    """Spectral norm of a conv weight (Cout, Cin, kD, kH, kW): one power iteration."""
    cout = w.shape[0]
    wm = w.reshape(cout, -1)
    u = jax.random.normal(key, (cout,), w.dtype)
    u = u / (jnp.linalg.norm(u) + eps)
    v = u
    for _ in range(n_iter):
        v = wm.T @ u
        v = v / (jnp.linalg.norm(v) + eps)
        u = wm @ v
        u = u / (jnp.linalg.norm(u) + eps)
    sigma = u @ (wm @ v)
    return w / sigma


def make_params(key, dim_in, dim_out):
    k1, k2, k3, k4, k5, k6 = jax.random.split(key, 6)
    w1 = 0.1 * jax.random.normal(k1, (dim_out, dim_in, 3, 3, 3), jnp.float32)
    w2 = 0.1 * jax.random.normal(k2, (dim_out, dim_out, 3, 3, 3), jnp.float32)
    w1 = spectral_normalize(w1, k4)
    w2 = spectral_normalize(w2, k5)
    params = {
        "w1": jnp.transpose(w1, (2, 3, 4, 1, 0)),   # DHWIO: (3,3,3,Cin,Cout)
        "w2": jnp.transpose(w2, (2, 3, 4, 1, 0)),
        "w_id": None,
    }
    if dim_in != dim_out:
        w_id = 0.1 * jax.random.normal(k3, (dim_out, dim_in, 1, 1, 1), jnp.float32)
        w_id = spectral_normalize(w_id, k6)
        params["w_id"] = w_id.reshape(dim_out, dim_in).T            # (Cin, Cout)
    return params


# ------------------------------- Pure-JAX ref --------------------------------- #

def ref_forward(x_ncdhw, w1, w2, w_id):
    x = jnp.transpose(x_ncdhw, (0, 2, 3, 4, 1))

    def bn_relu_ref(y):
        mean = jnp.mean(y, axis=(0, 1, 2, 3), keepdims=True)
        var = jnp.mean(jnp.square(y - mean), axis=(0, 1, 2, 3), keepdims=True)
        return jnp.maximum((y - mean) * lax.rsqrt(var + EPS), 0.0)

    def conv_ref(y, w):
        return lax.conv_general_dilated(
            y, w, window_strides=(1, 1, 1), padding="SAME",
            dimension_numbers=("NDHWC", "DHWIO", "NDHWC"))

    h = conv_ref(bn_relu_ref(x), w1)
    h = conv_ref(bn_relu_ref(h), w2)
    if w_id is None:
        out = h + x
    else:
        out = h + jnp.einsum("ndhwi,io->ndhwo", x, w_id)
    return jnp.transpose(out, (0, 4, 1, 2, 3))


# ----------------------------------- Main ------------------------------------- #

if __name__ == "__main__":
    N, dim_in, dim_out = 2, 4, 8
    D = H = W = 8

    key = jax.random.PRNGKey(0)
    kx, kp = jax.random.split(key)

    # Case 1: dim_in != dim_out (spectral-normalized 1x1x1 identity conv, fused in epilogue)
    x = jax.random.normal(kx, (N, dim_in, D, H, W), jnp.float32)   # PyTorch NCDHW input
    params = make_params(kp, dim_in, dim_out)
    out = jax.block_until_ready(
        resnet_block_forward(x, params["w1"], params["w2"], params["w_id"]))
    ref = ref_forward(x, params["w1"], params["w2"], params["w_id"])
    # bf16 MXU inputs (f32 accumulation) -> slightly looser tolerance than pure-f32.
    np.testing.assert_allclose(np.asarray(out), np.asarray(ref), rtol=3e-2, atol=3e-2)

    # Case 2: dim_in == dim_out (plain residual add, fused in epilogue)
    x2 = jax.random.normal(kx, (N, dim_out, D, H, W), jnp.float32)
    params2 = make_params(kp, dim_out, dim_out)
    out2 = jax.block_until_ready(
        resnet_block_forward(x2, params2["w1"], params2["w2"], params2["w_id"]))
    ref2 = ref_forward(x2, params2["w1"], params2["w2"], params2["w_id"])
    np.testing.assert_allclose(np.asarray(out2), np.asarray(ref2), rtol=3e-2, atol=3e-2)

    print("KERNEL_OK")
</pallas_src>

<mosaic_0001>
module attributes {stable_mosaic.version = 11 : i64} {
  func.func @kernel(%arg0: i32, %arg1: memref<1x8x256xf32, #tpu.memory_space<vmem>>, %arg2: memref<2x256xf32, #tpu.memory_space<vmem>>, %arg3: memref<3x256x512xbf16, #tpu.memory_space<vmem>>, %arg4: memref<1x8x512xf32, #tpu.memory_space<vmem>>, %arg5: memref<10x256xf32, #tpu.memory_space<vmem>>) attributes {dimension_semantics = [#tpu.dimension_semantics<parallel>], iteration_bounds = array<i64: 2>, scalar_prefetch = 0 : i64, scratch_operands = 1 : i64, tpu.core_type = #tpu.core_type<tc>, window_params = [{transform_indices = @transform_0, window_bounds = array<i64: 1, 8, 256>}, {pipeline_mode = #tpu.pipeline_mode<synchronous>, transform_indices = @transform_1, window_bounds = array<i64: 2, 256>}, {pipeline_mode = #tpu.pipeline_mode<synchronous>, transform_indices = @transform_2, window_bounds = array<i64: 3, 256, 512>}, {transform_indices = @transform_3, window_bounds = array<i64: 1, 8, 512>}]} {
    %c0 = arith.constant 0 : index
    %c0_0 = arith.constant 0 : index
    %0 = vector.load %arg2[%c0, %c0_0] : memref<2x256xf32, #tpu.memory_space<vmem>>, vector<1x256xf32>
    %c1 = arith.constant 1 : index
    %c0_1 = arith.constant 0 : index
    %1 = vector.load %arg2[%c1, %c0_1] : memref<2x256xf32, #tpu.memory_space<vmem>>, vector<1x256xf32>
    %c0_2 = arith.constant 0 : index
    %c0_3 = arith.constant 0 : index
    %c0_4 = arith.constant 0 : index
    %2 = vector.load %arg1[%c0_2, %c0_3, %c0_4] : memref<1x8x256xf32, #tpu.memory_space<vmem>>, vector<1x8x256xf32>
    %3 = vector.shape_cast %2 : vector<1x8x256xf32> to vector<8x256xf32>
    %4 = vector.broadcast %0 : vector<1x256xf32> to vector<8x256xf32>
    %5 = arith.subf %3, %4 : vector<8x256xf32>
    %6 = vector.broadcast %1 : vector<1x256xf32> to vector<8x256xf32>
    %7 = arith.mulf %5, %6 : vector<8x256xf32>
    %cst = arith.constant 0.000000e+00 : f32
    %8 = vector.broadcast %cst : f32 to vector<8x256xf32>
    %9 = arith.maximumf %7, %8 : vector<8x256xf32>
    %cst_5 = arith.constant 0.000000e+00 : f32
    %10 = vector.broadcast %cst_5 : f32 to vector<1x256xf32>
    %c0_6 = arith.constant 0 : index
    %c0_7 = arith.constant 0 : index
    %11 = vector.load %arg5[%c0_6, %c0_7] : memref<10x256xf32, #tpu.memory_space<vmem>>, vector<1x256xf32>
    tpu.vector_store %arg5[%c0_6, %c0_7], %10 {strides = array<i32>} : memref<10x256xf32, #tpu.memory_space<vmem>>, vector<1x256xf32>,
    %c9 = arith.constant 9 : index
    %c0_8 = arith.constant 0 : index
    %12 = vector.load %arg5[%c9, %c0_8] : memref<10x256xf32, #tpu.memory_space<vmem>>, vector<1x256xf32>
    tpu.vector_store %arg5[%c9, %c0_8], %10 {strides = array<i32>} : memref<10x256xf32, #tpu.memory_space<vmem>>, vector<1x256xf32>,
    %c1_9 = arith.constant 1 : index
    %c0_10 = arith.constant 0 : index
    %13 = vector.load %arg5[%c1_9, %c0_10] : memref<10x256xf32, #tpu.memory_space<vmem>>, vector<8x256xf32>
    tpu.vector_store %arg5[%c1_9, %c0_10], %9 {strides = array<i32>} : memref<10x256xf32, #tpu.memory_space<vmem>>, vector<8x256xf32>,
    %cst_11 = arith.constant 0.000000e+00 : f32
    %14 = vector.broadcast %cst_11 : f32 to vector<8x512xf32>
    %c0_12 = arith.constant 0 : index
    %c0_13 = arith.constant 0 : index
    %15 = vector.load %arg5[%c0_12, %c0_13] : memref<10x256xf32, #tpu.memory_space<vmem>>, vector<8x256xf32>
    %16 = arith.truncf %15 : vector<8x256xf32> to vector<8x256xbf16>
    %c0_14 = arith.constant 0 : index
    %c0_15 = arith.constant 0 : index
    %c0_16 = arith.constant 0 : index
    %17 = vector.load %arg3[%c0_14, %c0_15, %c0_16] : memref<3x256x512xbf16, #tpu.memory_space<vmem>>, vector<1x256x512xbf16>
    %18 = vector.shape_cast %17 : vector<1x256x512xbf16> to vector<256x512xbf16>
    %cst_17 = arith.constant dense<0.000000e+00> : vector<8x512xf32>
    %19 = tpu.matmul %16, %18, %cst_17 {dimension_numbers = #tpu.dot_dimension_numbers<[1], [0], [0], [1], [0, 0, 1, 1], [], []>} : vector<8x256xbf16>, vector<256x512xbf16>, vector<8x512xf32> -> vector<8x512xf32>
    %20 = arith.addf %14, %19 : vector<8x512xf32>
    %c1_18 = arith.constant 1 : index
    %c0_19 = arith.constant 0 : index
    %21 = vector.load %arg5[%c1_18, %c0_19] : memref<10x256xf32, #tpu.memory_space<vmem>>, vector<8x256xf32>
    %22 = arith.truncf %21 : vector<8x256xf32> to vector<8x256xbf16>
    %c1_20 = arith.constant 1 : index
    %c0_21 = arith.constant 0 : index
    %c0_22 = arith.constant 0 : index
    %23 = vector.load %arg3[%c1_20, %c0_21, %c0_22] : memref<3x256x512xbf16, #tpu.memory_space<vmem>>, vector<1x256x512xbf16>
    %24 = vector.shape_cast %23 : vector<1x256x512xbf16> to vector<256x512xbf16>
    %cst_23 = arith.constant dense<0.000000e+00> : vector<8x512xf32>
    %25 = tpu.matmul %22, %24, %cst_23 {dimension_numbers = #tpu.dot_dimension_numbers<[1], [0], [0], [1], [0, 0, 1, 1], [], []>} : vector<8x256xbf16>, vector<256x512xbf16>, vector<8x512xf32> -> vector<8x512xf32>
    %26 = arith.addf %20, %25 : vector<8x512xf32>
    %c2 = arith.constant 2 : index
    %c0_24 = arith.constant 0 : index
    %27 = vector.load %arg5[%c2, %c0_24] : memref<10x256xf32, #tpu.memory_space<vmem>>, vector<8x256xf32>
    %28 = arith.truncf %27 : vector<8x256xf32> to vector<8x256xbf16>
    %c2_25 = arith.constant 2 : index
    %c0_26 = arith.constant 0 : index
    %c0_27 = arith.constant 0 : index
    %29 = vector.load %arg3[%c2_25, %c0_26, %c0_27] : memref<3x256x512xbf16, #tpu.memory_space<vmem>>, vector<1x256x512xbf16>
    %30 = vector.shape_cast %29 : vector<1x256x512xbf16> to vector<256x512xbf16>
    %cst_28 = arith.constant dense<0.000000e+00> : vector<8x512xf32>
    %31 = tpu.matmul %28, %30, %cst_28 {dimension_numbers = #tpu.dot_dimension_numbers<[1], [0], [0], [1], [0, 0, 1, 1], [], []>} : vector<8x256xbf16>, vector<256x512xbf16>, vector<8x512xf32> -> vector<8x512xf32>
    %32 = arith.addf %26, %31 : vector<8x512xf32>
    %c0_29 = arith.constant 0 : index
    %c0_30 = arith.constant 0 : index
    %c0_31 = arith.constant 0 : index
    %33 = vector.load %arg4[%c0_29, %c0_30, %c0_31] : memref<1x8x512xf32, #tpu.memory_space<vmem>>, vector<1x8x512xf32>
    %34 = vector.shape_cast %33 : vector<1x8x512xf32> to vector<8x512xf32>
    %35 = vector.shape_cast %32 : vector<8x512xf32> to vector<1x8x512xf32>
    tpu.vector_store %arg4[%c0_29, %c0_30, %c0_31], %35 {strides = array<i32>} : memref<1x8x512xf32, #tpu.memory_space<vmem>>, vector<1x8x512xf32>,
    return
  }
  func.func @transform_0(%arg0: i32) -> (i32, i32, i32) {
    %c0_i32 = arith.constant 0 : i32
    %c0_i32_0 = arith.constant 0 : i32
    %c0_i32_1 = arith.constant 0 : i32
    return %arg0, %c0_i32, %c0_i32_0 : i32, i32, i32
  }
  func.func @transform_1(%arg0: i32) -> (i32, i32) {
    %c0_i32 = arith.constant 0 : i32
    %c0_i32_0 = arith.constant 0 : i32
    %c0_i32_1 = arith.constant 0 : i32
    return %c0_i32, %c0_i32_0 : i32, i32
  }
  func.func @transform_2(%arg0: i32) -> (i32, i32, i32) {
    %c0_i32 = arith.constant 0 : i32
    %c0_i32_0 = arith.constant 0 : i32
    %c0_i32_1 = arith.constant 0 : i32
    %c0_i32_2 = arith.constant 0 : i32
    return %c0_i32, %c0_i32_0, %c0_i32_1 : i32, i32, i32
  }
  func.func @transform_3(%arg0: i32) -> (i32, i32, i32) {
    %c0_i32 = arith.constant 0 : i32
    %c0_i32_0 = arith.constant 0 : i32
    %c0_i32_1 = arith.constant 0 : i32
    return %arg0, %c0_i32, %c0_i32_0 : i32, i32, i32
  }
}

module attributes {stable_mosaic.version = 11 : i64} {
  func.func @kernel(%arg0: i32, %arg1: memref<1x8x512xf32, #tpu.memory_space<vmem>>, %arg2: memref<2x512xf32, #tpu.memory_space<vmem>>, %arg3: memref<3x512x512xbf16, #tpu.memory_space<vmem>>, %arg4: memref<1x8x256xf32, #tpu.memory_space<vmem>>, %arg5: memref<256x512xf32, #tpu.memory_space<vmem>>, %arg6: memref<1x8x512xf32, #tpu.memory_space<vmem>>, %arg7: memref<10x512xf32, #tpu.memory_space<vmem>>) attributes {dimension_semantics = [#tpu.dimension_semantics<parallel>], iteration_bounds = array<i64: 2>, scalar_prefetch = 0 : i64, scratch_operands = 1 : i64, tpu.core_type = #tpu.core_type<tc>, window_params = [{transform_indices = @transform_0, window_bounds = array<i64: 1, 8, 512>}, {pipeline_mode = #tpu.pipeline_mode<synchronous>, transform_indices = @transform_1, window_bounds = array<i64: 2, 512>}, {pipeline_mode = #tpu.pipeline_mode<synchronous>, transform_indices = @transform_2, window_bounds = array<i64: 3, 512, 512>}, {transform_indices = @transform_3, window_bounds = array<i64: 1, 8, 256>}, {pipeline_mode = #tpu.pipeline_mode<synchronous>, transform_indices = @transform_4, window_bounds = array<i64: 256, 512>}, {transform_indices = @transform_5, window_bounds = array<i64: 1, 8, 512>}]} {
    %c0 = arith.constant 0 : index
    %c0_0 = arith.constant 0 : index
    %0 = vector.load %arg2[%c0, %c0_0] : memref<2x512xf32, #tpu.memory_space<vmem>>, vector<1x512xf32>
    %c1 = arith.constant 1 : index
    %c0_1 = arith.constant 0 : index
    %1 = vector.load %arg2[%c1, %c0_1] : memref<2x512xf32, #tpu.memory_space<vmem>>, vector<1x512xf32>
    %c0_2 = arith.constant 0 : index
    %c0_3 = arith.constant 0 : index
    %c0_4 = arith.constant 0 : index
    %2 = vector.load %arg1[%c0_2, %c0_3, %c0_4] : memref<1x8x512xf32, #tpu.memory_space<vmem>>, vector<1x8x512xf32>
    %3 = vector.shape_cast %2 : vector<1x8x512xf32> to vector<8x512xf32>
    %4 = vector.broadcast %0 : vector<1x512xf32> to vector<8x512xf32>
    %5 = arith.subf %3, %4 : vector<8x512xf32>
    %6 = vector.broadcast %1 : vector<1x512xf32> to vector<8x512xf32>
    %7 = arith.mulf %5, %6 : vector<8x512xf32>
    %cst = arith.constant 0.000000e+00 : f32
    %8 = vector.broadcast %cst : f32 to vector<8x512xf32>
    %9 = arith.maximumf %7, %8 : vector<8x512xf32>
    %cst_5 = arith.constant 0.000000e+00 : f32
    %10 = vector.broadcast %cst_5 : f32 to vector<1x512xf32>
    %c0_6 = arith.constant 0 : index
    %c0_7 = arith.constant 0 : index
    %11 = vector.load %arg7[%c0_6, %c0_7] : memref<10x512xf32, #tpu.memory_space<vmem>>, vector<1x512xf32>
    tpu.vector_store %arg7[%c0_6, %c0_7], %10 {strides = array<i32>} : memref<10x512xf32, #tpu.memory_space<vmem>>, vector<1x512xf32>,
    %c9 = arith.constant 9 : index
    %c0_8 = arith.constant 0 : index
    %12 = vector.load %arg7[%c9, %c0_8] : memref<10x512xf32, #tpu.memory_space<vmem>>, vector<1x512xf32>
    tpu.vector_store %arg7[%c9, %c0_8], %10 {strides = array<i32>} : memref<10x512xf32, #tpu.memory_space<vmem>>, vector<1x512xf32>,
    %c1_9 = arith.constant 1 : index
    %c0_10 = arith.constant 0 : index
    %13 = vector.load %arg7[%c1_9, %c0_10] : memref<10x512xf32, #tpu.memory_space<vmem>>, vector<8x512xf32>
    tpu.vector_store %arg7[%c1_9, %c0_10], %9 {strides = array<i32>} : memref<10x512xf32, #tpu.memory_space<vmem>>, vector<8x512xf32>,
    %cst_11 = arith.constant 0.000000e+00 : f32
    %14 = vector.broadcast %cst_11 : f32 to vector<8x512xf32>
    %c0_12 = arith.constant 0 : index
    %c0_13 = arith.constant 0 : index
    %15 = vector.load %arg7[%c0_12, %c0_13] : memref<10x512xf32, #tpu.memory_space<vmem>>, vector<8x512xf32>
    %16 = arith.truncf %15 : vector<8x512xf32> to vector<8x512xbf16>
    %c0_14 = arith.constant 0 : index
    %c0_15 = arith.constant 0 : index
    %c0_16 = arith.constant 0 : index
    %17 = vector.load %arg3[%c0_14, %c0_15, %c0_16] : memref<3x512x512xbf16, #tpu.memory_space<vmem>>, vector<1x512x512xbf16>
    %18 = vector.shape_cast %17 : vector<1x512x512xbf16> to vector<512x512xbf16>
    %cst_17 = arith.constant dense<0.000000e+00> : vector<8x512xf32>
    %19 = tpu.matmul %16, %18, %cst_17 {dimension_numbers = #tpu.dot_dimension_numbers<[1], [0], [0], [1], [0, 0, 1, 1], [], []>} : vector<8x512xbf16>, vector<512x512xbf16>, vector<8x512xf32> -> vector<8x512xf32>
    %20 = arith.addf %14, %19 : vector<8x512xf32>
    %c1_18 = arith.constant 1 : index
    %c0_19 = arith.constant 0 : index
    %21 = vector.load %arg7[%c1_18, %c0_19] : memref<10x512xf32, #tpu.memory_space<vmem>>, vector<8x512xf32>
    %22 = arith.truncf %21 : vector<8x512xf32> to vector<8x512xbf16>
    %c1_20 = arith.constant 1 : index
    %c0_21 = arith.constant 0 : index
    %c0_22 = arith.constant 0 : index
    %23 = vector.load %arg3[%c1_20, %c0_21, %c0_22] : memref<3x512x512xbf16, #tpu.memory_space<vmem>>, vector<1x512x512xbf16>
    %24 = vector.shape_cast %23 : vector<1x512x512xbf16> to vector<512x512xbf16>
    %cst_23 = arith.constant dense<0.000000e+00> : vector<8x512xf32>
    %25 = tpu.matmul %22, %24, %cst_23 {dimension_numbers = #tpu.dot_dimension_numbers<[1], [0], [0], [1], [0, 0, 1, 1], [], []>} : vector<8x512xbf16>, vector<512x512xbf16>, vector<8x512xf32> -> vector<8x512xf32>
    %26 = arith.addf %20, %25 : vector<8x512xf32>
    %c2 = arith.constant 2 : index
    %c0_24 = arith.constant 0 : index
    %27 = vector.load %arg7[%c2, %c0_24] : memref<10x512xf32, #tpu.memory_space<vmem>>, vector<8x512xf32>
    %28 = arith.truncf %27 : vector<8x512xf32> to vector<8x512xbf16>
    %c2_25 = arith.constant 2 : index
    %c0_26 = arith.constant 0 : index
    %c0_27 = arith.constant 0 : index
    %29 = vector.load %arg3[%c2_25, %c0_26, %c0_27] : memref<3x512x512xbf16, #tpu.memory_space<vmem>>, vector<1x512x512xbf16>
    %30 = vector.shape_cast %29 : vector<1x512x512xbf16> to vector<512x512xbf16>
    %cst_28 = arith.constant dense<0.000000e+00> : vector<8x512xf32>
    %31 = tpu.matmul %28, %30, %cst_28 {dimension_numbers = #tpu.dot_dimension_numbers<[1], [0], [0], [1], [0, 0, 1, 1], [], []>} : vector<8x512xbf16>, vector<512x512xbf16>, vector<8x512xf32> -> vector<8x512xf32>
    %32 = arith.addf %26, %31 : vector<8x512xf32>
    %c0_29 = arith.constant 0 : index
    %c0_30 = arith.constant 0 : index
    %c0_31 = arith.constant 0 : index
    %33 = vector.load %arg4[%c0_29, %c0_30, %c0_31] : memref<1x8x256xf32, #tpu.memory_space<vmem>>, vector<1x8x256xf32>
    %34 = vector.shape_cast %33 : vector<1x8x256xf32> to vector<8x256xf32>
    %c0_32 = arith.constant 0 : index
    %c0_33 = arith.constant 0 : index
    %35 = vector.load %arg5[%c0_32, %c0_33] : memref<256x512xf32, #tpu.memory_space<vmem>>, vector<256x512xf32>
    %cst_34 = arith.constant dense<0.000000e+00> : vector<8x512xf32>
    %36 = tpu.matmul %34, %35, %cst_34 {dimension_numbers = #tpu.dot_dimension_numbers<[1], [0], [0], [1], [0, 0, 1, 1], [], []>} : vector<8x256xf32>, vector<256x512xf32>, vector<8x512xf32> -> vector<8x512xf32>
    %37 = arith.addf %32, %36 : vector<8x512xf32>
    %c0_35 = arith.constant 0 : index
    %c0_36 = arith.constant 0 : index
    %c0_37 = arith.constant 0 : index
    %38 = vector.load %arg6[%c0_35, %c0_36, %c0_37] : memref<1x8x512xf32, #tpu.memory_space<vmem>>, vector<1x8x512xf32>
    %39 = vector.shape_cast %38 : vector<1x8x512xf32> to vector<8x512xf32>
    %40 = vector.shape_cast %37 : vector<8x512xf32> to vector<1x8x512xf32>
    tpu.vector_store %arg6[%c0_35, %c0_36, %c0_37], %40 {strides = array<i32>} : memref<1x8x512xf32, #tpu.memory_space<vmem>>, vector<1x8x512xf32>,
    return
  }
  func.func @transform_0(%arg0: i32) -> (i32, i32, i32) {
    %c0_i32 = arith.constant 0 : i32
    %c0_i32_0 = arith.constant 0 : i32
    %c0_i32_1 = arith.constant 0 : i32
    return %arg0, %c0_i32, %c0_i32_0 : i32, i32, i32
  }
  func.func @transform_1(%arg0: i32) -> (i32, i32) {
    %c0_i32 = arith.constant 0 : i32
    %c0_i32_0 = arith.constant 0 : i32
    %c0_i32_1 = arith.constant 0 : i32
    return %c0_i32, %c0_i32_0 : i32, i32
  }
  func.func @transform_2(%arg0: i32) -> (i32, i32, i32) {
    %c0_i32 = arith.constant 0 : i32
    %c0_i32_0 = arith.constant 0 : i32
    %c0_i32_1 = arith.constant 0 : i32
    %c0_i32_2 = arith.constant 0 : i32
    return %c0_i32, %c0_i32_0, %c0_i32_1 : i32, i32, i32
  }
  func.func @transform_3(%arg0: i32) -> (i32, i32, i32) {
    %c0_i32 = arith.constant 0 : i32
    %c0_i32_0 = arith.constant 0 : i32
    %c0_i32_1 = arith.constant 0 : i32
    return %arg0, %c0_i32, %c0_i32_0 : i32, i32, i32
  }
  func.func @transform_4(%arg0: i32) -> (i32, i32) {
    %c0_i32 = arith.constant 0 : i32
    %c0_i32_0 = arith.constant 0 : i32
    %c0_i32_1 = arith.constant 0 : i32
    return %c0_i32, %c0_i32_0 : i32, i32
  }
  func.func @transform_5(%arg0: i32) -> (i32, i32, i32) {
    %c0_i32 = arith.constant 0 : i32
    %c0_i32_0 = arith.constant 0 : i32
    %c0_i32_1 = arith.constant 0 : i32
    return %arg0, %c0_i32, %c0_i32_0 : i32, i32, i32
  }
}

</mosaic_0001>

<llo_original>
// kernel: tile.27
$region0: #{tile.27}
  #allocation0 [shape = 's32[1]{0}', space=sflag, size = 0x4, scoped, tag = 'scoped memory for tile.27']
  %s0 = inlined_call_operand.vmem [shape: f32[4], index: 0, kind: input, shape index: {}]
  %s1 = inlined_call_operand.vmem [shape: f32[64,4], index: 1, kind: output, shape index: {}]
  // Predicated region
  $region2: #{tile.27} parent=0 // pred_check
    _
  $region3: #{tile.27} parent=0 // pred_check_branch
    %3 = sbr.rel (0) target = $region5
  $region4: #{tile.27} parent=0 // pred_region
    _
  $region5: #{tile.27} parent=0 // pred_fallthru
    _
  %v4 = vld [vmem:[%s0] ss:$0 sm:$0xff]
  %5 = vst [vmem:[%s1] sm:$0xff] %v4
  %s6 = scalar_lea.vmem %s1, 8
  %7 = vst [vmem:[%s6] sm:$0xff] %v4
  %s8 = scalar_lea.vmem %s1, 16
  %9 = vst [vmem:[%s8] sm:$0xff] %v4
  %s10 = scalar_lea.vmem %s1, 24
  %11 = vst [vmem:[%s10] sm:$0xff] %v4
  %s12 = scalar_lea.vmem %s1, 32
  %13 = vst [vmem:[%s12] sm:$0xff] %v4
  %s14 = scalar_lea.vmem %s1, 40
  %15 = vst [vmem:[%s14] sm:$0xff] %v4
  %s16 = scalar_lea.vmem %s1, 48
  %17 = vst [vmem:[%s16] sm:$0xff] %v4
  %s18 = scalar_lea.vmem %s1, 56
  %19 = vst [vmem:[%s18] sm:$0xff] %v4

// kernel: tile.29
$region0: #{tile.29}
  %s0 = inlined_call_operand.vmem [shape: f32[64,4], index: 0, kind: input, shape index: {}]
  %s1 = inlined_call_operand.vmem [shape: f32[1,256], index: 1, kind: output, shape index: {}]
  $region1: #{tile.29} parent=0
    #allocation0 [shape = 'u8[8192]{0}', space=vmem, size = 0x2000, scoped, tag = 'scoped mem for output reshape']
    %v2 = vld [vmem:[%s0] sm:$0x1]
    %s3 = scalar_lea.vmem %s0, 31
    %v4 = vld [vmem:[%s3] sm:$0x2]
    %vm5 = vcmask 1041409
    %v6 = vsel %vm5, %v4, %v2
    %vm7 = vcmask 31744
    %8 = vst.msk [vmem:[#allocation0] ss:$8 sm:$0x3] %vm7, %v6
    %s9 = scalar_lea.vmem %s0, 31
    %v10 = vld [vmem:[%s9] sm:$0x1]
    %s11 = scalar_lea.vmem %s0, 62
    %v12 = vld [vmem:[%s11] sm:$0x2]
    %vm13 = vcmask 1041409
    %v14 = vsel %vm13, %v12, %v10
    %15 = vrot.lane.b32.xlu0 %v14, 124
    %v16 = vpop.permute.xlu0 %15
    %vm17 = vcmask 1048544
    %18 = vst.msk [vmem:[#allocation0] ss:$8 sm:$0x3] %vm17, %v16
    %s19 = scalar_lea.vmem %s0, 30
    %v20 = vld [vmem:[%s19] sm:$0x1]
    %s21 = scalar_lea.vmem %s0, 61
    %v22 = vld [vmem:[%s21] sm:$0x2]
    %vm23 = vcmask 1041409
    %v24 = vsel %vm23, %v22, %v20
    %25 = vrot.lane.b32.xlu0 %v24, 120
    %v26 = vpop.permute.xlu0 %25
    %vm27 = vcmask 1015744
    %28 = vst.msk [vmem:[#allocation0] ss:$8 sm:$0x3] %vm27, %v26
    %s29 = scalar_lea.vmem %s0, 29
    %v30 = vld [vmem:[%s29] sm:$0x1]
    %s31 = scalar_lea.vmem %s0, 60
    %v32 = vld [vmem:[%s31] sm:$0x2]
    %vm33 = vcmask 1041409
    %v34 = vsel %vm33, %v32, %v30
    %35 = vrot.lane.b32.xlu0 %v34, 116
    %v36 = vpop.permute.xlu0 %35
    %vm37 = vcmask 982944
    %38 = vst.msk [vmem:[#allocation0] ss:$8 sm:$0x3] %vm37, %v36
    %s39 = scalar_lea.vmem %s0, 28
    %v40 = vld [vmem:[%s39] sm:$0x1]
    %s41 = scalar_lea.vmem %s0, 59
    %v42 = vld [vmem:[%s41] sm:$0x2]
    %vm43 = vcmask 1041409
    %v44 = vsel %vm43, %v42, %v40
    %45 = vrot.lane.b32.xlu0 %v44, 112
    %v46 = vpop.permute.xlu0 %45
    %vm47 = vcmask 950144
    %48 = vst.msk [vmem:[#allocation0] ss:$8 sm:$0x3] %vm47, %v46
    %s49 = scalar_lea.vmem %s0, 27
    %v50 = vld [vmem:[%s49] sm:$0x1]
    %s51 = scalar_lea.vmem %s0, 58
    %v52 = vld [vmem:[%s51] sm:$0x2]
    %vm53 = vcmask 1041409
    %v54 = vsel %vm53, %v52, %v50
    %55 = vrot.lane.b32.xlu0 %v54, 108
    %v56 = vpop.permute.xlu0 %55
    %vm57 = vcmask 917344
    %58 = vst.msk [vmem:[#allocation0] ss:$8 sm:$0x3] %vm57, %v56
    %s59 = scalar_lea.vmem %s0, 26
    %v60 = vld [vmem:[%s59] sm:$0x1]
    %s61 = scalar_lea.vmem %s0, 57
    %v62 = vld [vmem:[%s61] sm:$0x2]
    %vm63 = vcmask 1041409
    %v64 = vsel %vm63, %v62, %v60
    %65 = vrot.lane.b32.xlu0 %v64, 104
    %v66 = vpop.permute.xlu0 %65
    %vm67 = vcmask 884544
    %68 = vst.msk [vmem:[#allocation0] ss:$8 sm:$0x3] %vm67, %v66
    %s69 = scalar_lea.vmem %s0, 25
    %v70 = vld [vmem:[%s69] sm:$0x1]
    %s71 = scalar_lea.vmem %s0, 56
    %v72 = vld [vmem:[%s71] sm:$0x2]
    %vm73 = vcmask 1041409
    %v74 = vsel %vm73, %v72, %v70
    %75 = vrot.lane.b32.xlu0 %v74, 100
    %v76 = vpop.permute.xlu0 %75
    %vm77 = vcmask 851744
    %78 = vst.msk [vmem:[#allocation0] ss:$8 sm:$0x3] %vm77, %v76
    %s79 = scalar_lea.vmem %s0, 24
    %v80 = vld [vmem:[%s79] sm:$0x1]
    %s81 = scalar_lea.vmem %s0, 55
    %v82 = vld [vmem:[%s81] sm:$0x2]
    %vm83 = vcmask 1041409
    %v84 = vsel %vm83, %v82, %v80
    %85 = vrot.lane.b32.xlu0 %v84, 96
    %v86 = vpop.permute.xlu0 %85
    %vm87 = vcmask 818944
    %88 = vst.msk [vmem:[#allocation0] ss:$8 sm:$0x3] %vm87, %v86
    %s89 = scalar_lea.vmem %s0, 23
    %v90 = vld [vmem:[%s89] sm:$0x1]
    %s91 = scalar_lea.vmem %s0, 54
    %v92 = vld [vmem:[%s91] sm:$0x2]
    %vm93 = vcmask 1041409
    %v94 = vsel %vm93, %v92, %v90
    %95 = vrot.lane.b32.xlu0 %v94, 92
    %v96 = vpop.permute.xlu0 %95
    %vm97 = vcmask 786144
    %98 = vst.msk [vmem:[#allocation0] ss:$8 sm:$0x3] %vm97, %v96
    %s99 = scalar_lea.vmem %s0, 22
    %v100 = vld [vmem:[%s99] sm:$0x1]
    %s101 = scalar_lea.vmem %s0, 53
    %v102 = vld [vmem:[%s101] sm:$0x2]
    %vm103 = vcmask 1041409
    %v104 = vsel %vm103, %v102, %v100
    %105 = vrot.lane.b32.xlu0 %v104, 88
    %v106 = vpop.permute.xlu0 %105
    %vm107 = vcmask 753344
    %108 = vst.msk [vmem:[#allocation0] ss:$8 sm:$0x3] %vm107, %v106
    %s109 = scalar_lea.vmem %s0, 21
    %v110 = vld [vmem:[%s109] sm:$0x1]
    %s111 = scalar_lea.vmem %s0, 52
    %v112 = vld [vmem:[%s111] sm:$0x2]
    %vm113 = vcmask 1041409
    %v114 = vsel %vm113, %v112, %v110
    %115 = vrot.lane.b32.xlu0 %v114, 84
    %v116 = vpop.permute.xlu0 %115
    %vm117 = vcmask 720544
    %118 = vst.msk [vmem:[#allocation0] ss:$8 sm:$0x3] %vm117, %v116
    %s119 = scalar_lea.vmem %s0, 20
    %v120 = vld [vmem:[%s119] sm:$0x1]
    %s121 = scalar_lea.vmem %s0, 51
    %v122 = vld [vmem:[%s121] sm:$0x2]
    %vm123 = vcmask 1041409
    %v124 = vsel %vm123, %v122, %v120
    %125 = vrot.lane.b32.xlu0 %v124, 80
    %v126 = vpop.permute.xlu0 %125
    %vm127 = vcmask 687744
    %128 = vst.msk [vmem:[#allocation0] ss:$8 sm:$0x3] %vm127, %v126
    %s129 = scalar_lea.vmem %s0, 19
    %v130 = vld [vmem:[%s129] sm:$0x1]
    %s131 = scalar_lea.vmem %s0, 50
    %v132 = vld [vmem:[%s131] sm:$0x2]
    %vm133 = vcmask 1041409
    %v134 = vsel %vm133, %v132, %v130
    %135 = vrot.lane.b32.xlu0 %v134, 76
    %v136 = vpop.permute.xlu0 %135
    %vm137 = vcmask 654944
    %138 = vst.msk [vmem:[#allocation0] ss:$8 sm:$0x3] %vm137, %v136
    %s139 = scalar_lea.vmem %s0, 18
    %v140 = vld [vmem:[%s139] sm:$0x1]
    %s141 = scalar_lea.vmem %s0, 49
    %v142 = vld [vmem:[%s141] sm:$0x2]
    %vm143 = vcmask 1041409
    %v144 = vsel %vm143, %v142, %v140
    %145 = vrot.lane.b32.xlu0 %v144, 72
    %v146 = vpop.permute.xlu0 %145
    %vm147 = vcmask 622144
    %148 = vst.msk [vmem:[#allocation0] ss:$8 sm:$0x3] %vm147, %v146
    %s149 = scalar_lea.vmem %s0, 17
    %v150 = vld [vmem:[%s149] sm:$0x1]
    %s151 = scalar_lea.vmem %s0, 48
    %v152 = vld [vmem:[%s151] sm:$0x2]
    %vm153 = vcmask 1041409
    %v154 = vsel %vm153, %v152, %v150
    %155 = vrot.lane.b32.xlu0 %v154, 68
    %v156 = vpop.permute.xlu0 %155
    %vm157 = vcmask 589344
    %158 = vst.msk [vmem:[#allocation0] ss:$8 sm:$0x3] %vm157, %v156
    %s159 = scalar_lea.vmem %s0, 16
    %v160 = vld [vmem:[%s159] sm:$0x1]
    %s161 = scalar_lea.vmem %s0, 47
    %v162 = vld [vmem:[%s161] sm:$0x2]
    %vm163 = vcmask 1041409
    %v164 = vsel %vm163, %v162, %v160
    %165 = vrot.lane.b32.xlu0 %v164, 64
    %v166 = vpop.permute.xlu0 %165
    %vm167 = vcmask 556544
    %168 = vst.msk [vmem:[#allocation0] ss:$8 sm:$0x3] %vm167, %v166
    %s169 = scalar_lea.vmem %s0, 15
    %v170 = vld [vmem:[%s169] sm:$0x1]
    %s171 = scalar_lea.vmem %s0, 46
    %v172 = vld [vmem:[%s171] sm:$0x2]
    %vm173 = vcmask 1041409
    %v174 = vsel %vm173, %v172, %v170
    %175 = vrot.lane.b32.xlu0 %v174, 60
    %v176 = vpop.permute.xlu0 %175
    %vm177 = vcmask 523744
    %178 = vst.msk [vmem:[#allocation0] ss:$8 sm:$0x3] %vm177, %v176
    %s179 = scalar_lea.vmem %s0, 14
    %v180 = vld [vmem:[%s179] sm:$0x1]
    %s181 = scalar_lea.vmem %s0, 45
    %v182 = vld [vmem:[%s181] sm:$0x2]
    %vm183 = vcmask 1041409
    %v184 = vsel %vm183, %v182, %v180
    %185 = vrot.lane.b32.xlu0 %v184, 56
    %v186 = vpop.permute.xlu0 %185
    %vm187 = vcmask 490944
    %188 = vst.msk [vmem:[#allocation0] ss:$8 sm:$0x3] %vm187, %v186
    %s189 = scalar_lea.vmem %s0, 13
    %v190 = vld [vmem:[%s189] sm:$0x1]
    %s191 = scalar_lea.vmem %s0, 44
    %v192 = vld [vmem:[%s191] sm:$0x2]
    %vm193 = vcmask 1041409
    %v194 = vsel %vm193, %v192, %v190
    %195 = vrot.lane.b32.xlu0 %v194, 52
    %v196 = vpop.permute.xlu0 %195
    %vm197 = vcmask 458144
    %198 = vst.msk [vmem:[#allocation0] ss:$8 sm:$0x3] %vm197, %v196
    %s199 = scalar_lea.vmem %s0, 12
    %v200 = vld [vmem:[%s199] sm:$0x1]
    %s201 = scalar_lea.vmem %s0, 43
    %v202 = vld [vmem:[%s201] sm:$0x2]
    %vm203 = vcmask 1041409
    %v204 = vsel %vm203, %v202, %v200
    %205 = vrot.lane.b32.xlu0 %v204, 48
    %v206 = vpop.permute.xlu0 %205
    %vm207 = vcmask 425344
    %208 = vst.msk [vmem:[#allocation0] ss:$8 sm:$0x3] %vm207, %v206
    %s209 = scalar_lea.vmem %s0, 11
    %v210 = vld [vmem:[%s209] sm:$0x1]
    %s211 = scalar_lea.vmem %s0, 42
    %v212 = vld [vmem:[%s211] sm:$0x2]
    %vm213 = vcmask 1041409
    %v214 = vsel %vm213, %v212, %v210
    %215 = vrot.lane.b32.xlu0 %v214, 44
    %v216 = vpop.permute.xlu0 %215
    %vm217 = vcmask 392544
    %218 = vst.msk [vmem:[#allocation0] ss:$8 sm:$0x3] %vm217, %v216
    %s219 = scalar_lea.vmem %s0, 10
    %v220 = vld [vmem:[%s219] sm:$0x1]
    %s221 = scalar_lea.vmem %s0, 41
    %v222 = vld [vmem:[%s221] sm:$0x2]
    %vm223 = vcmask 1041409
    %v224 = vsel %vm223, %v222, %v220
    %225 = vrot.lane.b32.xlu0 %v224, 40
    %v226 = vpop.permute.xlu0 %225
    %vm227 = vcmask 359744
    %228 = vst.msk [vmem:[#allocation0] ss:$8 sm:$0x3] %vm227, %v226
    %s229 = scalar_lea.vmem %s0, 9
    %v230 = vld [vmem:[%s229] sm:$0x1]
    %s231 = scalar_lea.vmem %s0, 40
    %v232 = vld [vmem:[%s231] sm:$0x2]
    %vm233 = vcmask 1041409
    %v234 = vsel %vm233, %v232, %v230
    %235 = vrot.lane.b32.xlu0 %v234, 36
    %v236 = vpop.permute.xlu0 %235
    %vm237 = vcmask 326944
    %238 = vst.msk [vmem:[#allocation0] ss:$8 sm:$0x3] %vm237, %v236
    %s239 = scalar_lea.vmem %s0, 8
    %v240 = vld [vmem:[%s239] sm:$0x1]
    %s241 = scalar_lea.vmem %s0, 39
    %v242 = vld [vmem:[%s241] sm:$0x2]
    %vm243 = vcmask 1041409
    %v244 = vsel %vm243, %v242, %v240
    %245 = vrot.lane.b32.xlu0 %v244, 32
    %v246 = vpop.permute.xlu0 %245
    %vm247 = vcmask 294144
    %248 = vst.msk [vmem:[#allocation0] ss:$8 sm:$0x3] %vm247, %v246
    %s249 = scalar_lea.vmem %s0, 7
    %v250 = vld [vmem:[%s249] sm:$0x1]
    %s251 = scalar_lea.vmem %s0, 38
    %v252 = vld [vmem:[%s251] sm:$0x2]
    %vm253 = vcmask 1041409
    %v254 = vsel %vm253, %v252, %v250
    %255 = vrot.lane.b32.xlu0 %v254, 28
    %v256 = vpop.permute.xlu0 %255
    %vm257 = vcmask 261344
    %258 = vst.msk [vmem:[#allocation0] ss:$8 sm:$0x3] %vm257, %v256
    %s259 = scalar_lea.vmem %s0, 6
    %v260 = vld [vmem:[%s259] sm:$0x1]
    %s261 = scalar_lea.vmem %s0, 37
    %v262 = vld [vmem:[%s261] sm:$0x2]
    %vm263 = vcmask 1041409
    %v264 = vsel %vm263, %v262, %v260
    %265 = vrot.lane.b32.xlu0 %v264, 24
    %v266 = vpop.permute.xlu0 %265
    %vm267 = vcmask 228544
    %268 = vst.msk [vmem:[#allocation0] ss:$8 sm:$0x3] %vm267, %v266
    %s269 = scalar_lea.vmem %s0, 5
    %v270 = vld [vmem:[%s269] sm:$0x1]
    %s271 = scalar_lea.vmem %s0, 36
    %v272 = vld [vmem:[%s271] sm:$0x2]
    %vm273 = vcmask 1041409
    %v274 = vsel %vm273, %v272, %v270
    %275 = vrot.lane.b32.xlu0 %v274, 20
    %v276 = vpop.permute.xlu0 %275
    %vm277 = vcmask 195744
    %278 = vst.msk [vmem:[#allocation0] ss:$8 sm:$0x3] %vm277, %v276
    %s279 = scalar_lea.vmem %s0, 4
    %v280 = vld [vmem:[%s279] sm:$0x1]
    %s281 = scalar_lea.vmem %s0, 35
    %v282 = vld [vmem:[%s281] sm:$0x2]
    %vm283 = vcmask 1041409
    %v284 = vsel %vm283, %v282, %v280
    %285 = vrot.lane.b32.xlu0 %v284, 16
    %v286 = vpop.permute.xlu0 %285
    %vm287 = vcmask 162944
    %288 = vst.msk [vmem:[#allocation0] ss:$8 sm:$0x3] %vm287, %v286
    %s289 = scalar_lea.vmem %s0, 3
    %v290 = vld [vmem:[%s289] sm:$0x1]
    %s291 = scalar_lea.vmem %s0, 34
    %v292 = vld [vmem:[%s291] sm:$0x2]
    %vm293 = vcmask 1041409
    %v294 = vsel %vm293, %v292, %v290
    %295 = vrot.lane.b32.xlu0 %v294, 12
    %v296 = vpop.permute.xlu0 %295
    %vm297 = vcmask 130144
    %298 = vst.msk [vmem:[#allocation0] ss:$8 sm:$0x3] %vm297, %v296
    %s299 = scalar_lea.vmem %s0, 2
    %v300 = vld [vmem:[%s299] sm:$0x1]
    %s301 = scalar_lea.vmem %s0, 33
    %v302 = vld [vmem:[%s301] sm:$0x2]
    %vm303 = vcmask 1041409
    %v304 = vsel %vm303, %v302, %v300
    %305 = vrot.lane.b32.xlu0 %v304, 8
    %v306 = vpop.permute.xlu0 %305
    %vm307 = vcmask 97344
    %308 = vst.msk [vmem:[#allocation0] ss:$8 sm:$0x3] %vm307, %v306
    %s309 = scalar_lea.vmem %s0, 1
    %v310 = vld [vmem:[%s309] sm:$0x1]
    %s311 = scalar_lea.vmem %s0, 32
    %v312 = vld [vmem:[%s311] sm:$0x2]
    %vm313 = vcmask 1041409
    %v314 = vsel %vm313, %v312, %v310
    %315 = vrot.lane.b32.xlu0 %v314, 4
    %v316 = vpop.permute.xlu0 %315
    %vm317 = vcmask 64544
    %318 = vst.msk [vmem:[#allocation0] ss:$8 sm:$0x3] %vm317, %v316
    %s320 = ssub.s32 2, 1
    %v321 = vld [vmem:[#allocation0] sm:%s320]
    %s323 = ssub.s32 2, 1
    %324 = vst [vmem:[%s1] sm:%s323] %v321
    %s325 = scalar_lea.vmem [#allocation0], 8
    %v326 = vld [vmem:[%s325] sm:%s320]
    %s328 = ssub.s32 2, 1
    %s329 = scalar_lea.vmem %s1, 1
    %330 = vst [vmem:[%s329] sm:%s328] %v326

// kernel: tile.37
$region0: #{tile.37}
  #allocation0 [shape = 's32[1]{0}', space=sflag, size = 0x4, scoped, tag = 'scoped memory for tile.37']
  %s0 = inlined_call_operand.vmem [shape: f32[8], index: 0, kind: input, shape index: {}]
  %s1 = inlined_call_operand.vmem [shape: f32[64,8], index: 1, kind: output, shape index: {}]
  // Predicated region
  $region2: #{tile.37} parent=0 // pred_check
    _
  $region3: #{tile.37} parent=0 // pred_check_branch
    %3 = sbr.rel (0) target = $region5
  $region4: #{tile.37} parent=0 // pred_region
    _
  $region5: #{tile.37} parent=0 // pred_fallthru
    _
  %v4 = vld [vmem:[%s0] ss:$0 sm:$0xff]
  %5 = vst [vmem:[%s1] sm:$0xff] %v4
  %s6 = scalar_lea.vmem %s1, 8
  %7 = vst [vmem:[%s6] sm:$0xff] %v4
  %s8 = scalar_lea.vmem %s1, 16
  %9 = vst [vmem:[%s8] sm:$0xff] %v4
  %s10 = scalar_lea.vmem %s1, 24
  %11 = vst [vmem:[%s10] sm:$0xff] %v4
  %s12 = scalar_lea.vmem %s1, 32
  %13 = vst [vmem:[%s12] sm:$0xff] %v4
  %s14 = scalar_lea.vmem %s1, 40
  %15 = vst [vmem:[%s14] sm:$0xff] %v4
  %s16 = scalar_lea.vmem %s1, 48
  %17 = vst [vmem:[%s16] sm:$0xff] %v4
  %s18 = scalar_lea.vmem %s1, 56
  %19 = vst [vmem:[%s18] sm:$0xff] %v4

// kernel: tile.39
$region0: #{tile.39}
  %s0 = inlined_call_operand.vmem [shape: f32[64,8], index: 0, kind: input, shape index: {}]
  %s1 = inlined_call_operand.vmem [shape: f32[1,512], index: 1, kind: output, shape index: {}]
  $region1: #{tile.39} parent=0
    #allocation0 [shape = 'u8[16384]{0}', space=vmem, size = 0x4000, scoped, tag = 'scoped mem for output reshape']
    %s2 = smov 3
    %v3 = vld [vmem:[%s0] ss:$16 sm:%s2]
    %s4 = smov 12
    %v5 = vld [vmem:[%s0] ss:$16 sm:%s4]
    %vm6 = vcmask 1043458
    %v7 = vsel %vm6, %v5, %v3
    %vm8 = vcmask 64512
    %9 = vst.msk [vmem:[#allocation0] ss:$8 sm:$0xf] %vm8, %v7
    %s10 = scalar_lea.vmem %s0, 15
    %s11 = smov 3
    %v12 = vld [vmem:[%s10] ss:$16 sm:%s11]
    %s13 = scalar_lea.vmem %s0, 15
    %s14 = smov 12
    %v15 = vld [vmem:[%s13] ss:$16 sm:%s14]
    %vm16 = vcmask 1043458
    %v17 = vsel %vm16, %v15, %v12
    %18 = vrot.lane.b32.xlu0 %v17, 120
    %v19 = vpop.permute.xlu0 %18
    %vm20 = vcmask 1048512
    %21 = vst.msk [vmem:[#allocation0] ss:$8 sm:$0xf] %vm20, %v19
    %s22 = scalar_lea.vmem %s0, 14
    %s23 = smov 3
    %v24 = vld [vmem:[%s22] ss:$16 sm:%s23]
    %s25 = scalar_lea.vmem %s0, 14
    %s26 = smov 12
    %v27 = vld [vmem:[%s25] ss:$16 sm:%s26]
    %vm28 = vcmask 1043458
    %v29 = vsel %vm28, %v27, %v24
    %30 = vrot.lane.b32.xlu0 %v29, 112
    %v31 = vpop.permute.xlu0 %30
    %vm32 = vcmask 982912
    %33 = vst.msk [vmem:[#allocation0] ss:$8 sm:$0xf] %vm32, %v31
    %s34 = scalar_lea.vmem %s0, 13
    %s35 = smov 3
    %v36 = vld [vmem:[%s34] ss:$16 sm:%s35]
    %s37 = scalar_lea.vmem %s0, 13
    %s38 = smov 12
    %v39 = vld [vmem:[%s37] ss:$16 sm:%s38]
    %vm40 = vcmask 1043458
    %v41 = vsel %vm40, %v39, %v36
    %42 = vrot.lane.b32.xlu0 %v41, 104
    %v43 = vpop.permute.xlu0 %42
    %vm44 = vcmask 917312
    %45 = vst.msk [vmem:[#allocation0] ss:$8 sm:$0xf] %vm44, %v43
    %s46 = scalar_lea.vmem %s0, 12
    %s47 = smov 3
    %v48 = vld [vmem:[%s46] ss:$16 sm:%s47]
    %s49 = scalar_lea.vmem %s0, 12
    %s50 = smov 12
    %v51 = vld [vmem:[%s49] ss:$16 sm:%s50]
    %vm52 = vcmask 1043458
    %v53 = vsel %vm52, %v51, %v48
    %54 = vrot.lane.b32.xlu0 %v53, 96
    %v55 = vpop.permute.xlu0 %54
    %vm56 = vcmask 851712
    %57 = vst.msk [vmem:[#allocation0] ss:$8 sm:$0xf] %vm56, %v55
    %s58 = scalar_lea.vmem %s0, 11
    %s59 = smov 3
    %v60 = vld [vmem:[%s58] ss:$16 sm:%s59]
    %s61 = scalar_lea.vmem %s0, 11
    %s62 = smov 12
    %v63 = vld [vmem:[%s61] ss:$16 sm:%s62]
    %vm64 = vcmask 1043458
    %v65 = vsel %vm64, %v63, %v60
    %66 = vrot.lane.b32.xlu0 %v65, 88
    %v67 = vpop.permute.xlu0 %66
    %vm68 = vcmask 786112
    %69 = vst.msk [vmem:[#allocation0] ss:$8 sm:$0xf] %vm68, %v67
    %s70 = scalar_lea.vmem %s0, 10
    %s71 = smov 3
    %v72 = vld [vmem:[%s70] ss:$16 sm:%s71]
    %s73 = scalar_lea.vmem %s0, 10
    %s74 = smov 12
    %v75 = vld [vmem:[%s73] ss:$16 sm:%s74]
    %vm76 = vcmask 1043458
    %v77 = vsel %vm76, %v75, %v72
    %78 = vrot.lane.b32.xlu0 %v77, 80
    %v79 = vpop.permute.xlu0 %78
    %vm80 = vcmask 720512
    %81 = vst.msk [vmem:[#allocation0] ss:$8 sm:$0xf] %vm80, %v79
    %s82 = scalar_lea.vmem %s0, 9
    %s83 = smov 3
    %v84 = vld [vmem:[%s82] ss:$16 sm:%s83]
    %s85 = scalar_lea.vmem %s0, 9
    %s86 = smov 12
    %v87 = vld [vmem:[%s85] ss:$16 sm:%s86]
    %vm88 = vcmask 1043458
    %v89 = vsel %vm88, %v87, %v84
    %90 = vrot.lane.b32.xlu0 %v89, 72
    %v91 = vpop.permute.xlu0 %90
    %vm92 = vcmask 654912
    %93 = vst.msk [vmem:[#allocation0] ss:$8 sm:$0xf] %vm92, %v91
    %s94 = scalar_lea.vmem %s0, 8
    %s95 = smov 3
    %v96 = vld [vmem:[%s94] ss:$16 sm:%s95]
    %s97 = scalar_lea.vmem %s0, 8
    %s98 = smov 12
    %v99 = vld [vmem:[%s97] ss:$16 sm:%s98]
    %vm100 = vcmask 1043458
    %v101 = vsel %vm100, %v99, %v96
    %102 = vrot.lane.b32.xlu0 %v101, 64
    %v103 = vpop.permute.xlu0 %102
    %vm104 = vcmask 589312
    %105 = vst.msk [vmem:[#allocation0] ss:$8 sm:$0xf] %vm104, %v103
    %s106 = scalar_lea.vmem %s0, 7
    %s107 = smov 3
    %v108 = vld [vmem:[%s106] ss:$16 sm:%s107]
    %s109 = scalar_lea.vmem %s0, 7
    %s110 = smov 12
    %v111 = vld [vmem:[%s109] ss:$16 sm:%s110]
    %vm112 = vcmask 1043458
    %v113 = vsel %vm112, %v111, %v108
    %114 = vrot.lane.b32.xlu0 %v113, 56
    %v115 = vpop.permute.xlu0 %114
    %vm116 = vcmask 523712
    %117 = vst.msk [vmem:[#allocation0] ss:$8 sm:$0xf] %vm116, %v115
    %s118 = scalar_lea.vmem %s0, 6
    %s119 = smov 3
    %v120 = vld [vmem:[%s118] ss:$16 sm:%s119]
    %s121 = scalar_lea.vmem %s0, 6
    %s122 = smov 12
    %v123 = vld [vmem:[%s121] ss:$16 sm:%s122]
    %vm124 = vcmask 1043458
    %v125 = vsel %vm124, %v123, %v120
    %126 = vrot.lane.b32.xlu0 %v125, 48
    %v127 = vpop.permute.xlu0 %126
    %vm128 = vcmask 458112
    %129 = vst.msk [vmem:[#allocation0] ss:$8 sm:$0xf] %vm128, %v127
    %s130 = scalar_lea.vmem %s0, 5
    %s131 = smov 3
    %v132 = vld [vmem:[%s130] ss:$16 sm:%s131]
    %s133 = scalar_lea.vmem %s0, 5
    %s134 = smov 12
    %v135 = vld [vmem:[%s133] ss:$16 sm:%s134]
    %vm136 = vcmask 1043458
    %v137 = vsel %vm136, %v135, %v132
    %138 = vrot.lane.b32.xlu0 %v137, 40
    %v139 = vpop.permute.xlu0 %138
    %vm140 = vcmask 392512
    %141 = vst.msk [vmem:[#allocation0] ss:$8 sm:$0xf] %vm140, %v139
    %s142 = scalar_lea.vmem %s0, 4
    %s143 = smov 3
    %v144 = vld [vmem:[%s142] ss:$16 sm:%s143]
    %s145 = scalar_lea.vmem %s0, 4
    %s146 = smov 12
    %v147 = vld [vmem:[%s145] ss:$16 sm:%s146]
    %vm148 = vcmask 1043458
    %v149 = vsel %vm148, %v147, %v144
    %150 = vrot.lane.b32.xlu0 %v149, 32
    %v151 = vpop.permute.xlu0 %150
    %vm152 = vcmask 326912
    %153 = vst.msk [vmem:[#allocation0] ss:$8 sm:$0xf] %vm152, %v151
    %s154 = scalar_lea.vmem %s0, 3
    %s155 = smov 3
    %v156 = vld [vmem:[%s154] ss:$16 sm:%s155]
    %s157 = scalar_lea.vmem %s0, 3
    %s158 = smov 12
    %v159 = vld [vmem:[%s157] ss:$16 sm:%s158]
    %vm160 = vcmask 1043458
    %v161 = vsel %vm160, %v159, %v156
    %162 = vrot.lane.b32.xlu0 %v161, 24
    %v163 = vpop.permute.xlu0 %162
    %vm164 = vcmask 261312
    %165 = vst.msk [vmem:[#allocation0] ss:$8 sm:$0xf] %vm164, %v163
    %s166 = scalar_lea.vmem %s0, 2
    %s167 = smov 3
    %v168 = vld [vmem:[%s166] ss:$16 sm:%s167]
    %s169 = scalar_lea.vmem %s0, 2
    %s170 = smov 12
    %v171 = vld [vmem:[%s169] ss:$16 sm:%s170]
    %vm172 = vcmask 1043458
    %v173 = vsel %vm172, %v171, %v168
    %174 = vrot.lane.b32.xlu0 %v173, 16
    %v175 = vpop.permute.xlu0 %174
    %vm176 = vcmask 195712
    %177 = vst.msk [vmem:[#allocation0] ss:$8 sm:$0xf] %vm176, %v175
    %s178 = scalar_lea.vmem %s0, 1
    %s179 = smov 3
    %v180 = vld [vmem:[%s178] ss:$16 sm:%s179]
    %s181 = scalar_lea.vmem %s0, 1
    %s182 = smov 12
    %v183 = vld [vmem:[%s181] ss:$16 sm:%s182]
    %vm184 = vcmask 1043458
    %v185 = vsel %vm184, %v183, %v180
    %186 = vrot.lane.b32.xlu0 %v185, 8
    %v187 = vpop.permute.xlu0 %186
    %vm188 = vcmask 130112
    %189 = vst.msk [vmem:[#allocation0] ss:$8 sm:$0xf] %vm188, %v187
    %s191 = ssub.s32 2, 1
    %v192 = vld [vmem:[#allocation0] sm:%s191]
    %s194 = ssub.s32 2, 1
    %195 = vst [vmem:[%s1] sm:%s194] %v192
    %s196 = scalar_lea.vmem [#allocation0], 8
    %v197 = vld [vmem:[%s196] sm:%s191]
    %s199 = ssub.s32 2, 1
    %s200 = scalar_lea.vmem %s1, 1
    %201 = vst [vmem:[%s200] sm:%s199] %v197
    %s202 = scalar_lea.vmem [#allocation0], 16
    %v203 = vld [vmem:[%s202] sm:%s191]
    %s205 = ssub.s32 2, 1
    %s206 = scalar_lea.vmem %s1, 2
    %207 = vst [vmem:[%s206] sm:%s205] %v203
    %s208 = scalar_lea.vmem [#allocation0], 24
    %v209 = vld [vmem:[%s208] sm:%s191]
    %s211 = ssub.s32 2, 1
    %s212 = scalar_lea.vmem %s1, 3
    %213 = vst [vmem:[%s212] sm:%s211] %v209

// kernel: resnet_block_forward.2
$region0: #{resnet_block_forward.2}
  #allocation0 [shape = 'u32[]', space=smem, size = 0x4, offset = 0x4, fixed_abs, tag = 'smem constant byte address 0x4 - core index']
  #allocation1 [shape = 'u32[72,128]{1,0:T(1,128)}', space=vmem, size = 0x9000, scoped, tag = 'internal scratch']
  #allocation2 [shape = 'f32[10,256]{1,0:T(8,128)}', space=vmem, size = 0x4000, scoped, tag = 'scratch operand']
  %s0 = inlined_call_operand.vmem [shape: f32[2,8,256], index: 0, kind: input, shape index: {}]
  %s1 = inlined_call_operand.vmem [shape: f32[2,256], index: 1, kind: input, shape index: {}]
  %s2 = inlined_call_operand.vmem [shape: bf16[3,256,512], index: 2, kind: input, shape index: {}]
  %s3 = inlined_call_operand.vmem [shape: f32[2,8,512], index: 3, kind: output, shape index: {}]
  %s4 = sld [smem:[#allocation0]]
  $region45: #{resnet_block_forward.2} parent=0
    _
  %s6 = ssub.s32 1, %s4
  %s7 = scalar_select 0, %s6, %s4
  loop: start=0, step=1, limit=4
  $region2: #{resnet_block_forward.2} parent=0 // loop_pre_header
    _
  $region3: #{resnet_block_forward.2} parent=0 // loop_header
    %s9 = sphi 0, %s13
    %p10 = scmp.ge.s32.totalorder %s9, 4
    %s19 = sphi 0, %s21
    %s22 = sphi 0, %s19
    %s23 = sphi 0, %s22
    %s39 = sphi 0, %s23
    %s43 = sphi 0, %s43
    %s45 = sphi 0, %s43
    %s46 = sphi 0, %s45
    %s60 = sphi 0, %s46
    %s64 = sphi 0, %s64
    %s66 = sphi 0, %s64
    %s67 = sphi 0, %s66
    %s81 = sphi 0, %s67
    %s87 = sphi 0, %s89
    %s90 = sphi 0, %s87
    %s91 = sphi 0, %s90
    %s107 = sphi 0, %s91
  $region4: #{resnet_block_forward.2} parent=0 // loop_header_branch
    %12 = sbr.rel (%p10) target = $region8
  $region5: #{resnet_block_forward.2} parent=0 // loop_body
    %s14 = ssub.s32 %s9, 1
    %s15 = ssub.s32 %s9, 2
    %s16 = sadd.s32 %s9, 1
    %s17 = ssub.s32 %s9, %s16
    %p18 = scmp.eq.s32.totalorder %s17, 0
    %s20 = sadd.s32 %s19, 1
    %s21 = scalar_select %p18, %s19, %s20
    %p24 = pneg %p18
    %p25 = scmp.eq.s32.totalorder %s9, 1
    %p26 = por %p24, %p25
    %p27 = scmp.ne.s32.totalorder %s19, %s22
    %p28 = scmp.eq.s32.totalorder %s9, 0
    %p29 = por %p27, %p28
    %p30 = scmp.ne.s32.totalorder %s19, %s22
    %p31 = scmp.eq.s32.totalorder %s14, 1
    %p32 = por %p30, %p31
    %p33 = scmp.ne.s32.totalorder %s22, %s23
    %p34 = scmp.eq.s32.totalorder %s14, 0
    %p35 = por %p33, %p34
    %p36 = scmp.ne.s32.totalorder %s22, %s23
    %p37 = scmp.eq.s32.totalorder %s15, 1
    %p38 = por %p36, %p37
    %p40 = scmp.ne.s32.totalorder %s23, %s39
    %p41 = scmp.eq.s32.totalorder %s15, 0
    %p42 = por %p40, %p41
    %s44 = sadd.s32 %s43, 1
    %p47 = scmp.eq.s32.totalorder %s9, 1
    %p48 = scmp.ne.s32.totalorder %s43, %s45
    %p49 = scmp.eq.s32.totalorder %s9, 0
    %p50 = por %p48, %p49
    %p51 = scmp.ne.s32.totalorder %s43, %s45
    %p52 = scmp.eq.s32.totalorder %s14, 1
    %p53 = por %p51, %p52
    %p54 = scmp.ne.s32.totalorder %s45, %s46
    %p55 = scmp.eq.s32.totalorder %s14, 0
    %p56 = por %p54, %p55
    %p57 = scmp.ne.s32.totalorder %s45, %s46
    %p58 = scmp.eq.s32.totalorder %s15, 1
    %p59 = por %p57, %p58
    %p61 = scmp.ne.s32.totalorder %s46, %s60
    %p62 = scmp.eq.s32.totalorder %s15, 0
    %p63 = por %p61, %p62
    %s65 = sadd.s32 %s64, 1
    %p68 = scmp.eq.s32.totalorder %s9, 1
    %p69 = scmp.ne.s32.totalorder %s64, %s66
    %p70 = scmp.eq.s32.totalorder %s9, 0
    %p71 = por %p69, %p70
    %p72 = scmp.ne.s32.totalorder %s64, %s66
    %p73 = scmp.eq.s32.totalorder %s14, 1
    %p74 = por %p72, %p73
    %p75 = scmp.ne.s32.totalorder %s66, %s67
    %p76 = scmp.eq.s32.totalorder %s14, 0
    %p77 = por %p75, %p76
    %p78 = scmp.ne.s32.totalorder %s66, %s67
    %p79 = scmp.eq.s32.totalorder %s15, 1
    %p80 = por %p78, %p79
    %p82 = scmp.ne.s32.totalorder %s67, %s81
    %p83 = scmp.eq.s32.totalorder %s15, 0
    %p84 = por %p82, %p83
    %s85 = ssub.s32 %s9, %s16
    %p86 = scmp.eq.s32.totalorder %s85, 0
    %s88 = sadd.s32 %s87, 1
    %s89 = scalar_select %p86, %s87, %s88
    %p92 = pneg %p86
    %p93 = scmp.eq.s32.totalorder %s9, 1
    %p94 = por %p92, %p93
    %p95 = scmp.ne.s32.totalorder %s87, %s90
    %p96 = scmp.eq.s32.totalorder %s9, 0
    %p97 = por %p95, %p96
    %p98 = scmp.ne.s32.totalorder %s87, %s90
    %p99 = scmp.eq.s32.totalorder %s14, 1
    %p100 = por %p98, %p99
    %p101 = scmp.ne.s32.totalorder %s90, %s91
    %p102 = scmp.eq.s32.totalorder %s14, 0
    %p103 = por %p101, %p102
    %p104 = scmp.ne.s32.totalorder %s90, %s91
    %p105 = scmp.eq.s32.totalorder %s15, 1
    %p106 = por %p104, %p105
    %p108 = scmp.ne.s32.totalorder %s91, %s107
    %p109 = scmp.eq.s32.totalorder %s15, 0
    %p110 = por %p108, %p109
    %p111 = scmp.le.s32.totalorder 1, %s9
    %p112 = scmp.lt.s32.totalorder %s9, 3
    %p113 = pnand %p111, %p112
    %p114 = pneg %p113
    // Predicated region
    $region9: #{resnet_block_forward.2} parent=5 // pred_check
      _
    $region10: #{resnet_block_forward.2} parent=5 // pred_check_branch
      %116 = sbr.rel (%p113) target = $region12
    $region11: #{resnet_block_forward.2} parent=5 // pred_region
      %s117 = ssub.s32 %s9, 1
      // Predicated region
      $region13: #{resnet_block_forward.2} parent=11 // pred_check
        %p118 = pneg %p56
      $region14: #{resnet_block_forward.2} parent=11 // pred_check_branch
        %120 = sbr.rel (%p118) target = $region16
      $region15: #{resnet_block_forward.2} parent=11 // pred_region
        _
      $region16: #{resnet_block_forward.2} parent=11 // pred_fallthru
        _
      // Predicated region
      $region17: #{resnet_block_forward.2} parent=11 // pred_check
        %p121 = pneg %p77
      $region18: #{resnet_block_forward.2} parent=11 // pred_check_branch
        %123 = sbr.rel (%p121) target = $region20
      $region19: #{resnet_block_forward.2} parent=11 // pred_region
        _
      $region20: #{resnet_block_forward.2} parent=11 // pred_fallthru
        _
    $region12: #{resnet_block_forward.2} parent=5 // pred_fallthru
      _
    %p124 = scmp.lt.s32.totalorder %s9, 2
    // Predicated region
    $region21: #{resnet_block_forward.2} parent=5 // pred_check
      %p125 = pneg %p124
    $region22: #{resnet_block_forward.2} parent=5 // pred_check_branch
      %127 = sbr.rel (%p125) target = $region24
    $region23: #{resnet_block_forward.2} parent=5 // pred_region
      // Predicated region
      $region25: #{resnet_block_forward.2} parent=23 // pred_check
        %p128 = pneg %p29
      $region26: #{resnet_block_forward.2} parent=23 // pred_check_branch
        %130 = sbr.rel (%p128) target = $region28
      $region27: #{resnet_block_forward.2} parent=23 // pred_region
        %p131 = scmp.lt.s32.totalorder %s9, 1
        %s132 = scalar_select %p131, %s9, 1
        %s133 = smul.addr %s132, 2
        %s134 = smul.addr %s133, 8
        %s135 = scalar_lea.vmem %s0, %s134
      $region28: #{resnet_block_forward.2} parent=23 // pred_fallthru
        _
    $region24: #{resnet_block_forward.2} parent=5 // pred_fallthru
      _
    %p136 = scmp.le.s32.totalorder 1, %s9
    %p137 = scmp.lt.s32.totalorder %s9, 3
    %p138 = pnand %p136, %p137
    %p139 = pneg %p138
    // Predicated region
    $region29: #{resnet_block_forward.2} parent=5 // pred_check
      _
    $region30: #{resnet_block_forward.2} parent=5 // pred_check_branch
      %141 = sbr.rel (%p138) target = $region32
    $region31: #{resnet_block_forward.2} parent=5 // pred_region
      %s142 = ssub.s32 %s9, 1
      %p143 = scmp.lt.s32.totalorder %s14, 1
      %s144 = scalar_select %p143, %s14, 1
      %s145 = smul.addr %s144, 2
      %s146 = smul.addr %s145, 8
      %s147 = scalar_lea.vmem %s0, %s146
      %p148 = pneg %p35
      %p149 = pneg %p32
      %p150 = pneg %p56
      %p151 = pneg %p53
      %p152 = pneg %p77
      %p153 = pneg %p74
      %p154 = pneg %p103
      %p155 = pneg %p100
      %p156 = scmp.lt.s32.totalorder %s14, 1
      %s157 = scalar_select %p156, %s14, 1
      %s158 = smul.addr %s157, 4
      %s159 = smul.addr %s158, 8
      %s160 = scalar_lea.vmem %s3, %s159
      %p161 = scmp.lt.s32.totalorder %s14, 1
      %s162 = scalar_select %p161, %s14, 1
      %s163 = smul.addr %s162, 2
      %s164 = smul.addr %s163, 8
      %s165 = scalar_lea.vmem %s0, %s164
      %p166 = scmp.lt.s32.totalorder %s14, 1
      %s167 = scalar_select %p166, %s14, 1
      %s168 = smul.addr %s167, 4
      %s169 = smul.addr %s168, 8
      %s170 = scalar_lea.vmem %s3, %s169
      %v171 = vld [vmem:[%s1] ss:$2 sm:$0x3]
      %s172 = scalar_lea.vmem %s1, 1
      %v173 = vld [vmem:[%s172] ss:$2 sm:$0x3]
      %v174 = vld [vmem:[%s165] sm:$0xff]
      %v175 = vld [vmem:[%s165 + $0x8] sm:$0xff]
      %v177 = vperm.slane %v171, 0
      %v178 = vperm.slane %v171, 1
      %v181 = vsub.f32 %v174, %v177
      %v182 = vsub.f32 %v175, %v178
      %v184 = vperm.slane %v173, 0
      %v185 = vperm.slane %v173, 1
      %v188 = vmul.f32 %v181, %v184
      %v189 = vmul.f32 %v182, %v185
      %v190 = vmax.f32 %v188, 0.0
      %v191 = vmax.f32 %v189, 0.0
      %v192 = vlaneseq
      %vm193 = vcmp.ge.s32.totalorder %v192, 0
      %vm194 = vcmp.lt.s32.totalorder %v192, 256
      %vm195 = vmand %vm193, %vm194
      %196 = vst.msk [vmem:[#allocation2] ss:$8 sm:$0x3] %vm195, 0.0
      %197 = vst.msk [vmem:[#allocation2] ss:$8 sm:$0x0] %vm195, 0.0
      %s198 = scalar_lea.vmem [#allocation2], 17
      %199 = vst.msk [vmem:[%s198] ss:$8 sm:$0x3] %vm195, 0.0
      %200 = vst.msk [vmem:[%s198] ss:$8 sm:$0x0] %vm195, 0.0
      %v203 = vrot.slane %v190, 7
      %v204 = vrot.slane %v191, 7
      %207 = vst [vmem:[#allocation2] sm:$0xfe] %v203
      %208 = vst [vmem:[#allocation2 + $0x8] sm:$0xfe] %v204
      %209 = vst [vmem:[#allocation2 + $0x10] sm:$0x1] %v203
      %210 = vst [vmem:[#allocation2 + $0x18] sm:$0x1] %v204
      %v211 = vld [vmem:[#allocation2] sm:$0xff]
      %v212 = vld [vmem:[#allocation2 + $0x8] sm:$0xff]
      %v213 = vpack.c.bf16 %v211, %v211
      %v214 = vpack.c.bf16 %v212, %v212
      %v215 = vld [vmem:[%s2] sm:$0xff]
      %v216 = vld [vmem:[%s2 + $0x8] sm:$0xff]
      %v217 = vld [vmem:[%s2 + $0x10] sm:$0xff]
      %v218 = vld [vmem:[%s2 + $0x18] sm:$0xff]
      %v219 = vld [vmem:[%s2 + $0x20] sm:$0xff]
      %v220 = vld [vmem:[%s2 + $0x28] sm:$0xff]
      %v221 = vld [vmem:[%s2 + $0x30] sm:$0xff]
      %v222 = vld [vmem:[%s2 + $0x38] sm:$0xff]
      %v223 = vld [vmem:[%s2 + $0x40] sm:$0xff]
      %v224 = vld [vmem:[%s2 + $0x48] sm:$0xff]
      %v225 = vld [vmem:[%s2 + $0x50] sm:$0xff]
      %v226 = vld [vmem:[%s2 + $0x58] sm:$0xff]
      %v227 = vld [vmem:[%s2 + $0x60] sm:$0xff]
      %v228 = vld [vmem:[%s2 + $0x68] sm:$0xff]
      %v229 = vld [vmem:[%s2 + $0x70] sm:$0xff]
      %v230 = vld [vmem:[%s2 + $0x78] sm:$0xff]
      %v231 = vld [vmem:[%s2 + $0x80] sm:$0xff]
      %v232 = vld [vmem:[%s2 + $0x88] sm:$0xff]
      %v233 = vld [vmem:[%s2 + $0x90] sm:$0xff]
      %v234 = vld [vmem:[%s2 + $0x98] sm:$0xff]
      %v235 = vld [vmem:[%s2 + $0xa0] sm:$0xff]
      %v236 = vld [vmem:[%s2 + $0xa8] sm:$0xff]
      %v237 = vld [vmem:[%s2 + $0xb0] sm:$0xff]
      %v238 = vld [vmem:[%s2 + $0xb8] sm:$0xff]
      %v239 = vld [vmem:[%s2 + $0xc0] sm:$0xff]
      %v240 = vld [vmem:[%s2 + $0xc8] sm:$0xff]
      %v241 = vld [vmem:[%s2 + $0xd0] sm:$0xff]
      %v242 = vld [vmem:[%s2 + $0xd8] sm:$0xff]
      %v243 = vld [vmem:[%s2 + $0xe0] sm:$0xff]
      %v244 = vld [vmem:[%s2 + $0xe8] sm:$0xff]
      %v245 = vld [vmem:[%s2 + $0xf0] sm:$0xff]
      %v246 = vld [vmem:[%s2 + $0xf8] sm:$0xff]
      %v247 = vld [vmem:[%s2 + $0x100] sm:$0xff]
      %v248 = vld [vmem:[%s2 + $0x108] sm:$0xff]
      %v249 = vld [vmem:[%s2 + $0x110] sm:$0xff]
      %v250 = vld [vmem:[%s2 + $0x118] sm:$0xff]
      %v251 = vld [vmem:[%s2 + $0x120] sm:$0xff]
      %v252 = vld [vmem:[%s2 + $0x128] sm:$0xff]
      %v253 = vld [vmem:[%s2 + $0x130] sm:$0xff]
      %v254 = vld [vmem:[%s2 + $0x138] sm:$0xff]
      %v255 = vld [vmem:[%s2 + $0x140] sm:$0xff]
      %v256 = vld [vmem:[%s2 + $0x148] sm:$0xff]
      %v257 = vld [vmem:[%s2 + $0x150] sm:$0xff]
      %v258 = vld [vmem:[%s2 + $0x158] sm:$0xff]
      %v259 = vld [vmem:[%s2 + $0x160] sm:$0xff]
      %v260 = vld [vmem:[%s2 + $0x168] sm:$0xff]
      %v261 = vld [vmem:[%s2 + $0x170] sm:$0xff]
      %v262 = vld [vmem:[%s2 + $0x178] sm:$0xff]
      %v263 = vld [vmem:[%s2 + $0x180] sm:$0xff]
      %v264 = vld [vmem:[%s2 + $0x188] sm:$0xff]
      %v265 = vld [vmem:[%s2 + $0x190] sm:$0xff]
      %v266 = vld [vmem:[%s2 + $0x198] sm:$0xff]
      %v267 = vld [vmem:[%s2 + $0x1a0] sm:$0xff]
      %v268 = vld [vmem:[%s2 + $0x1a8] sm:$0xff]
      %v269 = vld [vmem:[%s2 + $0x1b0] sm:$0xff]
      %v270 = vld [vmem:[%s2 + $0x1b8] sm:$0xff]
      %v271 = vld [vmem:[%s2 + $0x1c0] sm:$0xff]
      %v272 = vld [vmem:[%s2 + $0x1c8] sm:$0xff]
      %v273 = vld [vmem:[%s2 + $0x1d0] sm:$0xff]
      %v274 = vld [vmem:[%s2 + $0x1d8] sm:$0xff]
      %v275 = vld [vmem:[%s2 + $0x1e0] sm:$0xff]
      %v276 = vld [vmem:[%s2 + $0x1e8] sm:$0xff]
      %v277 = vld [vmem:[%s2 + $0x1f0] sm:$0xff]
      %v278 = vld [vmem:[%s2 + $0x1f8] sm:$0xff]
      %v279 = vld [vmem:[#allocation2] sm:$0xfe]
      %v280 = vld [vmem:[#allocation2 + $0x8] sm:$0xfe]
      %v281 = vld [vmem:[#allocation2 + $0x10] sm:$0x1]
      %v282 = vld [vmem:[#allocation2 + $0x18] sm:$0x1]
      %v283 = vpack.c.bf16 %v281, %v279
      %v284 = vpack.c.bf16 %v282, %v280
      %s285 = scalar_lea.vmem %s2, 512
      %v286 = vld [vmem:[%s285] sm:$0xff]
      %v287 = vld [vmem:[%s285 + $0x8] sm:$0xff]
      %v288 = vld [vmem:[%s285 + $0x10] sm:$0xff]
      %v289 = vld [vmem:[%s285 + $0x18] sm:$0xff]
      %v290 = vld [vmem:[%s285 + $0x20] sm:$0xff]
      %v291 = vld [vmem:[%s285 + $0x28] sm:$0xff]
      %v292 = vld [vmem:[%s285 + $0x30] sm:$0xff]
      %v293 = vld [vmem:[%s285 + $0x38] sm:$0xff]
      %v294 = vld [vmem:[%s285 + $0x40] sm:$0xff]
      %v295 = vld [vmem:[%s285 + $0x48] sm:$0xff]
      %v296 = vld [vmem:[%s285 + $0x50] sm:$0xff]
      %v297 = vld [vmem:[%s285 + $0x58] sm:$0xff]
      %v298 = vld [vmem:[%s285 + $0x60] sm:$0xff]
      %v299 = vld [vmem:[%s285 + $0x68] sm:$0xff]
      %v300 = vld [vmem:[%s285 + $0x70] sm:$0xff]
      %v301 = vld [vmem:[%s285 + $0x78] sm:$0xff]
      %v302 = vld [vmem:[%s285 + $0x80] sm:$0xff]
      %v303 = vld [vmem:[%s285 + $0x88] sm:$0xff]
      %v304 = vld [vmem:[%s285 + $0x90] sm:$0xff]
      %v305 = vld [vmem:[%s285 + $0x98] sm:$0xff]
      %v306 = vld [vmem:[%s285 + $0xa0] sm:$0xff]
      %v307 = vld [vmem:[%s285 + $0xa8] sm:$0xff]
      %v308 = vld [vmem:[%s285 + $0xb0] sm:$0xff]
      %v309 = vld [vmem:[%s285 + $0xb8] sm:$0xff]
      %v310 = vld [vmem:[%s285 + $0xc0] sm:$0xff]
      %v311 = vld [vmem:[%s285 + $0xc8] sm:$0xff]
      %v312 = vld [vmem:[%s285 + $0xd0] sm:$0xff]
      %v313 = vld [vmem:[%s285 + $0xd8] sm:$0xff]
      %v314 = vld [vmem:[%s285 + $0xe0] sm:$0xff]
      %v315 = vld [vmem:[%s285 + $0xe8] sm:$0xff]
      %v316 = vld [vmem:[%s285 + $0xf0] sm:$0xff]
      %v317 = vld [vmem:[%s285 + $0xf8] sm:$0xff]
      %v318 = vld [vmem:[%s285 + $0x100] sm:$0xff]
      %v319 = vld [vmem:[%s285 + $0x108] sm:$0xff]
      %v320 = vld [vmem:[%s285 + $0x110] sm:$0xff]
      %v321 = vld [vmem:[%s285 + $0x118] sm:$0xff]
      %v322 = vld [vmem:[%s285 + $0x120] sm:$0xff]
      %v323 = vld [vmem:[%s285 + $0x128] sm:$0xff]
      %v324 = vld [vmem:[%s285 + $0x130] sm:$0xff]
      %v325 = vld [vmem:[%s285 + $0x138] sm:$0xff]
      %v326 = vld [vmem:[%s285 + $0x140] sm:$0xff]
      %v327 = vld [vmem:[%s285 + $0x148] sm:$0xff]
      %v328 = vld [vmem:[%s285 + $0x150] sm:$0xff]
      %v329 = vld [vmem:[%s285 + $0x158] sm:$0xff]
      %v330 = vld [vmem:[%s285 + $0x160] sm:$0xff]
      %v331 = vld [vmem:[%s285 + $0x168] sm:$0xff]
      %v332 = vld [vmem:[%s285 + $0x170] sm:$0xff]
      %v333 = vld [vmem:[%s285 + $0x178] sm:$0xff]
      %v334 = vld [vmem:[%s285 + $0x180] sm:$0xff]
      %v335 = vld [vmem:[%s285 + $0x188] sm:$0xff]
      %v336 = vld [vmem:[%s285 + $0x190] sm:$0xff]
      %v337 = vld [vmem:[%s285 + $0x198] sm:$0xff]
      %v338 = vld [vmem:[%s285 + $0x1a0] sm:$0xff]
      %v339 = vld [vmem:[%s285 + $0x1a8] sm:$0xff]
      %v340 = vld [vmem:[%s285 + $0x1b0] sm:$0xff]
      %v341 = vld [vmem:[%s285 + $0x1b8] sm:$0xff]
      %v342 = vld [vmem:[%s285 + $0x1c0] sm:$0xff]
      %v343 = vld [vmem:[%s285 + $0x1c8] sm:$0xff]
      %v344 = vld [vmem:[%s285 + $0x1d0] sm:$0xff]
      %v345 = vld [vmem:[%s285 + $0x1d8] sm:$0xff]
      %v346 = vld [vmem:[%s285 + $0x1e0] sm:$0xff]
      %v347 = vld [vmem:[%s285 + $0x1e8] sm:$0xff]
      %v348 = vld [vmem:[%s285 + $0x1f0] sm:$0xff]
      %v349 = vld [vmem:[%s285 + $0x1f8] sm:$0xff]
      %v351 = vshrl.u32 %v283, 16
      %v353 = vshll.u32 %v283, 16
      %v355 = vrot.slane %v353, 1
      %v356 = vor.u32 %v351, %v355
      %v358 = vshrl.u32 %v284, 16
      %v360 = vshll.u32 %v284, 16
      %v362 = vrot.slane %v360, 1
      %v363 = vor.u32 %v358, %v362
      %v430 = vunpack.c.l.b16 %v286
      %v431 = vunpack.c.h.b16 %v286
      %v432 = vunpack.c.l.b16 %v287
      %v433 = vunpack.c.h.b16 %v287
      %v434 = vunpack.c.l.b16 %v288
      %v435 = vunpack.c.h.b16 %v288
      %v436 = vunpack.c.l.b16 %v289
      %v437 = vunpack.c.h.b16 %v289
      %v438 = vunpack.c.l.b16 %v290
      %v439 = vunpack.c.h.b16 %v290
      %v440 = vunpack.c.l.b16 %v291
      %v441 = vunpack.c.h.b16 %v291
      %v442 = vunpack.c.l.b16 %v292
      %v443 = vunpack.c.h.b16 %v292
      %v444 = vunpack.c.l.b16 %v293
      %v445 = vunpack.c.h.b16 %v293
      %v446 = vunpack.c.l.b16 %v294
      %v447 = vunpack.c.h.b16 %v294
      %v448 = vunpack.c.l.b16 %v295
      %v449 = vunpack.c.h.b16 %v295
      %v450 = vunpack.c.l.b16 %v296
      %v451 = vunpack.c.h.b16 %v296
      %v452 = vunpack.c.l.b16 %v297
      %v453 = vunpack.c.h.b16 %v297
      %v454 = vunpack.c.l.b16 %v298
      %v455 = vunpack.c.h.b16 %v298
      %v456 = vunpack.c.l.b16 %v299
      %v457 = vunpack.c.h.b16 %v299
      %v458 = vunpack.c.l.b16 %v300
      %v459 = vunpack.c.h.b16 %v300
      %v460 = vunpack.c.l.b16 %v301
      %v461 = vunpack.c.h.b16 %v301
      %v462 = vunpack.c.l.b16 %v302
      %v463 = vunpack.c.h.b16 %v302
      %v464 = vunpack.c.l.b16 %v303
      %v465 = vunpack.c.h.b16 %v303
      %v466 = vunpack.c.l.b16 %v304
      %v467 = vunpack.c.h.b16 %v304
      %v468 = vunpack.c.l.b16 %v305
      %v469 = vunpack.c.h.b16 %v305
      %v470 = vunpack.c.l.b16 %v306
      %v471 = vunpack.c.h.b16 %v306
      %v472 = vunpack.c.l.b16 %v307
      %v473 = vunpack.c.h.b16 %v307
      %v474 = vunpack.c.l.b16 %v308
      %v475 = vunpack.c.h.b16 %v308
      %v476 = vunpack.c.l.b16 %v309
      %v477 = vunpack.c.h.b16 %v309
      %v478 = vunpack.c.l.b16 %v310
      %v479 = vunpack.c.h.b16 %v310
      %v480 = vunpack.c.l.b16 %v311
      %v481 = vunpack.c.h.b16 %v311
      %v482 = vunpack.c.l.b16 %v312
      %v483 = vunpack.c.h.b16 %v312
      %v484 = vunpack.c.l.b16 %v313
      %v485 = vunpack.c.h.b16 %v313
      %v486 = vunpack.c.l.b16 %v314
      %v487 = vunpack.c.h.b16 %v314
      %v488 = vunpack.c.l.b16 %v315
      %v489 = vunpack.c.h.b16 %v315
      %v490 = vunpack.c.l.b16 %v316
      %v491 = vunpack.c.h.b16 %v316
      %v492 = vunpack.c.l.b16 %v317
      %v493 = vunpack.c.h.b16 %v317
      %v494 = vunpack.c.l.b16 %v318
      %v495 = vunpack.c.h.b16 %v318
      %v496 = vunpack.c.l.b16 %v319
      %v497 = vunpack.c.h.b16 %v319
      %v498 = vunpack.c.l.b16 %v320
      %v499 = vunpack.c.h.b16 %v320
      %v500 = vunpack.c.l.b16 %v321
      %v501 = vunpack.c.h.b16 %v321
      %v502 = vunpack.c.l.b16 %v322
      %v503 = vunpack.c.h.b16 %v322
      %v504 = vunpack.c.l.b16 %v323
      %v505 = vunpack.c.h.b16 %v323
      %v506 = vunpack.c.l.b16 %v324
      %v507 = vunpack.c.h.b16 %v324
      %v508 = vunpack.c.l.b16 %v325
      %v509 = vunpack.c.h.b16 %v325
      %v510 = vunpack.c.l.b16 %v326
      %v511 = vunpack.c.h.b16 %v326
      %v512 = vunpack.c.l.b16 %v327
      %v513 = vunpack.c.h.b16 %v327
      %v514 = vunpack.c.l.b16 %v328
      %v515 = vunpack.c.h.b16 %v328
      %v516 = vunpack.c.l.b16 %v329
      %v517 = vunpack.c.h.b16 %v329
      %v518 = vunpack.c.l.b16 %v330
      %v519 = vunpack.c.h.b16 %v330
      %v520 = vunpack.c.l.b16 %v331
      %v521 = vunpack.c.h.b16 %v331
      %v522 = vunpack.c.l.b16 %v332
      %v523 = vunpack.c.h.b16 %v332
      %v524 = vunpack.c.l.b16 %v333
      %v525 = vunpack.c.h.b16 %v333
      %v526 = vunpack.c.l.b16 %v334
      %v527 = vunpack.c.h.b16 %v334
      %v528 = vunpack.c.l.b16 %v335
      %v529 = vunpack.c.h.b16 %v335
      %v530 = vunpack.c.l.b16 %v336
      %v531 = vunpack.c.h.b16 %v336
      %v532 = vunpack.c.l.b16 %v337
      %v533 = vunpack.c.h.b16 %v337
      %v534 = vunpack.c.l.b16 %v338
      %v535 = vunpack.c.h.b16 %v338
      %v536 = vunpack.c.l.b16 %v339
      %v537 = vunpack.c.h.b16 %v339
      %v538 = vunpack.c.l.b16 %v340
      %v539 = vunpack.c.h.b16 %v340
      %v540 = vunpack.c.l.b16 %v341
      %v541 = vunpack.c.h.b16 %v341
      %v542 = vunpack.c.l.b16 %v342
      %v543 = vunpack.c.h.b16 %v342
      %v544 = vunpack.c.l.b16 %v343
      %v545 = vunpack.c.h.b16 %v343
      %v546 = vunpack.c.l.b16 %v344
      %v547 = vunpack.c.h.b16 %v344
      %v548 = vunpack.c.l.b16 %v345
      %v549 = vunpack.c.h.b16 %v345
      %v550 = vunpack.c.l.b16 %v346
      %v551 = vunpack.c.h.b16 %v346
      %v552 = vunpack.c.l.b16 %v347
      %v553 = vunpack.c.h.b16 %v347
      %v554 = vunpack.c.l.b16 %v348
      %v555 = vunpack.c.h.b16 %v348
      %v556 = vunpack.c.l.b16 %v349
      %v557 = vunpack.c.h.b16 %v349
      %v558 = vpack.c.b16 %v434, %v430
      %v559 = vpack.c.b16 %v435, %v431
      %v560 = vpack.c.b16 %v436, %v432
      %v561 = vpack.c.b16 %v437, %v433
      %v562 = vpack.c.b16 %v442, %v438
      %v563 = vpack.c.b16 %v443, %v439
      %v564 = vpack.c.b16 %v444, %v440
      %v565 = vpack.c.b16 %v445, %v441
      %v566 = vpack.c.b16 %v450, %v446
      %v567 = vpack.c.b16 %v451, %v447
      %v568 = vpack.c.b16 %v452, %v448
      %v569 = vpack.c.b16 %v453, %v449
      %v570 = vpack.c.b16 %v458, %v454
      %v571 = vpack.c.b16 %v459, %v455
      %v572 = vpack.c.b16 %v460, %v456
      %v573 = vpack.c.b16 %v461, %v457
      %v574 = vpack.c.b16 %v466, %v462
      %v575 = vpack.c.b16 %v467, %v463
      %v576 = vpack.c.b16 %v468, %v464
      %v577 = vpack.c.b16 %v469, %v465
      %v578 = vpack.c.b16 %v474, %v470
      %v579 = vpack.c.b16 %v475, %v471
      %v580 = vpack.c.b16 %v476, %v472
      %v581 = vpack.c.b16 %v477, %v473
      %v582 = vpack.c.b16 %v482, %v478
      %v583 = vpack.c.b16 %v483, %v479
      %v584 = vpack.c.b16 %v484, %v480
      %v585 = vpack.c.b16 %v485, %v481
      %v586 = vpack.c.b16 %v490, %v486
      %v587 = vpack.c.b16 %v491, %v487
      %v588 = vpack.c.b16 %v492, %v488
      %v589 = vpack.c.b16 %v493, %v489
      %v590 = vpack.c.b16 %v498, %v494
      %v591 = vpack.c.b16 %v499, %v495
      %v592 = vpack.c.b16 %v500, %v496
      %v593 = vpack.c.b16 %v501, %v497
      %v594 = vpack.c.b16 %v506, %v502
      %v595 = vpack.c.b16 %v507, %v503
      %v596 = vpack.c.b16 %v508, %v504
      %v597 = vpack.c.b16 %v509, %v505
      %v598 = vpack.c.b16 %v514, %v510
      %v599 = vpack.c.b16 %v515, %v511
      %v600 = vpack.c.b16 %v516, %v512
      %v601 = vpack.c.b16 %v517, %v513
      %v602 = vpack.c.b16 %v522, %v518
      %v603 = vpack.c.b16 %v523, %v519
      %v604 = vpack.c.b16 %v524, %v520
      %v605 = vpack.c.b16 %v525, %v521
      %v606 = vpack.c.b16 %v530, %v526
      %v607 = vpack.c.b16 %v531, %v527
      %v608 = vpack.c.b16 %v532, %v528
      %v609 = vpack.c.b16 %v533, %v529
      %v610 = vpack.c.b16 %v538, %v534
      %v611 = vpack.c.b16 %v539, %v535
      %v612 = vpack.c.b16 %v540, %v536
      %v613 = vpack.c.b16 %v541, %v537
      %v614 = vpack.c.b16 %v546, %v542
      %v615 = vpack.c.b16 %v547, %v543
      %v616 = vpack.c.b16 %v548, %v544
      %v617 = vpack.c.b16 %v549, %v545
      %v618 = vpack.c.b16 %v554, %v550
      %v619 = vpack.c.b16 %v555, %v551
      %v620 = vpack.c.b16 %v556, %v552
      %v621 = vpack.c.b16 %v557, %v553
      %686 = vmatpush.bf16.msra.mxu0 %v586
      %687 = vmatpush.bf16.msra.mxu0 %v582
      %688 = vmatpush.bf16.msra.mxu0 %v578
      %689 = vmatpush.bf16.msra.mxu0 %v574
      %690 = vmatpush.bf16.msra.mxu0 %v570
      %691 = vmatpush.bf16.msra.mxu0 %v566
      %692 = vmatpush.bf16.msra.mxu0 %v562
      %693 = vmatpush.bf16.msra.mxu0 %v558
      %694 = vmatmul.bf16.gmra.mxu0 %v356
      %v695 = vpop.f32.mrf.mxu0
      %v696 = vadd.f32 0.0, %v695
      %v697 = vpop.f32.mrf.mxu0
      %698 = vdwg.mxu0
      %699 = vmatpush.bf16.msra.mxu0 %v618
      %700 = vmatpush.bf16.msra.mxu0 %v614
      %701 = vmatpush.bf16.msra.mxu0 %v610
      %702 = vmatpush.bf16.msra.mxu0 %v606
      %703 = vmatpush.bf16.msra.mxu0 %v602
      %704 = vmatpush.bf16.msra.mxu0 %v598
      %705 = vmatpush.bf16.msra.mxu0 %v594
      %706 = vmatpush.bf16.msra.mxu0 %v590
      %707 = vmatmul.bf16.gmra.mxu0 %v363
      %v708 = vpop.f32.mrf.mxu0
      %v709 = vadd.f32 %v696, %v708
      %v710 = vpop.f32.mrf.mxu0
      %711 = vdwg.mxu0
      %712 = vmatpush.bf16.msra.mxu0 %v587
      %713 = vmatpush.bf16.msra.mxu0 %v583
      %714 = vmatpush.bf16.msra.mxu0 %v579
      %715 = vmatpush.bf16.msra.mxu0 %v575
      %716 = vmatpush.bf16.msra.mxu0 %v571
      %717 = vmatpush.bf16.msra.mxu0 %v567
      %718 = vmatpush.bf16.msra.mxu0 %v563
      %719 = vmatpush.bf16.msra.mxu0 %v559
      %720 = vmatmul.bf16.gmra.mxu0 %v356
      %v721 = vpop.f32.mrf.mxu0
      %v722 = vadd.f32 0.0, %v721
      %v723 = vpop.f32.mrf.mxu0
      %724 = vdwg.mxu0
      %725 = vmatpush.bf16.msra.mxu0 %v619
      %726 = vmatpush.bf16.msra.mxu0 %v615
      %727 = vmatpush.bf16.msra.mxu0 %v611
      %728 = vmatpush.bf16.msra.mxu0 %v607
      %729 = vmatpush.bf16.msra.mxu0 %v603
      %730 = vmatpush.bf16.msra.mxu0 %v599
      %731 = vmatpush.bf16.msra.mxu0 %v595
      %732 = vmatpush.bf16.msra.mxu0 %v591
      %733 = vmatmul.bf16.gmra.mxu0 %v363
      %v734 = vpop.f32.mrf.mxu0
      %v735 = vadd.f32 %v722, %v734
      %v736 = vpop.f32.mrf.mxu0
      %737 = vdwg.mxu0
      %738 = vmatpush.bf16.msra.mxu0 %v588
      %739 = vmatpush.bf16.msra.mxu0 %v584
      %740 = vmatpush.bf16.msra.mxu0 %v580
      %741 = vmatpush.bf16.msra.mxu0 %v576
      %742 = vmatpush.bf16.msra.mxu0 %v572
      %743 = vmatpush.bf16.msra.mxu0 %v568
      %744 = vmatpush.bf16.msra.mxu0 %v564
      %745 = vmatpush.bf16.msra.mxu0 %v560
      %746 = vmatmul.bf16.gmra.mxu0 %v356
      %v747 = vpop.f32.mrf.mxu0
      %v748 = vadd.f32 0.0, %v747
      %v749 = vpop.f32.mrf.mxu0
      %750 = vdwg.mxu0
      %751 = vmatpush.bf16.msra.mxu0 %v620
      %752 = vmatpush.bf16.msra.mxu0 %v616
      %753 = vmatpush.bf16.msra.mxu0 %v612
      %754 = vmatpush.bf16.msra.mxu0 %v608
      %755 = vmatpush.bf16.msra.mxu0 %v604
      %756 = vmatpush.bf16.msra.mxu0 %v600
      %757 = vmatpush.bf16.msra.mxu0 %v596
      %758 = vmatpush.bf16.msra.mxu0 %v592
      %759 = vmatmul.bf16.gmra.mxu0 %v363
      %v760 = vpop.f32.mrf.mxu0
      %v761 = vadd.f32 %v748, %v760
      %v762 = vpop.f32.mrf.mxu0
      %763 = vdwg.mxu0
      %764 = vmatpush.bf16.msra.mxu0 %v589
      %765 = vmatpush.bf16.msra.mxu0 %v585
      %766 = vmatpush.bf16.msra.mxu0 %v581
      %767 = vmatpush.bf16.msra.mxu0 %v577
      %768 = vmatpush.bf16.msra.mxu0 %v573
      %769 = vmatpush.bf16.msra.mxu0 %v569
      %770 = vmatpush.bf16.msra.mxu0 %v565
      %771 = vmatpush.bf16.msra.mxu0 %v561
      %772 = vmatmul.bf16.gmra.mxu0 %v356
      %v773 = vpop.f32.mrf.mxu0
      %v774 = vadd.f32 0.0, %v773
      %v775 = vpop.f32.mrf.mxu0
      %776 = vdwg.mxu0
      %777 = vmatpush.bf16.msra.mxu0 %v621
      %778 = vmatpush.bf16.msra.mxu0 %v617
      %779 = vmatpush.bf16.msra.mxu0 %v613
      %780 = vmatpush.bf16.msra.mxu0 %v609
      %781 = vmatpush.bf16.msra.mxu0 %v605
      %782 = vmatpush.bf16.msra.mxu0 %v601
      %783 = vmatpush.bf16.msra.mxu0 %v597
      %784 = vmatpush.bf16.msra.mxu0 %v593
      %785 = vmatmul.bf16.gmra.mxu0 %v363
      %v786 = vpop.f32.mrf.mxu0
      %v787 = vadd.f32 %v774, %v786
      %v788 = vpop.f32.mrf.mxu0
      %789 = vdwg.mxu0
      %v854 = vunpack.c.l.b16 %v215
      %v855 = vunpack.c.h.b16 %v215
      %v856 = vunpack.c.l.b16 %v216
      %v857 = vunpack.c.h.b16 %v216
      %v858 = vunpack.c.l.b16 %v217
      %v859 = vunpack.c.h.b16 %v217
      %v860 = vunpack.c.l.b16 %v218
      %v861 = vunpack.c.h.b16 %v218
      %v862 = vunpack.c.l.b16 %v219
      %v863 = vunpack.c.h.b16 %v219
      %v864 = vunpack.c.l.b16 %v220
      %v865 = vunpack.c.h.b16 %v220
      %v866 = vunpack.c.l.b16 %v221
      %v867 = vunpack.c.h.b16 %v221
      %v868 = vunpack.c.l.b16 %v222
      %v869 = vunpack.c.h.b16 %v222
      %v870 = vunpack.c.l.b16 %v223
      %v871 = vunpack.c.h.b16 %v223
      %v872 = vunpack.c.l.b16 %v224
      %v873 = vunpack.c.h.b16 %v224
      %v874 = vunpack.c.l.b16 %v225
      %v875 = vunpack.c.h.b16 %v225
      %v876 = vunpack.c.l.b16 %v226
      %v877 = vunpack.c.h.b16 %v226
      %v878 = vunpack.c.l.b16 %v227
      %v879 = vunpack.c.h.b16 %v227
      %v880 = vunpack.c.l.b16 %v228
      %v881 = vunpack.c.h.b16 %v228
      %v882 = vunpack.c.l.b16 %v229
      %v883 = vunpack.c.h.b16 %v229
      %v884 = vunpack.c.l.b16 %v230
      %v885 = vunpack.c.h.b16 %v230
      %v886 = vunpack.c.l.b16 %v231
      %v887 = vunpack.c.h.b16 %v231
      %v888 = vunpack.c.l.b16 %v232
      %v889 = vunpack.c.h.b16 %v232
      %v890 = vunpack.c.l.b16 %v233
      %v891 = vunpack.c.h.b16 %v233
      %v892 = vunpack.c.l.b16 %v234
      %v893 = vunpack.c.h.b16 %v234
      %v894 = vunpack.c.l.b16 %v235
      %v895 = vunpack.c.h.b16 %v235
      %v896 = vunpack.c.l.b16 %v236
      %v897 = vunpack.c.h.b16 %v236
      %v898 = vunpack.c.l.b16 %v237
      %v899 = vunpack.c.h.b16 %v237
      %v900 = vunpack.c.l.b16 %v238
      %v901 = vunpack.c.h.b16 %v238
      %v902 = vunpack.c.l.b16 %v239
      %v903 = vunpack.c.h.b16 %v239
      %v904 = vunpack.c.l.b16 %v240
      %v905 = vunpack.c.h.b16 %v240
      %v906 = vunpack.c.l.b16 %v241
      %v907 = vunpack.c.h.b16 %v241
      %v908 = vunpack.c.l.b16 %v242
      %v909 = vunpack.c.h.b16 %v242
      %v910 = vunpack.c.l.b16 %v243
      %v911 = vunpack.c.h.b16 %v243
      %v912 = vunpack.c.l.b16 %v244
      %v913 = vunpack.c.h.b16 %v244
      %v914 = vunpack.c.l.b16 %v245
      %v915 = vunpack.c.h.b16 %v245
      %v916 = vunpack.c.l.b16 %v246
      %v917 = vunpack.c.h.b16 %v246
      %v918 = vunpack.c.l.b16 %v247
      %v919 = vunpack.c.h.b16 %v247
      %v920 = vunpack.c.l.b16 %v248
      %v921 = vunpack.c.h.b16 %v248
      %v922 = vunpack.c.l.b16 %v249
      %v923 = vunpack.c.h.b16 %v249
      %v924 = vunpack.c.l.b16 %v250
      %v925 = vunpack.c.h.b16 %v250
      %v926 = vunpack.c.l.b16 %v251
      %v927 = vunpack.c.h.b16 %v251
      %v928 = vunpack.c.l.b16 %v252
      %v929 = vunpack.c.h.b16 %v252
      %v930 = vunpack.c.l.b16 %v253
      %v931 = vunpack.c.h.b16 %v253
      %v932 = vunpack.c.l.b16 %v254
      %v933 = vunpack.c.h.b16 %v254
      %v934 = vunpack.c.l.b16 %v255
      %v935 = vunpack.c.h.b16 %v255
      %v936 = vunpack.c.l.b16 %v256
      %v937 = vunpack.c.h.b16 %v256
      %v938 = vunpack.c.l.b16 %v257
      %v939 = vunpack.c.h.b16 %v257
      %v940 = vunpack.c.l.b16 %v258
      %v941 = vunpack.c.h.b16 %v258
      %v942 = vunpack.c.l.b16 %v259
      %v943 = vunpack.c.h.b16 %v259
      %v944 = vunpack.c.l.b16 %v260
      %v945 = vunpack.c.h.b16 %v260
      %v946 = vunpack.c.l.b16 %v261
      %v947 = vunpack.c.h.b16 %v261
      %v948 = vunpack.c.l.b16 %v262
      %v949 = vunpack.c.h.b16 %v262
      %v950 = vunpack.c.l.b16 %v263
      %v951 = vunpack.c.h.b16 %v263
      %v952 = vunpack.c.l.b16 %v264
      %v953 = vunpack.c.h.b16 %v264
      %v954 = vunpack.c.l.b16 %v265
      %v955 = vunpack.c.h.b16 %v265
      %v956 = vunpack.c.l.b16 %v266
      %v957 = vunpack.c.h.b16 %v266
      %v958 = vunpack.c.l.b16 %v267
      %v959 = vunpack.c.h.b16 %v267
      %v960 = vunpack.c.l.b16 %v268
      %v961 = vunpack.c.h.b16 %v268
      %v962 = vunpack.c.l.b16 %v269
      %v963 = vunpack.c.h.b16 %v269
      %v964 = vunpack.c.l.b16 %v270
      %v965 = vunpack.c.h.b16 %v270
      %v966 = vunpack.c.l.b16 %v271
      %v967 = vunpack.c.h.b16 %v271
      %v968 = vunpack.c.l.b16 %v272
      %v969 = vunpack.c.h.b16 %v272
      %v970 = vunpack.c.l.b16 %v273
      %v971 = vunpack.c.h.b16 %v273
      %v972 = vunpack.c.l.b16 %v274
      %v973 = vunpack.c.h.b16 %v274
      %v974 = vunpack.c.l.b16 %v275
      %v975 = vunpack.c.h.b16 %v275
      %v976 = vunpack.c.l.b16 %v276
      %v977 = vunpack.c.h.b16 %v276
      %v978 = vunpack.c.l.b16 %v277
      %v979 = vunpack.c.h.b16 %v277
      %v980 = vunpack.c.l.b16 %v278
      %v981 = vunpack.c.h.b16 %v278
      %v982 = vpack.c.b16 %v858, %v854
      %v983 = vpack.c.b16 %v859, %v855
      %v984 = vpack.c.b16 %v860, %v856
      %v985 = vpack.c.b16 %v861, %v857
      %v986 = vpack.c.b16 %v866, %v862
      %v987 = vpack.c.b16 %v867, %v863
      %v988 = vpack.c.b16 %v868, %v864
      %v989 = vpack.c.b16 %v869, %v865
      %v990 = vpack.c.b16 %v874, %v870
      %v991 = vpack.c.b16 %v875, %v871
      %v992 = vpack.c.b16 %v876, %v872
      %v993 = vpack.c.b16 %v877, %v873
      %v994 = vpack.c.b16 %v882, %v878
      %v995 = vpack.c.b16 %v883, %v879
      %v996 = vpack.c.b16 %v884, %v880
      %v997 = vpack.c.b16 %v885, %v881
      %v998 = vpack.c.b16 %v890, %v886
      %v999 = vpack.c.b16 %v891, %v887
      %v1000 = vpack.c.b16 %v892, %v888
      %v1001 = vpack.c.b16 %v893, %v889
      %v1002 = vpack.c.b16 %v898, %v894
      %v1003 = vpack.c.b16 %v899, %v895
      %v1004 = vpack.c.b16 %v900, %v896
      %v1005 = vpack.c.b16 %v901, %v897
      %v1006 = vpack.c.b16 %v906, %v902
      %v1007 = vpack.c.b16 %v907, %v903
      %v1008 = vpack.c.b16 %v908, %v904
      %v1009 = vpack.c.b16 %v909, %v905
      %v1010 = vpack.c.b16 %v914, %v910
      %v1011 = vpack.c.b16 %v915, %v911
      %v1012 = vpack.c.b16 %v916, %v912
      %v1013 = vpack.c.b16 %v917, %v913
      %v1014 = vpack.c.b16 %v922, %v918
      %v1015 = vpack.c.b16 %v923, %v919
      %v1016 = vpack.c.b16 %v924, %v920
      %v1017 = vpack.c.b16 %v925, %v921
      %v1018 = vpack.c.b16 %v930, %v926
      %v1019 = vpack.c.b16 %v931, %v927
      %v1020 = vpack.c.b16 %v932, %v928
      %v1021 = vpack.c.b16 %v933, %v929
      %v1022 = vpack.c.b16 %v938, %v934
      %v1023 = vpack.c.b16 %v939, %v935
      %v1024 = vpack.c.b16 %v940, %v936
      %v1025 = vpack.c.b16 %v941, %v937
      %v1026 = vpack.c.b16 %v946, %v942
      %v1027 = vpack.c.b16 %v947, %v943
      %v1028 = vpack.c.b16 %v948, %v944
      %v1029 = vpack.c.b16 %v949, %v945
      %v1030 = vpack.c.b16 %v954, %v950
      %v1031 = vpack.c.b16 %v955, %v951
      %v1032 = vpack.c.b16 %v956, %v952
      %v1033 = vpack.c.b16 %v957, %v953
      %v1034 = vpack.c.b16 %v962, %v958
      %v1035 = vpack.c.b16 %v963, %v959
      %v1036 = vpack.c.b16 %v964, %v960
      %v1037 = vpack.c.b16 %v965, %v961
      %v1038 = vpack.c.b16 %v970, %v966
      %v1039 = vpack.c.b16 %v971, %v967
      %v1040 = vpack.c.b16 %v972, %v968
      %v1041 = vpack.c.b16 %v973, %v969
      %v1042 = vpack.c.b16 %v978, %v974
      %v1043 = vpack.c.b16 %v979, %v975
      %v1044 = vpack.c.b16 %v980, %v976
      %v1045 = vpack.c.b16 %v981, %v977
      %1110 = vmatpush.bf16.msra.mxu0 %v1010
      %1111 = vmatpush.bf16.msra.mxu0 %v1006
      %1112 = vmatpush.bf16.msra.mxu0 %v1002
      %1113 = vmatpush.bf16.msra.mxu0 %v998
      %1114 = vmatpush.bf16.msra.mxu0 %v994
      %1115 = vmatpush.bf16.msra.mxu0 %v990
      %1116 = vmatpush.bf16.msra.mxu0 %v986
      %1117 = vmatpush.bf16.msra.mxu0 %v982
      %1118 = vmatmul.bf16.gmra.mxu0 %v213
      %v1119 = vpop.f32.mrf.mxu0
      %v1120 = vadd.f32 %v709, %v1119
      %v1121 = vpop.f32.mrf.mxu0
      %1122 = vdwg.mxu0
      %1123 = vmatpush.bf16.msra.mxu0 %v1042
      %1124 = vmatpush.bf16.msra.mxu0 %v1038
      %1125 = vmatpush.bf16.msra.mxu0 %v1034
      %1126 = vmatpush.bf16.msra.mxu0 %v1030
      %1127 = vmatpush.bf16.msra.mxu0 %v1026
      %1128 = vmatpush.bf16.msra.mxu0 %v1022
      %1129 = vmatpush.bf16.msra.mxu0 %v1018
      %1130 = vmatpush.bf16.msra.mxu0 %v1014
      %1131 = vmatmul.bf16.gmra.mxu0 %v214
      %v1132 = vpop.f32.mrf.mxu0
      %v1133 = vadd.f32 %v1120, %v1132
      %v1134 = vpop.f32.mrf.mxu0
      %1135 = vdwg.mxu0
      %1136 = vmatpush.bf16.msra.mxu0 %v1011
      %1137 = vmatpush.bf16.msra.mxu0 %v1007
      %1138 = vmatpush.bf16.msra.mxu0 %v1003
      %1139 = vmatpush.bf16.msra.mxu0 %v999
      %1140 = vmatpush.bf16.msra.mxu0 %v995
      %1141 = vmatpush.bf16.msra.mxu0 %v991
      %1142 = vmatpush.bf16.msra.mxu0 %v987
      %1143 = vmatpush.bf16.msra.mxu0 %v983
      %1144 = vmatmul.bf16.gmra.mxu0 %v213
      %v1145 = vpop.f32.mrf.mxu0
      %v1146 = vadd.f32 %v735, %v1145
      %v1147 = vpop.f32.mrf.mxu0
      %1148 = vdwg.mxu0
      %1149 = vmatpush.bf16.msra.mxu0 %v1043
      %1150 = vmatpush.bf16.msra.mxu0 %v1039
      %1151 = vmatpush.bf16.msra.mxu0 %v1035
      %1152 = vmatpush.bf16.msra.mxu0 %v1031
      %1153 = vmatpush.bf16.msra.mxu0 %v1027
      %1154 = vmatpush.bf16.msra.mxu0 %v1023
      %1155 = vmatpush.bf16.msra.mxu0 %v1019
      %1156 = vmatpush.bf16.msra.mxu0 %v1015
      %1157 = vmatmul.bf16.gmra.mxu0 %v214
      %v1158 = vpop.f32.mrf.mxu0
      %v1159 = vadd.f32 %v1146, %v1158
      %v1160 = vpop.f32.mrf.mxu0
      %1161 = vdwg.mxu0
      %1162 = vmatpush.bf16.msra.mxu0 %v1012
      %1163 = vmatpush.bf16.msra.mxu0 %v1008
      %1164 = vmatpush.bf16.msra.mxu0 %v1004
      %1165 = vmatpush.bf16.msra.mxu0 %v1000
      %1166 = vmatpush.bf16.msra.mxu0 %v996
      %1167 = vmatpush.bf16.msra.mxu0 %v992
      %1168 = vmatpush.bf16.msra.mxu0 %v988
      %1169 = vmatpush.bf16.msra.mxu0 %v984
      %1170 = vmatmul.bf16.gmra.mxu0 %v213
      %v1171 = vpop.f32.mrf.mxu0
      %v1172 = vadd.f32 %v761, %v1171
      %v1173 = vpop.f32.mrf.mxu0
      %1174 = vdwg.mxu0
      %1175 = vmatpush.bf16.msra.mxu0 %v1044
      %1176 = vmatpush.bf16.msra.mxu0 %v1040
      %1177 = vmatpush.bf16.msra.mxu0 %v1036
      %1178 = vmatpush.bf16.msra.mxu0 %v1032
      %1179 = vmatpush.bf16.msra.mxu0 %v1028
      %1180 = vmatpush.bf16.msra.mxu0 %v1024
      %1181 = vmatpush.bf16.msra.mxu0 %v1020
      %1182 = vmatpush.bf16.msra.mxu0 %v1016
      %1183 = vmatmul.bf16.gmra.mxu0 %v214
      %v1184 = vpop.f32.mrf.mxu0
      %v1185 = vadd.f32 %v1172, %v1184
      %v1186 = vpop.f32.mrf.mxu0
      %1187 = vdwg.mxu0
      %1188 = vmatpush.bf16.msra.mxu0 %v1013
      %1189 = vmatpush.bf16.msra.mxu0 %v1009
      %1190 = vmatpush.bf16.msra.mxu0 %v1005
      %1191 = vmatpush.bf16.msra.mxu0 %v1001
      %1192 = vmatpush.bf16.msra.mxu0 %v997
      %1193 = vmatpush.bf16.msra.mxu0 %v993
      %1194 = vmatpush.bf16.msra.mxu0 %v989
      %1195 = vmatpush.bf16.msra.mxu0 %v985
      %1196 = vmatmul.bf16.gmra.mxu0 %v213
      %v1197 = vpop.f32.mrf.mxu0
      %v1198 = vadd.f32 %v787, %v1197
      %v1199 = vpop.f32.mrf.mxu0
      %1200 = vdwg.mxu0
      %1201 = vmatpush.bf16.msra.mxu0 %v1045
      %1202 = vmatpush.bf16.msra.mxu0 %v1041
      %1203 = vmatpush.bf16.msra.mxu0 %v1037
      %1204 = vmatpush.bf16.msra.mxu0 %v1033
      %1205 = vmatpush.bf16.msra.mxu0 %v1029
      %1206 = vmatpush.bf16.msra.mxu0 %v1025
      %1207 = vmatpush.bf16.msra.mxu0 %v1021
      %1208 = vmatpush.bf16.msra.mxu0 %v1017
      %1209 = vmatmul.bf16.gmra.mxu0 %v214
      %v1210 = vpop.f32.mrf.mxu0
      %v1211 = vadd.f32 %v1198, %v1210
      %v1212 = vpop.f32.mrf.mxu0
      %1213 = vdwg.mxu0
      %v1214 = vld [vmem:[#allocation2] sm:$0xfc]
      %v1215 = vld [vmem:[#allocation2 + $0x8] sm:$0xfc]
      %v1216 = vld [vmem:[#allocation2 + $0x10] sm:$0x3]
      %v1217 = vld [vmem:[#allocation2 + $0x18] sm:$0x3]
      %v1218 = vpack.c.bf16 %v1216, %v1214
      %v1219 = vpack.c.bf16 %v1217, %v1215
      %s1220 = scalar_lea.vmem %s2, 1024
      %v1221 = vld [vmem:[%s1220] sm:$0xff]
      %v1222 = vld [vmem:[%s1220 + $0x8] sm:$0xff]
      %v1223 = vld [vmem:[%s1220 + $0x10] sm:$0xff]
      %v1224 = vld [vmem:[%s1220 + $0x18] sm:$0xff]
      %v1225 = vld [vmem:[%s1220 + $0x20] sm:$0xff]
      %v1226 = vld [vmem:[%s1220 + $0x28] sm:$0xff]
      %v1227 = vld [vmem:[%s1220 + $0x30] sm:$0xff]
      %v1228 = vld [vmem:[%s1220 + $0x38] sm:$0xff]
      %v1229 = vld [vmem:[%s1220 + $0x40] sm:$0xff]
      %v1230 = vld [vmem:[%s1220 + $0x48] sm:$0xff]
      %v1231 = vld [vmem:[%s1220 + $0x50] sm:$0xff]
      %v1232 = vld [vmem:[%s1220 + $0x58] sm:$0xff]
      %v1233 = vld [vmem:[%s1220 + $0x60] sm:$0xff]
      %v1234 = vld [vmem:[%s1220 + $0x68] sm:$0xff]
      %v1235 = vld [vmem:[%s1220 + $0x70] sm:$0xff]
      %v1236 = vld [vmem:[%s1220 + $0x78] sm:$0xff]
      %v1237 = vld [vmem:[%s1220 + $0x80] sm:$0xff]
      %v1238 = vld [vmem:[%s1220 + $0x88] sm:$0xff]
      %v1239 = vld [vmem:[%s1220 + $0x90] sm:$0xff]
      %v1240 = vld [vmem:[%s1220 + $0x98] sm:$0xff]
      %v1241 = vld [vmem:[%s1220 + $0xa0] sm:$0xff]
      %v1242 = vld [vmem:[%s1220 + $0xa8] sm:$0xff]
      %v1243 = vld [vmem:[%s1220 + $0xb0] sm:$0xff]
      %v1244 = vld [vmem:[%s1220 + $0xb8] sm:$0xff]
      %v1245 = vld [vmem:[%s1220 + $0xc0] sm:$0xff]
      %v1246 = vld [vmem:[%s1220 + $0xc8] sm:$0xff]
      %v1247 = vld [vmem:[%s1220 + $0xd0] sm:$0xff]
      %v1248 = vld [vmem:[%s1220 + $0xd8] sm:$0xff]
      %v1249 = vld [vmem:[%s1220 + $0xe0] sm:$0xff]
      %v1250 = vld [vmem:[%s1220 + $0xe8] sm:$0xff]
      %v1251 = vld [vmem:[%s1220 + $0xf0] sm:$0xff]
      %v1252 = vld [vmem:[%s1220 + $0xf8] sm:$0xff]
      %v1253 = vld [vmem:[%s1220 + $0x100] sm:$0xff]
      %v1254 = vld [vmem:[%s1220 + $0x108] sm:$0xff]
      %v1255 = vld [vmem:[%s1220 + $0x110] sm:$0xff]
      %v1256 = vld [vmem:[%s1220 + $0x118] sm:$0xff]
      %v1257 = vld [vmem:[%s1220 + $0x120] sm:$0xff]
      %v1258 = vld [vmem:[%s1220 + $0x128] sm:$0xff]
      %v1259 = vld [vmem:[%s1220 + $0x130] sm:$0xff]
      %v1260 = vld [vmem:[%s1220 + $0x138] sm:$0xff]
      %v1261 = vld [vmem:[%s1220 + $0x140] sm:$0xff]
      %v1262 = vld [vmem:[%s1220 + $0x148] sm:$0xff]
      %v1263 = vld [vmem:[%s1220 + $0x150] sm:$0xff]
      %v1264 = vld [vmem:[%s1220 + $0x158] sm:$0xff]
      %v1265 = vld [vmem:[%s1220 + $0x160] sm:$0xff]
      %v1266 = vld [vmem:[%s1220 + $0x168] sm:$0xff]
      %v1267 = vld [vmem:[%s1220 + $0x170] sm:$0xff]
      %v1268 = vld [vmem:[%s1220 + $0x178] sm:$0xff]
      %v1269 = vld [vmem:[%s1220 + $0x180] sm:$0xff]
      %v1270 = vld [vmem:[%s1220 + $0x188] sm:$0xff]
      %v1271 = vld [vmem:[%s1220 + $0x190] sm:$0xff]
      %v1272 = vld [vmem:[%s1220 + $0x198] sm:$0xff]
      %v1273 = vld [vmem:[%s1220 + $0x1a0] sm:$0xff]
      %v1274 = vld [vmem:[%s1220 + $0x1a8] sm:$0xff]
      %v1275 = vld [vmem:[%s1220 + $0x1b0] sm:$0xff]
      %v1276 = vld [vmem:[%s1220 + $0x1b8] sm:$0xff]
      %v1277 = vld [vmem:[%s1220 + $0x1c0] sm:$0xff]
      %v1278 = vld [vmem:[%s1220 + $0x1c8] sm:$0xff]
      %v1279 = vld [vmem:[%s1220 + $0x1d0] sm:$0xff]
      %v1280 = vld [vmem:[%s1220 + $0x1d8] sm:$0xff]
      %v1281 = vld [vmem:[%s1220 + $0x1e0] sm:$0xff]
      %v1282 = vld [vmem:[%s1220 + $0x1e8] sm:$0xff]
      %v1283 = vld [vmem:[%s1220 + $0x1f0] sm:$0xff]
      %v1284 = vld [vmem:[%s1220 + $0x1f8] sm:$0xff]
      %v1287 = vrot.slane %v1218, 1
      %v1288 = vrot.slane %v1219, 1
      %v1355 = vunpack.c.l.b16 %v1221
      %v1356 = vunpack.c.h.b16 %v1221
      %v1357 = vunpack.c.l.b16 %v1222
      %v1358 = vunpack.c.h.b16 %v1222
      %v1359 = vunpack.c.l.b16 %v1223
      %v1360 = vunpack.c.h.b16 %v1223
      %v1361 = vunpack.c.l.b16 %v1224
      %v1362 = vunpack.c.h.b16 %v1224
      %v1363 = vunpack.c.l.b16 %v1225
      %v1364 = vunpack.c.h.b16 %v1225
      %v1365 = vunpack.c.l.b16 %v1226
      %v1366 = vunpack.c.h.b16 %v1226
      %v1367 = vunpack.c.l.b16 %v1227
      %v1368 = vunpack.c.h.b16 %v1227
      %v1369 = vunpack.c.l.b16 %v1228
      %v1370 = vunpack.c.h.b16 %v1228
      %v1371 = vunpack.c.l.b16 %v1229
      %v1372 = vunpack.c.h.b16 %v1229
      %v1373 = vunpack.c.l.b16 %v1230
      %v1374 = vunpack.c.h.b16 %v1230
      %v1375 = vunpack.c.l.b16 %v1231
      %v1376 = vunpack.c.h.b16 %v1231
      %v1377 = vunpack.c.l.b16 %v1232
      %v1378 = vunpack.c.h.b16 %v1232
      %v1379 = vunpack.c.l.b16 %v1233
      %v1380 = vunpack.c.h.b16 %v1233
      %v1381 = vunpack.c.l.b16 %v1234
      %v1382 = vunpack.c.h.b16 %v1234
      %v1383 = vunpack.c.l.b16 %v1235
      %v1384 = vunpack.c.h.b16 %v1235
      %v1385 = vunpack.c.l.b16 %v1236
      %v1386 = vunpack.c.h.b16 %v1236
      %v1387 = vunpack.c.l.b16 %v1237
      %v1388 = vunpack.c.h.b16 %v1237
      %v1389 = vunpack.c.l.b16 %v1238
      %v1390 = vunpack.c.h.b16 %v1238
      %v1391 = vunpack.c.l.b16 %v1239
      %v1392 = vunpack.c.h.b16 %v1239
      %v1393 = vunpack.c.l.b16 %v1240
      %v1394 = vunpack.c.h.b16 %v1240
      %v1395 = vunpack.c.l.b16 %v1241
      %v1396 = vunpack.c.h.b16 %v1241
      %v1397 = vunpack.c.l.b16 %v1242
      %v1398 = vunpack.c.h.b16 %v1242
      %v1399 = vunpack.c.l.b16 %v1243
      %v1400 = vunpack.c.h.b16 %v1243
      %v1401 = vunpack.c.l.b16 %v1244
      %v1402 = vunpack.c.h.b16 %v1244
      %v1403 = vunpack.c.l.b16 %v1245
      %v1404 = vunpack.c.h.b16 %v1245
      %v1405 = vunpack.c.l.b16 %v1246
      %v1406 = vunpack.c.h.b16 %v1246
      %v1407 = vunpack.c.l.b16 %v1247
      %v1408 = vunpack.c.h.b16 %v1247
      %v1409 = vunpack.c.l.b16 %v1248
      %v1410 = vunpack.c.h.b16 %v1248
      %v1411 = vunpack.c.l.b16 %v1249
      %v1412 = vunpack.c.h.b16 %v1249
      %v1413 = vunpack.c.l.b16 %v1250
      %v1414 = vunpack.c.h.b16 %v1250
      %v1415 = vunpack.c.l.b16 %v1251
      %v1416 = vunpack.c.h.b16 %v1251
      %v1417 = vunpack.c.l.b16 %v1252
      %v1418 = vunpack.c.h.b16 %v1252
      %v1419 = vunpack.c.l.b16 %v1253
      %v1420 = vunpack.c.h.b16 %v1253
      %v1421 = vunpack.c.l.b16 %v1254
      %v1422 = vunpack.c.h.b16 %v1254
      %v1423 = vunpack.c.l.b16 %v1255
      %v1424 = vunpack.c.h.b16 %v1255
      %v1425 = vunpack.c.l.b16 %v1256
      %v1426 = vunpack.c.h.b16 %v1256
      %v1427 = vunpack.c.l.b16 %v1257
      %v1428 = vunpack.c.h.b16 %v1257
      %v1429 = vunpack.c.l.b16 %v1258
      %v1430 = vunpack.c.h.b16 %v1258
      %v1431 = vunpack.c.l.b16 %v1259
      %v1432 = vunpack.c.h.b16 %v1259
      %v1433 = vunpack.c.l.b16 %v1260
      %v1434 = vunpack.c.h.b16 %v1260
      %v1435 = vunpack.c.l.b16 %v1261
      %v1436 = vunpack.c.h.b16 %v1261
      %v1437 = vunpack.c.l.b16 %v1262
      %v1438 = vunpack.c.h.b16 %v1262
      %v1439 = vunpack.c.l.b16 %v1263
      %v1440 = vunpack.c.h.b16 %v1263
      %v1441 = vunpack.c.l.b16 %v1264
      %v1442 = vunpack.c.h.b16 %v1264
      %v1443 = vunpack.c.l.b16 %v1265
      %v1444 = vunpack.c.h.b16 %v1265
      %v1445 = vunpack.c.l.b16 %v1266
      %v1446 = vunpack.c.h.b16 %v1266
      %v1447 = vunpack.c.l.b16 %v1267
      %v1448 = vunpack.c.h.b16 %v1267
      %v1449 = vunpack.c.l.b16 %v1268
      %v1450 = vunpack.c.h.b16 %v1268
      %v1451 = vunpack.c.l.b16 %v1269
      %v1452 = vunpack.c.h.b16 %v1269
      %v1453 = vunpack.c.l.b16 %v1270
      %v1454 = vunpack.c.h.b16 %v1270
      %v1455 = vunpack.c.l.b16 %v1271
      %v1456 = vunpack.c.h.b16 %v1271
      %v1457 = vunpack.c.l.b16 %v1272
      %v1458 = vunpack.c.h.b16 %v1272
      %v1459 = vunpack.c.l.b16 %v1273
      %v1460 = vunpack.c.h.b16 %v1273
      %v1461 = vunpack.c.l.b16 %v1274
      %v1462 = vunpack.c.h.b16 %v1274
      %v1463 = vunpack.c.l.b16 %v1275
      %v1464 = vunpack.c.h.b16 %v1275
      %v1465 = vunpack.c.l.b16 %v1276
      %v1466 = vunpack.c.h.b16 %v1276
      %v1467 = vunpack.c.l.b16 %v1277
      %v1468 = vunpack.c.h.b16 %v1277
      %v1469 = vunpack.c.l.b16 %v1278
      %v1470 = vunpack.c.h.b16 %v1278
      %v1471 = vunpack.c.l.b16 %v1279
      %v1472 = vunpack.c.h.b16 %v1279
      %v1473 = vunpack.c.l.b16 %v1280
      %v1474 = vunpack.c.h.b16 %v1280
      %v1475 = vunpack.c.l.b16 %v1281
      %v1476 = vunpack.c.h.b16 %v1281
      %v1477 = vunpack.c.l.b16 %v1282
      %v1478 = vunpack.c.h.b16 %v1282
      %v1479 = vunpack.c.l.b16 %v1283
      %v1480 = vunpack.c.h.b16 %v1283
      %v1481 = vunpack.c.l.b16 %v1284
      %v1482 = vunpack.c.h.b16 %v1284
      %v1483 = vpack.c.b16 %v1359, %v1355
      %v1484 = vpack.c.b16 %v1360, %v1356
      %v1485 = vpack.c.b16 %v1361, %v1357
      %v1486 = vpack.c.b16 %v1362, %v1358
      %v1487 = vpack.c.b16 %v1367, %v1363
      %v1488 = vpack.c.b16 %v1368, %v1364
      %v1489 = vpack.c.b16 %v1369, %v1365
      %v1490 = vpack.c.b16 %v1370, %v1366
      %v1491 = vpack.c.b16 %v1375, %v1371
      %v1492 = vpack.c.b16 %v1376, %v1372
      %v1493 = vpack.c.b16 %v1377, %v1373
      %v1494 = vpack.c.b16 %v1378, %v1374
      %v1495 = vpack.c.b16 %v1383, %v1379
      %v1496 = vpack.c.b16 %v1384, %v1380
      %v1497 = vpack.c.b16 %v1385, %v1381
      %v1498 = vpack.c.b16 %v1386, %v1382
      %v1499 = vpack.c.b16 %v1391, %v1387
      %v1500 = vpack.c.b16 %v1392, %v1388
      %v1501 = vpack.c.b16 %v1393, %v1389
      %v1502 = vpack.c.b16 %v1394, %v1390
      %v1503 = vpack.c.b16 %v1399, %v1395
      %v1504 = vpack.c.b16 %v1400, %v1396
      %v1505 = vpack.c.b16 %v1401, %v1397
      %v1506 = vpack.c.b16 %v1402, %v1398
      %v1507 = vpack.c.b16 %v1407, %v1403
      %v1508 = vpack.c.b16 %v1408, %v1404
      %v1509 = vpack.c.b16 %v1409, %v1405
      %v1510 = vpack.c.b16 %v1410, %v1406
      %v1511 = vpack.c.b16 %v1415, %v1411
      %v1512 = vpack.c.b16 %v1416, %v1412
      %v1513 = vpack.c.b16 %v1417, %v1413
      %v1514 = vpack.c.b16 %v1418, %v1414
      %v1515 = vpack.c.b16 %v1423, %v1419
      %v1516 = vpack.c.b16 %v1424, %v1420
      %v1517 = vpack.c.b16 %v1425, %v1421
      %v1518 = vpack.c.b16 %v1426, %v1422
      %v1519 = vpack.c.b16 %v1431, %v1427
      %v1520 = vpack.c.b16 %v1432, %v1428
      %v1521 = vpack.c.b16 %v1433, %v1429
      %v1522 = vpack.c.b16 %v1434, %v1430
      %v1523 = vpack.c.b16 %v1439, %v1435
      %v1524 = vpack.c.b16 %v1440, %v1436
      %v1525 = vpack.c.b16 %v1441, %v1437
      %v1526 = vpack.c.b16 %v1442, %v1438
      %v1527 = vpack.c.b16 %v1447, %v1443
      %v1528 = vpack.c.b16 %v1448, %v1444
      %v1529 = vpack.c.b16 %v1449, %v1445
      %v1530 = vpack.c.b16 %v1450, %v1446
      %v1531 = vpack.c.b16 %v1455, %v1451
      %v1532 = vpack.c.b16 %v1456, %v1452
      %v1533 = vpack.c.b16 %v1457, %v1453
      %v1534 = vpack.c.b16 %v1458, %v1454
      %v1535 = vpack.c.b16 %v1463, %v1459
      %v1536 = vpack.c.b16 %v1464, %v1460
      %v1537 = vpack.c.b16 %v1465, %v1461
      %v1538 = vpack.c.b16 %v1466, %v1462
      %v1539 = vpack.c.b16 %v1471, %v1467
      %v1540 = vpack.c.b16 %v1472, %v1468
      %v1541 = vpack.c.b16 %v1473, %v1469
      %v1542 = vpack.c.b16 %v1474, %v1470
      %v1543 = vpack.c.b16 %v1479, %v1475
      %v1544 = vpack.c.b16 %v1480, %v1476
      %v1545 = vpack.c.b16 %v1481, %v1477
      %v1546 = vpack.c.b16 %v1482, %v1478
      %1611 = vmatpush.bf16.msra.mxu0 %v1511
      %1612 = vmatpush.bf16.msra.mxu0 %v1507
      %1613 = vmatpush.bf16.msra.mxu0 %v1503
      %1614 = vmatpush.bf16.msra.mxu0 %v1499
      %1615 = vmatpush.bf16.msra.mxu0 %v1495
      %1616 = vmatpush.bf16.msra.mxu0 %v1491
      %1617 = vmatpush.bf16.msra.mxu0 %v1487
      %1618 = vmatpush.bf16.msra.mxu0 %v1483
      %1619 = vmatmul.bf16.gmra.mxu0 %v1287
      %v1620 = vpop.f32.mrf.mxu0
      %v1621 = vadd.f32 0.0, %v1620
      %v1622 = vpop.f32.mrf.mxu0
      %1623 = vdwg.mxu0
      %1624 = vmatpush.bf16.msra.mxu0 %v1543
      %1625 = vmatpush.bf16.msra.mxu0 %v1539
      %1626 = vmatpush.bf16.msra.mxu0 %v1535
      %1627 = vmatpush.bf16.msra.mxu0 %v1531
      %1628 = vmatpush.bf16.msra.mxu0 %v1527
      %1629 = vmatpush.bf16.msra.mxu0 %v1523
      %1630 = vmatpush.bf16.msra.mxu0 %v1519
      %1631 = vmatpush.bf16.msra.mxu0 %v1515
      %1632 = vmatmul.bf16.gmra.mxu0 %v1288
      %v1633 = vpop.f32.mrf.mxu0
      %v1634 = vadd.f32 %v1621, %v1633
      %v1635 = vpop.f32.mrf.mxu0
      %1636 = vdwg.mxu0
      %1637 = vmatpush.bf16.msra.mxu0 %v1512
      %1638 = vmatpush.bf16.msra.mxu0 %v1508
      %1639 = vmatpush.bf16.msra.mxu0 %v1504
      %1640 = vmatpush.bf16.msra.mxu0 %v1500
      %1641 = vmatpush.bf16.msra.mxu0 %v1496
      %1642 = vmatpush.bf16.msra.mxu0 %v1492
      %1643 = vmatpush.bf16.msra.mxu0 %v1488
      %1644 = vmatpush.bf16.msra.mxu0 %v1484
      %1645 = vmatmul.bf16.gmra.mxu0 %v1287
      %v1646 = vpop.f32.mrf.mxu0
      %v1647 = vadd.f32 0.0, %v1646
      %v1648 = vpop.f32.mrf.mxu0
      %1649 = vdwg.mxu0
      %1650 = vmatpush.bf16.msra.mxu0 %v1544
      %1651 = vmatpush.bf16.msra.mxu0 %v1540
      %1652 = vmatpush.bf16.msra.mxu0 %v1536
      %1653 = vmatpush.bf16.msra.mxu0 %v1532
      %1654 = vmatpush.bf16.msra.mxu0 %v1528
      %1655 = vmatpush.bf16.msra.mxu0 %v1524
      %1656 = vmatpush.bf16.msra.mxu0 %v1520
      %1657 = vmatpush.bf16.msra.mxu0 %v1516
      %1658 = vmatmul.bf16.gmra.mxu0 %v1288
      %v1659 = vpop.f32.mrf.mxu0
      %v1660 = vadd.f32 %v1647, %v1659
      %v1661 = vpop.f32.mrf.mxu0
      %1662 = vdwg.mxu0
      %1663 = vmatpush.bf16.msra.mxu0 %v1513
      %1664 = vmatpush.bf16.msra.mxu0 %v1509
      %1665 = vmatpush.bf16.msra.mxu0 %v1505
      %1666 = vmatpush.bf16.msra.mxu0 %v1501
      %1667 = vmatpush.bf16.msra.mxu0 %v1497
      %1668 = vmatpush.bf16.msra.mxu0 %v1493
      %1669 = vmatpush.bf16.msra.mxu0 %v1489
      %1670 = vmatpush.bf16.msra.mxu0 %v1485
      %1671 = vmatmul.bf16.gmra.mxu0 %v1287
      %v1672 = vpop.f32.mrf.mxu0
      %v1673 = vadd.f32 0.0, %v1672
      %v1674 = vpop.f32.mrf.mxu0
      %1675 = vdwg.mxu0
      %1676 = vmatpush.bf16.msra.mxu0 %v1545
      %1677 = vmatpush.bf16.msra.mxu0 %v1541
      %1678 = vmatpush.bf16.msra.mxu0 %v1537
      %1679 = vmatpush.bf16.msra.mxu0 %v1533
      %1680 = vmatpush.bf16.msra.mxu0 %v1529
      %1681 = vmatpush.bf16.msra.mxu0 %v1525
      %1682 = vmatpush.bf16.msra.mxu0 %v1521
      %1683 = vmatpush.bf16.msra.mxu0 %v1517
      %1684 = vmatmul.bf16.gmra.mxu0 %v1288
      %v1685 = vpop.f32.mrf.mxu0
      %v1686 = vadd.f32 %v1673, %v1685
      %v1687 = vpop.f32.mrf.mxu0
      %1688 = vdwg.mxu0
      %1689 = vmatpush.bf16.msra.mxu0 %v1514
      %1690 = vmatpush.bf16.msra.mxu0 %v1510
      %1691 = vmatpush.bf16.msra.mxu0 %v1506
      %1692 = vmatpush.bf16.msra.mxu0 %v1502
      %1693 = vmatpush.bf16.msra.mxu0 %v1498
      %1694 = vmatpush.bf16.msra.mxu0 %v1494
      %1695 = vmatpush.bf16.msra.mxu0 %v1490
      %1696 = vmatpush.bf16.msra.mxu0 %v1486
      %1697 = vmatmul.bf16.gmra.mxu0 %v1287
      %v1698 = vpop.f32.mrf.mxu0
      %v1699 = vadd.f32 0.0, %v1698
      %v1700 = vpop.f32.mrf.mxu0
      %1701 = vdwg.mxu0
      %1702 = vmatpush.bf16.msra.mxu0 %v1546
      %1703 = vmatpush.bf16.msra.mxu0 %v1542
      %1704 = vmatpush.bf16.msra.mxu0 %v1538
      %1705 = vmatpush.bf16.msra.mxu0 %v1534
      %1706 = vmatpush.bf16.msra.mxu0 %v1530
      %1707 = vmatpush.bf16.msra.mxu0 %v1526
      %1708 = vmatpush.bf16.msra.mxu0 %v1522
      %1709 = vmatpush.bf16.msra.mxu0 %v1518
      %1710 = vmatmul.bf16.gmra.mxu0 %v1288
      %v1711 = vpop.f32.mrf.mxu0
      %v1712 = vadd.f32 %v1699, %v1711
      %v1713 = vpop.f32.mrf.mxu0
      %1714 = vdwg.mxu0
      %v1715 = vadd.f32 %v1133, %v1634
      %v1716 = vadd.f32 %v1159, %v1660
      %v1717 = vadd.f32 %v1185, %v1686
      %v1718 = vadd.f32 %v1211, %v1712
      %1719 = vst [vmem:[%s170] sm:$0xff] %v1715
      %1720 = vst [vmem:[%s170 + $0x8] sm:$0xff] %v1716
      %1721 = vst [vmem:[%s170 + $0x10] sm:$0xff] %v1717
      %1722 = vst [vmem:[%s170 + $0x18] sm:$0xff] %v1718
      %p1723 = scmp.lt.s32.totalorder %s14, 1
      %s1724 = scalar_select %p1723, %s14, 1
      %s1725 = smul.addr %s1724, 4
      %s1726 = smul.addr %s1725, 8
      %s1727 = scalar_lea.vmem %s3, %s1726
      // Predicated region
      $region33: #{resnet_block_forward.2} parent=31 // pred_check
        %p1728 = pneg %p100
      $region34: #{resnet_block_forward.2} parent=31 // pred_check_branch
        %1730 = sbr.rel (%p1728) target = $region36
      $region35: #{resnet_block_forward.2} parent=31 // pred_region
        _
      $region36: #{resnet_block_forward.2} parent=31 // pred_fallthru
        _
    $region32: #{resnet_block_forward.2} parent=5 // pred_fallthru
      _
    %p1731 = scmp.le.s32.totalorder 2, %s9
    // Predicated region
    $region37: #{resnet_block_forward.2} parent=5 // pred_check
      %p1732 = pneg %p1731
    $region38: #{resnet_block_forward.2} parent=5 // pred_check_branch
      %1734 = sbr.rel (%p1732) target = $region40
    $region39: #{resnet_block_forward.2} parent=5 // pred_region
      %s1735 = ssub.s32 %s9, 2
      // Predicated region
      $region41: #{resnet_block_forward.2} parent=39 // pred_check
        %p1736 = pneg %p106
      $region42: #{resnet_block_forward.2} parent=39 // pred_check_branch
        %1738 = sbr.rel (%p1736) target = $region44
      $region43: #{resnet_block_forward.2} parent=39 // pred_region
        %p1739 = scmp.lt.s32.totalorder %s15, 1
        %s1740 = scalar_select %p1739, %s15, 1
        %s1741 = smul.addr %s1740, 4
        %s1742 = smul.addr %s1741, 8
        %s1743 = scalar_lea.vmem %s3, %s1742
      $region44: #{resnet_block_forward.2} parent=39 // pred_fallthru
        _
    $region40: #{resnet_block_forward.2} parent=5 // pred_fallthru
      _
  $region6: #{resnet_block_forward.2} parent=0 // loop_footer
    %s13 = sadd.s32 1, %s9
  $region7: #{resnet_block_forward.2} parent=0 // loop_footer_branch
    %8 = sbr.rel target = $region3
  $region8: #{resnet_block_forward.2} parent=0 // loop_exit
    _

// kernel: resnet_block_forward.3
$region0: #{resnet_block_forward.3}
  #allocation0 [shape = 'u32[]', space=smem, size = 0x4, offset = 0x4, fixed_abs, tag = 'smem constant byte address 0x4 - core index']
  #allocation1 [shape = 'u32[72,128]{1,0:T(1,128)}', space=vmem, size = 0x9000, scoped, tag = 'internal scratch']
  #allocation2 [shape = 'f32[10,512]{1,0:T(8,128)}', space=vmem, size = 0x8000, scoped, tag = 'scratch operand']
  %s0 = inlined_call_operand.vmem [shape: f32[2,8,512], index: 0, kind: input, shape index: {}]
  %s1 = inlined_call_operand.vmem [shape: f32[2,512], index: 1, kind: input, shape index: {}]
  %s2 = inlined_call_operand.vmem [shape: bf16[3,512,512], index: 2, kind: input, shape index: {}]
  %s3 = inlined_call_operand.vmem [shape: f32[2,8,256], index: 3, kind: input, shape index: {}]
  %s4 = inlined_call_operand.vmem [shape: f32[256,512], index: 4, kind: input, shape index: {}]
  %s5 = inlined_call_operand.vmem [shape: f32[2,8,512], index: 5, kind: output, shape index: {}]
  %s6 = sld [smem:[#allocation0]]
  $region53: #{resnet_block_forward.3} parent=0
    _
  %s8 = ssub.s32 1, %s6
  %s9 = scalar_select 0, %s8, %s6
  loop: start=0, step=1, limit=4
  $region2: #{resnet_block_forward.3} parent=0 // loop_pre_header
    _
  $region3: #{resnet_block_forward.3} parent=0 // loop_header
    %s11 = sphi 0, %s15
    %p12 = scmp.ge.s32.totalorder %s11, 4
    %s21 = sphi 0, %s23
    %s24 = sphi 0, %s21
    %s25 = sphi 0, %s24
    %s41 = sphi 0, %s25
    %s45 = sphi 0, %s45
    %s47 = sphi 0, %s45
    %s48 = sphi 0, %s47
    %s62 = sphi 0, %s48
    %s66 = sphi 0, %s66
    %s68 = sphi 0, %s66
    %s69 = sphi 0, %s68
    %s83 = sphi 0, %s69
    %s89 = sphi 0, %s91
    %s92 = sphi 0, %s89
    %s93 = sphi 0, %s92
    %s109 = sphi 0, %s93
    %s113 = sphi 0, %s113
    %s115 = sphi 0, %s113
    %s116 = sphi 0, %s115
    %s130 = sphi 0, %s116
    %s136 = sphi 0, %s138
    %s139 = sphi 0, %s136
    %s140 = sphi 0, %s139
    %s156 = sphi 0, %s140
  $region4: #{resnet_block_forward.3} parent=0 // loop_header_branch
    %14 = sbr.rel (%p12) target = $region8
  $region5: #{resnet_block_forward.3} parent=0 // loop_body
    %s16 = ssub.s32 %s11, 1
    %s17 = ssub.s32 %s11, 2
    %s18 = sadd.s32 %s11, 1
    %s19 = ssub.s32 %s11, %s18
    %p20 = scmp.eq.s32.totalorder %s19, 0
    %s22 = sadd.s32 %s21, 1
    %s23 = scalar_select %p20, %s21, %s22
    %p26 = pneg %p20
    %p27 = scmp.eq.s32.totalorder %s11, 1
    %p28 = por %p26, %p27
    %p29 = scmp.ne.s32.totalorder %s21, %s24
    %p30 = scmp.eq.s32.totalorder %s11, 0
    %p31 = por %p29, %p30
    %p32 = scmp.ne.s32.totalorder %s21, %s24
    %p33 = scmp.eq.s32.totalorder %s16, 1
    %p34 = por %p32, %p33
    %p35 = scmp.ne.s32.totalorder %s24, %s25
    %p36 = scmp.eq.s32.totalorder %s16, 0
    %p37 = por %p35, %p36
    %p38 = scmp.ne.s32.totalorder %s24, %s25
    %p39 = scmp.eq.s32.totalorder %s17, 1
    %p40 = por %p38, %p39
    %p42 = scmp.ne.s32.totalorder %s25, %s41
    %p43 = scmp.eq.s32.totalorder %s17, 0
    %p44 = por %p42, %p43
    %s46 = sadd.s32 %s45, 1
    %p49 = scmp.eq.s32.totalorder %s11, 1
    %p50 = scmp.ne.s32.totalorder %s45, %s47
    %p51 = scmp.eq.s32.totalorder %s11, 0
    %p52 = por %p50, %p51
    %p53 = scmp.ne.s32.totalorder %s45, %s47
    %p54 = scmp.eq.s32.totalorder %s16, 1
    %p55 = por %p53, %p54
    %p56 = scmp.ne.s32.totalorder %s47, %s48
    %p57 = scmp.eq.s32.totalorder %s16, 0
    %p58 = por %p56, %p57
    %p59 = scmp.ne.s32.totalorder %s47, %s48
    %p60 = scmp.eq.s32.totalorder %s17, 1
    %p61 = por %p59, %p60
    %p63 = scmp.ne.s32.totalorder %s48, %s62
    %p64 = scmp.eq.s32.totalorder %s17, 0
    %p65 = por %p63, %p64
    %s67 = sadd.s32 %s66, 1
    %p70 = scmp.eq.s32.totalorder %s11, 1
    %p71 = scmp.ne.s32.totalorder %s66, %s68
    %p72 = scmp.eq.s32.totalorder %s11, 0
    %p73 = por %p71, %p72
    %p74 = scmp.ne.s32.totalorder %s66, %s68
    %p75 = scmp.eq.s32.totalorder %s16, 1
    %p76 = por %p74, %p75
    %p77 = scmp.ne.s32.totalorder %s68, %s69
    %p78 = scmp.eq.s32.totalorder %s16, 0
    %p79 = por %p77, %p78
    %p80 = scmp.ne.s32.totalorder %s68, %s69
    %p81 = scmp.eq.s32.totalorder %s17, 1
    %p82 = por %p80, %p81
    %p84 = scmp.ne.s32.totalorder %s69, %s83
    %p85 = scmp.eq.s32.totalorder %s17, 0
    %p86 = por %p84, %p85
    %s87 = ssub.s32 %s11, %s18
    %p88 = scmp.eq.s32.totalorder %s87, 0
    %s90 = sadd.s32 %s89, 1
    %s91 = scalar_select %p88, %s89, %s90
    %p94 = pneg %p88
    %p95 = scmp.eq.s32.totalorder %s11, 1
    %p96 = por %p94, %p95
    %p97 = scmp.ne.s32.totalorder %s89, %s92
    %p98 = scmp.eq.s32.totalorder %s11, 0
    %p99 = por %p97, %p98
    %p100 = scmp.ne.s32.totalorder %s89, %s92
    %p101 = scmp.eq.s32.totalorder %s16, 1
    %p102 = por %p100, %p101
    %p103 = scmp.ne.s32.totalorder %s92, %s93
    %p104 = scmp.eq.s32.totalorder %s16, 0
    %p105 = por %p103, %p104
    %p106 = scmp.ne.s32.totalorder %s92, %s93
    %p107 = scmp.eq.s32.totalorder %s17, 1
    %p108 = por %p106, %p107
    %p110 = scmp.ne.s32.totalorder %s93, %s109
    %p111 = scmp.eq.s32.totalorder %s17, 0
    %p112 = por %p110, %p111
    %s114 = sadd.s32 %s113, 1
    %p117 = scmp.eq.s32.totalorder %s11, 1
    %p118 = scmp.ne.s32.totalorder %s113, %s115
    %p119 = scmp.eq.s32.totalorder %s11, 0
    %p120 = por %p118, %p119
    %p121 = scmp.ne.s32.totalorder %s113, %s115
    %p122 = scmp.eq.s32.totalorder %s16, 1
    %p123 = por %p121, %p122
    %p124 = scmp.ne.s32.totalorder %s115, %s116
    %p125 = scmp.eq.s32.totalorder %s16, 0
    %p126 = por %p124, %p125
    %p127 = scmp.ne.s32.totalorder %s115, %s116
    %p128 = scmp.eq.s32.totalorder %s17, 1
    %p129 = por %p127, %p128
    %p131 = scmp.ne.s32.totalorder %s116, %s130
    %p132 = scmp.eq.s32.totalorder %s17, 0
    %p133 = por %p131, %p132
    %s134 = ssub.s32 %s11, %s18
    %p135 = scmp.eq.s32.totalorder %s134, 0
    %s137 = sadd.s32 %s136, 1
    %s138 = scalar_select %p135, %s136, %s137
    %p141 = pneg %p135
    %p142 = scmp.eq.s32.totalorder %s11, 1
    %p143 = por %p141, %p142
    %p144 = scmp.ne.s32.totalorder %s136, %s139
    %p145 = scmp.eq.s32.totalorder %s11, 0
    %p146 = por %p144, %p145
    %p147 = scmp.ne.s32.totalorder %s136, %s139
    %p148 = scmp.eq.s32.totalorder %s16, 1
    %p149 = por %p147, %p148
    %p150 = scmp.ne.s32.totalorder %s139, %s140
    %p151 = scmp.eq.s32.totalorder %s16, 0
    %p152 = por %p150, %p151
    %p153 = scmp.ne.s32.totalorder %s139, %s140
    %p154 = scmp.eq.s32.totalorder %s17, 1
    %p155 = por %p153, %p154
    %p157 = scmp.ne.s32.totalorder %s140, %s156
    %p158 = scmp.eq.s32.totalorder %s17, 0
    %p159 = por %p157, %p158
    %p160 = scmp.le.s32.totalorder 1, %s11
    %p161 = scmp.lt.s32.totalorder %s11, 3
    %p162 = pnand %p160, %p161
    %p163 = pneg %p162
    // Predicated region
    $region9: #{resnet_block_forward.3} parent=5 // pred_check
      _
    $region10: #{resnet_block_forward.3} parent=5 // pred_check_branch
      %165 = sbr.rel (%p162) target = $region12
    $region11: #{resnet_block_forward.3} parent=5 // pred_region
      %s166 = ssub.s32 %s11, 1
      // Predicated region
      $region13: #{resnet_block_forward.3} parent=11 // pred_check
        %p167 = pneg %p58
      $region14: #{resnet_block_forward.3} parent=11 // pred_check_branch
        %169 = sbr.rel (%p167) target = $region16
      $region15: #{resnet_block_forward.3} parent=11 // pred_region
        _
      $region16: #{resnet_block_forward.3} parent=11 // pred_fallthru
        _
      // Predicated region
      $region17: #{resnet_block_forward.3} parent=11 // pred_check
        %p170 = pneg %p79
      $region18: #{resnet_block_forward.3} parent=11 // pred_check_branch
        %172 = sbr.rel (%p170) target = $region20
      $region19: #{resnet_block_forward.3} parent=11 // pred_region
        _
      $region20: #{resnet_block_forward.3} parent=11 // pred_fallthru
        _
      // Predicated region
      $region21: #{resnet_block_forward.3} parent=11 // pred_check
        %p173 = pneg %p126
      $region22: #{resnet_block_forward.3} parent=11 // pred_check_branch
        %175 = sbr.rel (%p173) target = $region24
      $region23: #{resnet_block_forward.3} parent=11 // pred_region
        _
      $region24: #{resnet_block_forward.3} parent=11 // pred_fallthru
        _
    $region12: #{resnet_block_forward.3} parent=5 // pred_fallthru
      _
    %p176 = scmp.lt.s32.totalorder %s11, 2
    // Predicated region
    $region25: #{resnet_block_forward.3} parent=5 // pred_check
      %p177 = pneg %p176
    $region26: #{resnet_block_forward.3} parent=5 // pred_check_branch
      %179 = sbr.rel (%p177) target = $region28
    $region27: #{resnet_block_forward.3} parent=5 // pred_region
      // Predicated region
      $region29: #{resnet_block_forward.3} parent=27 // pred_check
        %p180 = pneg %p31
      $region30: #{resnet_block_forward.3} parent=27 // pred_check_branch
        %182 = sbr.rel (%p180) target = $region32
      $region31: #{resnet_block_forward.3} parent=27 // pred_region
        %p183 = scmp.lt.s32.totalorder %s11, 1
        %s184 = scalar_select %p183, %s11, 1
        %s185 = smul.addr %s184, 4
        %s186 = smul.addr %s185, 8
        %s187 = scalar_lea.vmem %s0, %s186
      $region32: #{resnet_block_forward.3} parent=27 // pred_fallthru
        _
      // Predicated region
      $region33: #{resnet_block_forward.3} parent=27 // pred_check
        %p188 = pneg %p99
      $region34: #{resnet_block_forward.3} parent=27 // pred_check_branch
        %190 = sbr.rel (%p188) target = $region36
      $region35: #{resnet_block_forward.3} parent=27 // pred_region
        %p191 = scmp.lt.s32.totalorder %s11, 1
        %s192 = scalar_select %p191, %s11, 1
        %s193 = smul.addr %s192, 2
        %s194 = smul.addr %s193, 8
        %s195 = scalar_lea.vmem %s3, %s194
      $region36: #{resnet_block_forward.3} parent=27 // pred_fallthru
        _
    $region28: #{resnet_block_forward.3} parent=5 // pred_fallthru
      _
    %p196 = scmp.le.s32.totalorder 1, %s11
    %p197 = scmp.lt.s32.totalorder %s11, 3
    %p198 = pnand %p196, %p197
    %p199 = pneg %p198
    // Predicated region
    $region37: #{resnet_block_forward.3} parent=5 // pred_check
      _
    $region38: #{resnet_block_forward.3} parent=5 // pred_check_branch
      %201 = sbr.rel (%p198) target = $region40
    $region39: #{resnet_block_forward.3} parent=5 // pred_region
      %s202 = ssub.s32 %s11, 1
      %p203 = scmp.lt.s32.totalorder %s16, 1
      %s204 = scalar_select %p203, %s16, 1
      %s205 = smul.addr %s204, 4
      %s206 = smul.addr %s205, 8
      %s207 = scalar_lea.vmem %s0, %s206
      %p208 = pneg %p37
      %p209 = pneg %p34
      %p210 = pneg %p58
      %p211 = pneg %p55
      %p212 = pneg %p79
      %p213 = pneg %p76
      %p214 = scmp.lt.s32.totalorder %s16, 1
      %s215 = scalar_select %p214, %s16, 1
      %s216 = smul.addr %s215, 2
      %s217 = smul.addr %s216, 8
      %s218 = scalar_lea.vmem %s3, %s217
      %p219 = pneg %p105
      %p220 = pneg %p102
      %p221 = pneg %p126
      %p222 = pneg %p123
      %p223 = pneg %p152
      %p224 = pneg %p149
      %p225 = scmp.lt.s32.totalorder %s16, 1
      %s226 = scalar_select %p225, %s16, 1
      %s227 = smul.addr %s226, 4
      %s228 = smul.addr %s227, 8
      %s229 = scalar_lea.vmem %s5, %s228
      %p230 = scmp.lt.s32.totalorder %s16, 1
      %s231 = scalar_select %p230, %s16, 1
      %s232 = smul.addr %s231, 4
      %s233 = smul.addr %s232, 8
      %s234 = scalar_lea.vmem %s0, %s233
      %p235 = scmp.lt.s32.totalorder %s16, 1
      %s236 = scalar_select %p235, %s16, 1
      %s237 = smul.addr %s236, 2
      %s238 = smul.addr %s237, 8
      %s239 = scalar_lea.vmem %s3, %s238
      %p240 = scmp.lt.s32.totalorder %s16, 1
      %s241 = scalar_select %p240, %s16, 1
      %s242 = smul.addr %s241, 4
      %s243 = smul.addr %s242, 8
      %s244 = scalar_lea.vmem %s5, %s243
      %v245 = vld [vmem:[%s1] ss:$2 sm:$0xf]
      %s246 = scalar_lea.vmem %s1, 1
      %v247 = vld [vmem:[%s246] ss:$2 sm:$0xf]
      %v248 = vld [vmem:[%s234] sm:$0xff]
      %v249 = vld [vmem:[%s234 + $0x8] sm:$0xff]
      %v250 = vld [vmem:[%s234 + $0x10] sm:$0xff]
      %v251 = vld [vmem:[%s234 + $0x18] sm:$0xff]
      %v253 = vperm.slane %v245, 0
      %v254 = vperm.slane %v245, 1
      %v255 = vperm.slane %v245, 2
      %v256 = vperm.slane %v245, 3
      %v261 = vsub.f32 %v248, %v253
      %v262 = vsub.f32 %v249, %v254
      %v263 = vsub.f32 %v250, %v255
      %v264 = vsub.f32 %v251, %v256
      %v266 = vperm.slane %v247, 0
      %v267 = vperm.slane %v247, 1
      %v268 = vperm.slane %v247, 2
      %v269 = vperm.slane %v247, 3
      %v274 = vmul.f32 %v261, %v266
      %v275 = vmul.f32 %v262, %v267
      %v276 = vmul.f32 %v263, %v268
      %v277 = vmul.f32 %v264, %v269
      %v278 = vmax.f32 %v274, 0.0
      %v279 = vmax.f32 %v275, 0.0
      %v280 = vmax.f32 %v276, 0.0
      %v281 = vmax.f32 %v277, 0.0
      %v282 = vlaneseq
      %vm283 = vcmp.ge.s32.totalorder %v282, 0
      %vm284 = vcmp.lt.s32.totalorder %v282, 512
      %vm285 = vmand %vm283, %vm284
      %286 = vst.msk [vmem:[#allocation2] ss:$8 sm:$0xf] %vm285, 0.0
      %287 = vst.msk [vmem:[#allocation2] ss:$8 sm:$0x0] %vm285, 0.0
      %s288 = scalar_lea.vmem [#allocation2], 33
      %289 = vst.msk [vmem:[%s288] ss:$8 sm:$0xf] %vm285, 0.0
      %290 = vst.msk [vmem:[%s288] ss:$8 sm:$0x0] %vm285, 0.0
      %v295 = vrot.slane %v278, 7
      %v296 = vrot.slane %v279, 7
      %v297 = vrot.slane %v280, 7
      %v298 = vrot.slane %v281, 7
      %303 = vst [vmem:[#allocation2] sm:$0xfe] %v295
      %304 = vst [vmem:[#allocation2 + $0x8] sm:$0xfe] %v296
      %305 = vst [vmem:[#allocation2 + $0x10] sm:$0xfe] %v297
      %306 = vst [vmem:[#allocation2 + $0x18] sm:$0xfe] %v298
      %307 = vst [vmem:[#allocation2 + $0x20] sm:$0x1] %v295
      %308 = vst [vmem:[#allocation2 + $0x28] sm:$0x1] %v296
      %309 = vst [vmem:[#allocation2 + $0x30] sm:$0x1] %v297
      %310 = vst [vmem:[#allocation2 + $0x38] sm:$0x1] %v298
      %v311 = vld [vmem:[#allocation2] sm:$0xff]
      %v312 = vld [vmem:[#allocation2 + $0x8] sm:$0xff]
      %v313 = vld [vmem:[#allocation2 + $0x10] sm:$0xff]
      %v314 = vld [vmem:[#allocation2 + $0x18] sm:$0xff]
      %v315 = vpack.c.bf16 %v311, %v311
      %v316 = vpack.c.bf16 %v312, %v312
      %v317 = vpack.c.bf16 %v313, %v313
      %v318 = vpack.c.bf16 %v314, %v314
      %v319 = vld [vmem:[%s2] sm:$0xff]
      %v320 = vld [vmem:[%s2 + $0x8] sm:$0xff]
      %v321 = vld [vmem:[%s2 + $0x10] sm:$0xff]
      %v322 = vld [vmem:[%s2 + $0x18] sm:$0xff]
      %v323 = vld [vmem:[%s2 + $0x20] sm:$0xff]
      %v324 = vld [vmem:[%s2 + $0x28] sm:$0xff]
      %v325 = vld [vmem:[%s2 + $0x30] sm:$0xff]
      %v326 = vld [vmem:[%s2 + $0x38] sm:$0xff]
      %v327 = vld [vmem:[%s2 + $0x40] sm:$0xff]
      %v328 = vld [vmem:[%s2 + $0x48] sm:$0xff]
      %v329 = vld [vmem:[%s2 + $0x50] sm:$0xff]
      %v330 = vld [vmem:[%s2 + $0x58] sm:$0xff]
      %v331 = vld [vmem:[%s2 + $0x60] sm:$0xff]
      %v332 = vld [vmem:[%s2 + $0x68] sm:$0xff]
      %v333 = vld [vmem:[%s2 + $0x70] sm:$0xff]
      %v334 = vld [vmem:[%s2 + $0x78] sm:$0xff]
      %v335 = vld [vmem:[%s2 + $0x80] sm:$0xff]
      %v336 = vld [vmem:[%s2 + $0x88] sm:$0xff]
      %v337 = vld [vmem:[%s2 + $0x90] sm:$0xff]
      %v338 = vld [vmem:[%s2 + $0x98] sm:$0xff]
      %v339 = vld [vmem:[%s2 + $0xa0] sm:$0xff]
      %v340 = vld [vmem:[%s2 + $0xa8] sm:$0xff]
      %v341 = vld [vmem:[%s2 + $0xb0] sm:$0xff]
      %v342 = vld [vmem:[%s2 + $0xb8] sm:$0xff]
      %v343 = vld [vmem:[%s2 + $0xc0] sm:$0xff]
      %v344 = vld [vmem:[%s2 + $0xc8] sm:$0xff]
      %v345 = vld [vmem:[%s2 + $0xd0] sm:$0xff]
      %v346 = vld [vmem:[%s2 + $0xd8] sm:$0xff]
      %v347 = vld [vmem:[%s2 + $0xe0] sm:$0xff]
      %v348 = vld [vmem:[%s2 + $0xe8] sm:$0xff]
      %v349 = vld [vmem:[%s2 + $0xf0] sm:$0xff]
      %v350 = vld [vmem:[%s2 + $0xf8] sm:$0xff]
      %v351 = vld [vmem:[%s2 + $0x100] sm:$0xff]
      %v352 = vld [vmem:[%s2 + $0x108] sm:$0xff]
      %v353 = vld [vmem:[%s2 + $0x110] sm:$0xff]
      %v354 = vld [vmem:[%s2 + $0x118] sm:$0xff]
      %v355 = vld [vmem:[%s2 + $0x120] sm:$0xff]
      %v356 = vld [vmem:[%s2 + $0x128] sm:$0xff]
      %v357 = vld [vmem:[%s2 + $0x130] sm:$0xff]
      %v358 = vld [vmem:[%s2 + $0x138] sm:$0xff]
      %v359 = vld [vmem:[%s2 + $0x140] sm:$0xff]
      %v360 = vld [vmem:[%s2 + $0x148] sm:$0xff]
      %v361 = vld [vmem:[%s2 + $0x150] sm:$0xff]
      %v362 = vld [vmem:[%s2 + $0x158] sm:$0xff]
      %v363 = vld [vmem:[%s2 + $0x160] sm:$0xff]
      %v364 = vld [vmem:[%s2 + $0x168] sm:$0xff]
      %v365 = vld [vmem:[%s2 + $0x170] sm:$0xff]
      %v366 = vld [vmem:[%s2 + $0x178] sm:$0xff]
      %v367 = vld [vmem:[%s2 + $0x180] sm:$0xff]
      %v368 = vld [vmem:[%s2 + $0x188] sm:$0xff]
      %v369 = vld [vmem:[%s2 + $0x190] sm:$0xff]
      %v370 = vld [vmem:[%s2 + $0x198] sm:$0xff]
      %v371 = vld [vmem:[%s2 + $0x1a0] sm:$0xff]
      %v372 = vld [vmem:[%s2 + $0x1a8] sm:$0xff]
      %v373 = vld [vmem:[%s2 + $0x1b0] sm:$0xff]
      %v374 = vld [vmem:[%s2 + $0x1b8] sm:$0xff]
      %v375 = vld [vmem:[%s2 + $0x1c0] sm:$0xff]
      %v376 = vld [vmem:[%s2 + $0x1c8] sm:$0xff]
      %v377 = vld [vmem:[%s2 + $0x1d0] sm:$0xff]
      %v378 = vld [vmem:[%s2 + $0x1d8] sm:$0xff]
      %v379 = vld [vmem:[%s2 + $0x1e0] sm:$0xff]
      %v380 = vld [vmem:[%s2 + $0x1e8] sm:$0xff]
      %v381 = vld [vmem:[%s2 + $0x1f0] sm:$0xff]
      %v382 = vld [vmem:[%s2 + $0x1f8] sm:$0xff]
      %v383 = vld [vmem:[%s2 + $0x200] sm:$0xff]
      %v384 = vld [vmem:[%s2 + $0x208] sm:$0xff]
      %v385 = vld [vmem:[%s2 + $0x210] sm:$0xff]
      %v386 = vld [vmem:[%s2 + $0x218] sm:$0xff]
      %v387 = vld [vmem:[%s2 + $0x220] sm:$0xff]
      %v388 = vld [vmem:[%s2 + $0x228] sm:$0xff]
      %v389 = vld [vmem:[%s2 + $0x230] sm:$0xff]
      %v390 = vld [vmem:[%s2 + $0x238] sm:$0xff]
      %v391 = vld [vmem:[%s2 + $0x240] sm:$0xff]
      %v392 = vld [vmem:[%s2 + $0x248] sm:$0xff]
      %v393 = vld [vmem:[%s2 + $0x250] sm:$0xff]
      %v394 = vld [vmem:[%s2 + $0x258] sm:$0xff]
      %v395 = vld [vmem:[%s2 + $0x260] sm:$0xff]
      %v396 = vld [vmem:[%s2 + $0x268] sm:$0xff]
      %v397 = vld [vmem:[%s2 + $0x270] sm:$0xff]
      %v398 = vld [vmem:[%s2 + $0x278] sm:$0xff]
      %v399 = vld [vmem:[%s2 + $0x280] sm:$0xff]
      %v400 = vld [vmem:[%s2 + $0x288] sm:$0xff]
      %v401 = vld [vmem:[%s2 + $0x290] sm:$0xff]
      %v402 = vld [vmem:[%s2 + $0x298] sm:$0xff]
      %v403 = vld [vmem:[%s2 + $0x2a0] sm:$0xff]
      %v404 = vld [vmem:[%s2 + $0x2a8] sm:$0xff]
      %v405 = vld [vmem:[%s2 + $0x2b0] sm:$0xff]
      %v406 = vld [vmem:[%s2 + $0x2b8] sm:$0xff]
      %v407 = vld [vmem:[%s2 + $0x2c0] sm:$0xff]
      %v408 = vld [vmem:[%s2 + $0x2c8] sm:$0xff]
      %v409 = vld [vmem:[%s2 + $0x2d0] sm:$0xff]
      %v410 = vld [vmem:[%s2 + $0x2d8] sm:$0xff]
      %v411 = vld [vmem:[%s2 + $0x2e0] sm:$0xff]
      %v412 = vld [vmem:[%s2 + $0x2e8] sm:$0xff]
      %v413 = vld [vmem:[%s2 + $0x2f0] sm:$0xff]
      %v414 = vld [vmem:[%s2 + $0x2f8] sm:$0xff]
      %v415 = vld [vmem:[%s2 + $0x300] sm:$0xff]
      %v416 = vld [vmem:[%s2 + $0x308] sm:$0xff]
      %v417 = vld [vmem:[%s2 + $0x310] sm:$0xff]
      %v418 = vld [vmem:[%s2 + $0x318] sm:$0xff]
      %v419 = vld [vmem:[%s2 + $0x320] sm:$0xff]
      %v420 = vld [vmem:[%s2 + $0x328] sm:$0xff]
      %v421 = vld [vmem:[%s2 + $0x330] sm:$0xff]
      %v422 = vld [vmem:[%s2 + $0x338] sm:$0xff]
      %v423 = vld [vmem:[%s2 + $0x340] sm:$0xff]
      %v424 = vld [vmem:[%s2 + $0x348] sm:$0xff]
      %v425 = vld [vmem:[%s2 + $0x350] sm:$0xff]
      %v426 = vld [vmem:[%s2 + $0x358] sm:$0xff]
      %v427 = vld [vmem:[%s2 + $0x360] sm:$0xff]
      %v428 = vld [vmem:[%s2 + $0x368] sm:$0xff]
      %v429 = vld [vmem:[%s2 + $0x370] sm:$0xff]
      %v430 = vld [vmem:[%s2 + $0x378] sm:$0xff]
      %v431 = vld [vmem:[%s2 + $0x380] sm:$0xff]
      %v432 = vld [vmem:[%s2 + $0x388] sm:$0xff]
      %v433 = vld [vmem:[%s2 + $0x390] sm:$0xff]
      %v434 = vld [vmem:[%s2 + $0x398] sm:$0xff]
      %v435 = vld [vmem:[%s2 + $0x3a0] sm:$0xff]
      %v436 = vld [vmem:[%s2 + $0x3a8] sm:$0xff]
      %v437 = vld [vmem:[%s2 + $0x3b0] sm:$0xff]
      %v438 = vld [vmem:[%s2 + $0x3b8] sm:$0xff]
      %v439 = vld [vmem:[%s2 + $0x3c0] sm:$0xff]
      %v440 = vld [vmem:[%s2 + $0x3c8] sm:$0xff]
      %v441 = vld [vmem:[%s2 + $0x3d0] sm:$0xff]
      %v442 = vld [vmem:[%s2 + $0x3d8] sm:$0xff]
      %v443 = vld [vmem:[%s2 + $0x3e0] sm:$0xff]
      %v444 = vld [vmem:[%s2 + $0x3e8] sm:$0xff]
      %v445 = vld [vmem:[%s2 + $0x3f0] sm:$0xff]
      %v446 = vld [vmem:[%s2 + $0x3f8] sm:$0xff]
      %v447 = vld [vmem:[#allocation2] sm:$0xfe]
      %v448 = vld [vmem:[#allocation2 + $0x8] sm:$0xfe]
      %v449 = vld [vmem:[#allocation2 + $0x10] sm:$0xfe]
      %v450 = vld [vmem:[#allocation2 + $0x18] sm:$0xfe]
      %v451 = vld [vmem:[#allocation2 + $0x20] sm:$0x1]
      %v452 = vld [vmem:[#allocation2 + $0x28] sm:$0x1]
      %v453 = vld [vmem:[#allocation2 + $0x30] sm:$0x1]
      %v454 = vld [vmem:[#allocation2 + $0x38] sm:$0x1]
      %v455 = vpack.c.bf16 %v451, %v447
      %v456 = vpack.c.bf16 %v452, %v448
      %v457 = vpack.c.bf16 %v453, %v449
      %v458 = vpack.c.bf16 %v454, %v450
      %s459 = scalar_lea.vmem %s2, 1024
      %v460 = vld [vmem:[%s459] sm:$0xff]
      %v461 = vld [vmem:[%s459 + $0x8] sm:$0xff]
      %v462 = vld [vmem:[%s459 + $0x10] sm:$0xff]
      %v463 = vld [vmem:[%s459 + $0x18] sm:$0xff]
      %v464 = vld [vmem:[%s459 + $0x20] sm:$0xff]
      %v465 = vld [vmem:[%s459 + $0x28] sm:$0xff]
      %v466 = vld [vmem:[%s459 + $0x30] sm:$0xff]
      %v467 = vld [vmem:[%s459 + $0x38] sm:$0xff]
      %v468 = vld [vmem:[%s459 + $0x40] sm:$0xff]
      %v469 = vld [vmem:[%s459 + $0x48] sm:$0xff]
      %v470 = vld [vmem:[%s459 + $0x50] sm:$0xff]
      %v471 = vld [vmem:[%s459 + $0x58] sm:$0xff]
      %v472 = vld [vmem:[%s459 + $0x60] sm:$0xff]
      %v473 = vld [vmem:[%s459 + $0x68] sm:$0xff]
      %v474 = vld [vmem:[%s459 + $0x70] sm:$0xff]
      %v475 = vld [vmem:[%s459 + $0x78] sm:$0xff]
      %v476 = vld [vmem:[%s459 + $0x80] sm:$0xff]
      %v477 = vld [vmem:[%s459 + $0x88] sm:$0xff]
      %v478 = vld [vmem:[%s459 + $0x90] sm:$0xff]
      %v479 = vld [vmem:[%s459 + $0x98] sm:$0xff]
      %v480 = vld [vmem:[%s459 + $0xa0] sm:$0xff]
      %v481 = vld [vmem:[%s459 + $0xa8] sm:$0xff]
      %v482 = vld [vmem:[%s459 + $0xb0] sm:$0xff]
      %v483 = vld [vmem:[%s459 + $0xb8] sm:$0xff]
      %v484 = vld [vmem:[%s459 + $0xc0] sm:$0xff]
      %v485 = vld [vmem:[%s459 + $0xc8] sm:$0xff]
      %v486 = vld [vmem:[%s459 + $0xd0] sm:$0xff]
      %v487 = vld [vmem:[%s459 + $0xd8] sm:$0xff]
      %v488 = vld [vmem:[%s459 + $0xe0] sm:$0xff]
      %v489 = vld [vmem:[%s459 + $0xe8] sm:$0xff]
      %v490 = vld [vmem:[%s459 + $0xf0] sm:$0xff]
      %v491 = vld [vmem:[%s459 + $0xf8] sm:$0xff]
      %v492 = vld [vmem:[%s459 + $0x100] sm:$0xff]
      %v493 = vld [vmem:[%s459 + $0x108] sm:$0xff]
      %v494 = vld [vmem:[%s459 + $0x110] sm:$0xff]
      %v495 = vld [vmem:[%s459 + $0x118] sm:$0xff]
      %v496 = vld [vmem:[%s459 + $0x120] sm:$0xff]
      %v497 = vld [vmem:[%s459 + $0x128] sm:$0xff]
      %v498 = vld [vmem:[%s459 + $0x130] sm:$0xff]
      %v499 = vld [vmem:[%s459 + $0x138] sm:$0xff]
      %v500 = vld [vmem:[%s459 + $0x140] sm:$0xff]
      %v501 = vld [vmem:[%s459 + $0x148] sm:$0xff]
      %v502 = vld [vmem:[%s459 + $0x150] sm:$0xff]
      %v503 = vld [vmem:[%s459 + $0x158] sm:$0xff]
      %v504 = vld [vmem:[%s459 + $0x160] sm:$0xff]
      %v505 = vld [vmem:[%s459 + $0x168] sm:$0xff]
      %v506 = vld [vmem:[%s459 + $0x170] sm:$0xff]
      %v507 = vld [vmem:[%s459 + $0x178] sm:$0xff]
      %v508 = vld [vmem:[%s459 + $0x180] sm:$0xff]
      %v509 = vld [vmem:[%s459 + $0x188] sm:$0xff]
      %v510 = vld [vmem:[%s459 + $0x190] sm:$0xff]
      %v511 = vld [vmem:[%s459 + $0x198] sm:$0xff]
      %v512 = vld [vmem:[%s459 + $0x1a0] sm:$0xff]
      %v513 = vld [vmem:[%s459 + $0x1a8] sm:$0xff]
      %v514 = vld [vmem:[%s459 + $0x1b0] sm:$0xff]
      %v515 = vld [vmem:[%s459 + $0x1b8] sm:$0xff]
      %v516 = vld [vmem:[%s459 + $0x1c0] sm:$0xff]
      %v517 = vld [vmem:[%s459 + $0x1c8] sm:$0xff]
      %v518 = vld [vmem:[%s459 + $0x1d0] sm:$0xff]
      %v519 = vld [vmem:[%s459 + $0x1d8] sm:$0xff]
      %v520 = vld [vmem:[%s459 + $0x1e0] sm:$0xff]
      %v521 = vld [vmem:[%s459 + $0x1e8] sm:$0xff]
      %v522 = vld [vmem:[%s459 + $0x1f0] sm:$0xff]
      %v523 = vld [vmem:[%s459 + $0x1f8] sm:$0xff]
      %v524 = vld [vmem:[%s459 + $0x200] sm:$0xff]
      %v525 = vld [vmem:[%s459 + $0x208] sm:$0xff]
      %v526 = vld [vmem:[%s459 + $0x210] sm:$0xff]
      %v527 = vld [vmem:[%s459 + $0x218] sm:$0xff]
      %v528 = vld [vmem:[%s459 + $0x220] sm:$0xff]
      %v529 = vld [vmem:[%s459 + $0x228] sm:$0xff]
      %v530 = vld [vmem:[%s459 + $0x230] sm:$0xff]
      %v531 = vld [vmem:[%s459 + $0x238] sm:$0xff]
      %v532 = vld [vmem:[%s459 + $0x240] sm:$0xff]
      %v533 = vld [vmem:[%s459 + $0x248] sm:$0xff]
      %v534 = vld [vmem:[%s459 + $0x250] sm:$0xff]
      %v535 = vld [vmem:[%s459 + $0x258] sm:$0xff]
      %v536 = vld [vmem:[%s459 + $0x260] sm:$0xff]
      %v537 = vld [vmem:[%s459 + $0x268] sm:$0xff]
      %v538 = vld [vmem:[%s459 + $0x270] sm:$0xff]
      %v539 = vld [vmem:[%s459 + $0x278] sm:$0xff]
      %v540 = vld [vmem:[%s459 + $0x280] sm:$0xff]
      %v541 = vld [vmem:[%s459 + $0x288] sm:$0xff]
      %v542 = vld [vmem:[%s459 + $0x290] sm:$0xff]
      %v543 = vld [vmem:[%s459 + $0x298] sm:$0xff]
      %v544 = vld [vmem:[%s459 + $0x2a0] sm:$0xff]
      %v545 = vld [vmem:[%s459 + $0x2a8] sm:$0xff]
      %v546 = vld [vmem:[%s459 + $0x2b0] sm:$0xff]
      %v547 = vld [vmem:[%s459 + $0x2b8] sm:$0xff]
      %v548 = vld [vmem:[%s459 + $0x2c0] sm:$0xff]
      %v549 = vld [vmem:[%s459 + $0x2c8] sm:$0xff]
      %v550 = vld [vmem:[%s459 + $0x2d0] sm:$0xff]
      %v551 = vld [vmem:[%s459 + $0x2d8] sm:$0xff]
      %v552 = vld [vmem:[%s459 + $0x2e0] sm:$0xff]
      %v553 = vld [vmem:[%s459 + $0x2e8] sm:$0xff]
      %v554 = vld [vmem:[%s459 + $0x2f0] sm:$0xff]
      %v555 = vld [vmem:[%s459 + $0x2f8] sm:$0xff]
      %v556 = vld [vmem:[%s459 + $0x300] sm:$0xff]
      %v557 = vld [vmem:[%s459 + $0x308] sm:$0xff]
      %v558 = vld [vmem:[%s459 + $0x310] sm:$0xff]
      %v559 = vld [vmem:[%s459 + $0x318] sm:$0xff]
      %v560 = vld [vmem:[%s459 + $0x320] sm:$0xff]
      %v561 = vld [vmem:[%s459 + $0x328] sm:$0xff]
      %v562 = vld [vmem:[%s459 + $0x330] sm:$0xff]
      %v563 = vld [vmem:[%s459 + $0x338] sm:$0xff]
      %v564 = vld [vmem:[%s459 + $0x340] sm:$0xff]
      %v565 = vld [vmem:[%s459 + $0x348] sm:$0xff]
      %v566 = vld [vmem:[%s459 + $0x350] sm:$0xff]
      %v567 = vld [vmem:[%s459 + $0x358] sm:$0xff]
      %v568 = vld [vmem:[%s459 + $0x360] sm:$0xff]
      %v569 = vld [vmem:[%s459 + $0x368] sm:$0xff]
      %v570 = vld [vmem:[%s459 + $0x370] sm:$0xff]
      %v571 = vld [vmem:[%s459 + $0x378] sm:$0xff]
      %v572 = vld [vmem:[%s459 + $0x380] sm:$0xff]
      %v573 = vld [vmem:[%s459 + $0x388] sm:$0xff]
      %v574 = vld [vmem:[%s459 + $0x390] sm:$0xff]
      %v575 = vld [vmem:[%s459 + $0x398] sm:$0xff]
      %v576 = vld [vmem:[%s459 + $0x3a0] sm:$0xff]
      %v577 = vld [vmem:[%s459 + $0x3a8] sm:$0xff]
      %v578 = vld [vmem:[%s459 + $0x3b0] sm:$0xff]
      %v579 = vld [vmem:[%s459 + $0x3b8] sm:$0xff]
      %v580 = vld [vmem:[%s459 + $0x3c0] sm:$0xff]
      %v581 = vld [vmem:[%s459 + $0x3c8] sm:$0xff]
      %v582 = vld [vmem:[%s459 + $0x3d0] sm:$0xff]
      %v583 = vld [vmem:[%s459 + $0x3d8] sm:$0xff]
      %v584 = vld [vmem:[%s459 + $0x3e0] sm:$0xff]
      %v585 = vld [vmem:[%s459 + $0x3e8] sm:$0xff]
      %v586 = vld [vmem:[%s459 + $0x3f0] sm:$0xff]
      %v587 = vld [vmem:[%s459 + $0x3f8] sm:$0xff]
      %v589 = vshrl.u32 %v455, 16
      %v591 = vshll.u32 %v455, 16
      %v593 = vrot.slane %v591, 1
      %v594 = vor.u32 %v589, %v593
      %v596 = vshrl.u32 %v456, 16
      %v598 = vshll.u32 %v456, 16
      %v600 = vrot.slane %v598, 1
      %v601 = vor.u32 %v596, %v600
      %v603 = vshrl.u32 %v457, 16
      %v605 = vshll.u32 %v457, 16
      %v607 = vrot.slane %v605, 1
      %v608 = vor.u32 %v603, %v607
      %v610 = vshrl.u32 %v458, 16
      %v612 = vshll.u32 %v458, 16
      %v614 = vrot.slane %v612, 1
      %v615 = vor.u32 %v610, %v614
      %v748 = vunpack.c.l.b16 %v460
      %v749 = vunpack.c.h.b16 %v460
      %v750 = vunpack.c.l.b16 %v461
      %v751 = vunpack.c.h.b16 %v461
      %v752 = vunpack.c.l.b16 %v462
      %v753 = vunpack.c.h.b16 %v462
      %v754 = vunpack.c.l.b16 %v463
      %v755 = vunpack.c.h.b16 %v463
      %v756 = vunpack.c.l.b16 %v464
      %v757 = vunpack.c.h.b16 %v464
      %v758 = vunpack.c.l.b16 %v465
      %v759 = vunpack.c.h.b16 %v465
      %v760 = vunpack.c.l.b16 %v466
      %v761 = vunpack.c.h.b16 %v466
      %v762 = vunpack.c.l.b16 %v467
      %v763 = vunpack.c.h.b16 %v467
      %v764 = vunpack.c.l.b16 %v468
      %v765 = vunpack.c.h.b16 %v468
      %v766 = vunpack.c.l.b16 %v469
      %v767 = vunpack.c.h.b16 %v469
      %v768 = vunpack.c.l.b16 %v470
      %v769 = vunpack.c.h.b16 %v470
      %v770 = vunpack.c.l.b16 %v471
      %v771 = vunpack.c.h.b16 %v471
      %v772 = vunpack.c.l.b16 %v472
      %v773 = vunpack.c.h.b16 %v472
      %v774 = vunpack.c.l.b16 %v473
      %v775 = vunpack.c.h.b16 %v473
      %v776 = vunpack.c.l.b16 %v474
      %v777 = vunpack.c.h.b16 %v474
      %v778 = vunpack.c.l.b16 %v475
      %v779 = vunpack.c.h.b16 %v475
      %v780 = vunpack.c.l.b16 %v476
      %v781 = vunpack.c.h.b16 %v476
      %v782 = vunpack.c.l.b16 %v477
      %v783 = vunpack.c.h.b16 %v477
      %v784 = vunpack.c.l.b16 %v478
      %v785 = vunpack.c.h.b16 %v478
      %v786 = vunpack.c.l.b16 %v479
      %v787 = vunpack.c.h.b16 %v479
      %v788 = vunpack.c.l.b16 %v480
      %v789 = vunpack.c.h.b16 %v480
      %v790 = vunpack.c.l.b16 %v481
      %v791 = vunpack.c.h.b16 %v481
      %v792 = vunpack.c.l.b16 %v482
      %v793 = vunpack.c.h.b16 %v482
      %v794 = vunpack.c.l.b16 %v483
      %v795 = vunpack.c.h.b16 %v483
      %v796 = vunpack.c.l.b16 %v484
      %v797 = vunpack.c.h.b16 %v484
      %v798 = vunpack.c.l.b16 %v485
      %v799 = vunpack.c.h.b16 %v485
      %v800 = vunpack.c.l.b16 %v486
      %v801 = vunpack.c.h.b16 %v486
      %v802 = vunpack.c.l.b16 %v487
      %v803 = vunpack.c.h.b16 %v487
      %v804 = vunpack.c.l.b16 %v488
      %v805 = vunpack.c.h.b16 %v488
      %v806 = vunpack.c.l.b16 %v489
      %v807 = vunpack.c.h.b16 %v489
      %v808 = vunpack.c.l.b16 %v490
      %v809 = vunpack.c.h.b16 %v490
      %v810 = vunpack.c.l.b16 %v491
      %v811 = vunpack.c.h.b16 %v491
      %v812 = vunpack.c.l.b16 %v492
      %v813 = vunpack.c.h.b16 %v492
      %v814 = vunpack.c.l.b16 %v493
      %v815 = vunpack.c.h.b16 %v493
      %v816 = vunpack.c.l.b16 %v494
      %v817 = vunpack.c.h.b16 %v494
      %v818 = vunpack.c.l.b16 %v495
      %v819 = vunpack.c.h.b16 %v495
      %v820 = vunpack.c.l.b16 %v496
      %v821 = vunpack.c.h.b16 %v496
      %v822 = vunpack.c.l.b16 %v497
      %v823 = vunpack.c.h.b16 %v497
      %v824 = vunpack.c.l.b16 %v498
      %v825 = vunpack.c.h.b16 %v498
      %v826 = vunpack.c.l.b16 %v499
      %v827 = vunpack.c.h.b16 %v499
      %v828 = vunpack.c.l.b16 %v500
      %v829 = vunpack.c.h.b16 %v500
      %v830 = vunpack.c.l.b16 %v501
      %v831 = vunpack.c.h.b16 %v501
      %v832 = vunpack.c.l.b16 %v502
      %v833 = vunpack.c.h.b16 %v502
      %v834 = vunpack.c.l.b16 %v503
      %v835 = vunpack.c.h.b16 %v503
      %v836 = vunpack.c.l.b16 %v504
      %v837 = vunpack.c.h.b16 %v504
      %v838 = vunpack.c.l.b16 %v505
      %v839 = vunpack.c.h.b16 %v505
      %v840 = vunpack.c.l.b16 %v506
      %v841 = vunpack.c.h.b16 %v506
      %v842 = vunpack.c.l.b16 %v507
      %v843 = vunpack.c.h.b16 %v507
      %v844 = vunpack.c.l.b16 %v508
      %v845 = vunpack.c.h.b16 %v508
      %v846 = vunpack.c.l.b16 %v509
      %v847 = vunpack.c.h.b16 %v509
      %v848 = vunpack.c.l.b16 %v510
      %v849 = vunpack.c.h.b16 %v510
      %v850 = vunpack.c.l.b16 %v511
      %v851 = vunpack.c.h.b16 %v511
      %v852 = vunpack.c.l.b16 %v512
      %v853 = vunpack.c.h.b16 %v512
      %v854 = vunpack.c.l.b16 %v513
      %v855 = vunpack.c.h.b16 %v513
      %v856 = vunpack.c.l.b16 %v514
      %v857 = vunpack.c.h.b16 %v514
      %v858 = vunpack.c.l.b16 %v515
      %v859 = vunpack.c.h.b16 %v515
      %v860 = vunpack.c.l.b16 %v516
      %v861 = vunpack.c.h.b16 %v516
      %v862 = vunpack.c.l.b16 %v517
      %v863 = vunpack.c.h.b16 %v517
      %v864 = vunpack.c.l.b16 %v518
      %v865 = vunpack.c.h.b16 %v518
      %v866 = vunpack.c.l.b16 %v519
      %v867 = vunpack.c.h.b16 %v519
      %v868 = vunpack.c.l.b16 %v520
      %v869 = vunpack.c.h.b16 %v520
      %v870 = vunpack.c.l.b16 %v521
      %v871 = vunpack.c.h.b16 %v521
      %v872 = vunpack.c.l.b16 %v522
      %v873 = vunpack.c.h.b16 %v522
      %v874 = vunpack.c.l.b16 %v523
      %v875 = vunpack.c.h.b16 %v523
      %v876 = vunpack.c.l.b16 %v524
      %v877 = vunpack.c.h.b16 %v524
      %v878 = vunpack.c.l.b16 %v525
      %v879 = vunpack.c.h.b16 %v525
      %v880 = vunpack.c.l.b16 %v526
      %v881 = vunpack.c.h.b16 %v526
      %v882 = vunpack.c.l.b16 %v527
      %v883 = vunpack.c.h.b16 %v527
      %v884 = vunpack.c.l.b16 %v528
      %v885 = vunpack.c.h.b16 %v528
      %v886 = vunpack.c.l.b16 %v529
      %v887 = vunpack.c.h.b16 %v529
      %v888 = vunpack.c.l.b16 %v530
      %v889 = vunpack.c.h.b16 %v530
      %v890 = vunpack.c.l.b16 %v531
      %v891 = vunpack.c.h.b16 %v531
      %v892 = vunpack.c.l.b16 %v532
      %v893 = vunpack.c.h.b16 %v532
      %v894 = vunpack.c.l.b16 %v533
      %v895 = vunpack.c.h.b16 %v533
      %v896 = vunpack.c.l.b16 %v534
      %v897 = vunpack.c.h.b16 %v534
      %v898 = vunpack.c.l.b16 %v535
      %v899 = vunpack.c.h.b16 %v535
      %v900 = vunpack.c.l.b16 %v536
      %v901 = vunpack.c.h.b16 %v536
      %v902 = vunpack.c.l.b16 %v537
      %v903 = vunpack.c.h.b16 %v537
      %v904 = vunpack.c.l.b16 %v538
      %v905 = vunpack.c.h.b16 %v538
      %v906 = vunpack.c.l.b16 %v539
      %v907 = vunpack.c.h.b16 %v539
      %v908 = vunpack.c.l.b16 %v540
      %v909 = vunpack.c.h.b16 %v540
      %v910 = vunpack.c.l.b16 %v541
      %v911 = vunpack.c.h.b16 %v541
      %v912 = vunpack.c.l.b16 %v542
      %v913 = vunpack.c.h.b16 %v542
      %v914 = vunpack.c.l.b16 %v543
      %v915 = vunpack.c.h.b16 %v543
      %v916 = vunpack.c.l.b16 %v544
      %v917 = vunpack.c.h.b16 %v544
      %v918 = vunpack.c.l.b16 %v545
      %v919 = vunpack.c.h.b16 %v545
      %v920 = vunpack.c.l.b16 %v546
      %v921 = vunpack.c.h.b16 %v546
      %v922 = vunpack.c.l.b16 %v547
      %v923 = vunpack.c.h.b16 %v547
      %v924 = vunpack.c.l.b16 %v548
      %v925 = vunpack.c.h.b16 %v548
      %v926 = vunpack.c.l.b16 %v549
      %v927 = vunpack.c.h.b16 %v549
      %v928 = vunpack.c.l.b16 %v550
      %v929 = vunpack.c.h.b16 %v550
      %v930 = vunpack.c.l.b16 %v551
      %v931 = vunpack.c.h.b16 %v551
      %v932 = vunpack.c.l.b16 %v552
      %v933 = vunpack.c.h.b16 %v552
      %v934 = vunpack.c.l.b16 %v553
      %v935 = vunpack.c.h.b16 %v553
      %v936 = vunpack.c.l.b16 %v554
      %v937 = vunpack.c.h.b16 %v554
      %v938 = vunpack.c.l.b16 %v555
      %v939 = vunpack.c.h.b16 %v555
      %v940 = vunpack.c.l.b16 %v556
      %v941 = vunpack.c.h.b16 %v556
      %v942 = vunpack.c.l.b16 %v557
      %v943 = vunpack.c.h.b16 %v557
      %v944 = vunpack.c.l.b16 %v558
      %v945 = vunpack.c.h.b16 %v558
      %v946 = vunpack.c.l.b16 %v559
      %v947 = vunpack.c.h.b16 %v559
      %v948 = vunpack.c.l.b16 %v560
      %v949 = vunpack.c.h.b16 %v560
      %v950 = vunpack.c.l.b16 %v561
      %v951 = vunpack.c.h.b16 %v561
      %v952 = vunpack.c.l.b16 %v562
      %v953 = vunpack.c.h.b16 %v562
      %v954 = vunpack.c.l.b16 %v563
      %v955 = vunpack.c.h.b16 %v563
      %v956 = vunpack.c.l.b16 %v564
      %v957 = vunpack.c.h.b16 %v564
      %v958 = vunpack.c.l.b16 %v565
      %v959 = vunpack.c.h.b16 %v565
      %v960 = vunpack.c.l.b16 %v566
      %v961 = vunpack.c.h.b16 %v566
      %v962 = vunpack.c.l.b16 %v567
      %v963 = vunpack.c.h.b16 %v567
      %v964 = vunpack.c.l.b16 %v568
      %v965 = vunpack.c.h.b16 %v568
      %v966 = vunpack.c.l.b16 %v569
      %v967 = vunpack.c.h.b16 %v569
      %v968 = vunpack.c.l.b16 %v570
      %v969 = vunpack.c.h.b16 %v570
      %v970 = vunpack.c.l.b16 %v571
      %v971 = vunpack.c.h.b16 %v571
      %v972 = vunpack.c.l.b16 %v572
      %v973 = vunpack.c.h.b16 %v572
      %v974 = vunpack.c.l.b16 %v573
      %v975 = vunpack.c.h.b16 %v573
      %v976 = vunpack.c.l.b16 %v574
      %v977 = vunpack.c.h.b16 %v574
      %v978 = vunpack.c.l.b16 %v575
      %v979 = vunpack.c.h.b16 %v575
      %v980 = vunpack.c.l.b16 %v576
      %v981 = vunpack.c.h.b16 %v576
      %v982 = vunpack.c.l.b16 %v577
      %v983 = vunpack.c.h.b16 %v577
      %v984 = vunpack.c.l.b16 %v578
      %v985 = vunpack.c.h.b16 %v578
      %v986 = vunpack.c.l.b16 %v579
      %v987 = vunpack.c.h.b16 %v579
      %v988 = vunpack.c.l.b16 %v580
      %v989 = vunpack.c.h.b16 %v580
      %v990 = vunpack.c.l.b16 %v581
      %v991 = vunpack.c.h.b16 %v581
      %v992 = vunpack.c.l.b16 %v582
      %v993 = vunpack.c.h.b16 %v582
      %v994 = vunpack.c.l.b16 %v583
      %v995 = vunpack.c.h.b16 %v583
      %v996 = vunpack.c.l.b16 %v584
      %v997 = vunpack.c.h.b16 %v584
      %v998 = vunpack.c.l.b16 %v585
      %v999 = vunpack.c.h.b16 %v585
      %v1000 = vunpack.c.l.b16 %v586
      %v1001 = vunpack.c.h.b16 %v586
      %v1002 = vunpack.c.l.b16 %v587
      %v1003 = vunpack.c.h.b16 %v587
      %v1004 = vpack.c.b16 %v752, %v748
      %v1005 = vpack.c.b16 %v753, %v749
      %v1006 = vpack.c.b16 %v754, %v750
      %v1007 = vpack.c.b16 %v755, %v751
      %v1008 = vpack.c.b16 %v760, %v756
      %v1009 = vpack.c.b16 %v761, %v757
      %v1010 = vpack.c.b16 %v762, %v758
      %v1011 = vpack.c.b16 %v763, %v759
      %v1012 = vpack.c.b16 %v768, %v764
      %v1013 = vpack.c.b16 %v769, %v765
      %v1014 = vpack.c.b16 %v770, %v766
      %v1015 = vpack.c.b16 %v771, %v767
      %v1016 = vpack.c.b16 %v776, %v772
      %v1017 = vpack.c.b16 %v777, %v773
      %v1018 = vpack.c.b16 %v778, %v774
      %v1019 = vpack.c.b16 %v779, %v775
      %v1020 = vpack.c.b16 %v784, %v780
      %v1021 = vpack.c.b16 %v785, %v781
      %v1022 = vpack.c.b16 %v786, %v782
      %v1023 = vpack.c.b16 %v787, %v783
      %v1024 = vpack.c.b16 %v792, %v788
      %v1025 = vpack.c.b16 %v793, %v789
      %v1026 = vpack.c.b16 %v794, %v790
      %v1027 = vpack.c.b16 %v795, %v791
      %v1028 = vpack.c.b16 %v800, %v796
      %v1029 = vpack.c.b16 %v801, %v797
      %v1030 = vpack.c.b16 %v802, %v798
      %v1031 = vpack.c.b16 %v803, %v799
      %v1032 = vpack.c.b16 %v808, %v804
      %v1033 = vpack.c.b16 %v809, %v805
      %v1034 = vpack.c.b16 %v810, %v806
      %v1035 = vpack.c.b16 %v811, %v807
      %v1036 = vpack.c.b16 %v816, %v812
      %v1037 = vpack.c.b16 %v817, %v813
      %v1038 = vpack.c.b16 %v818, %v814
      %v1039 = vpack.c.b16 %v819, %v815
      %v1040 = vpack.c.b16 %v824, %v820
      %v1041 = vpack.c.b16 %v825, %v821
      %v1042 = vpack.c.b16 %v826, %v822
      %v1043 = vpack.c.b16 %v827, %v823
      %v1044 = vpack.c.b16 %v832, %v828
      %v1045 = vpack.c.b16 %v833, %v829
      %v1046 = vpack.c.b16 %v834, %v830
      %v1047 = vpack.c.b16 %v835, %v831
      %v1048 = vpack.c.b16 %v840, %v836
      %v1049 = vpack.c.b16 %v841, %v837
      %v1050 = vpack.c.b16 %v842, %v838
      %v1051 = vpack.c.b16 %v843, %v839
      %v1052 = vpack.c.b16 %v848, %v844
      %v1053 = vpack.c.b16 %v849, %v845
      %v1054 = vpack.c.b16 %v850, %v846
      %v1055 = vpack.c.b16 %v851, %v847
      %v1056 = vpack.c.b16 %v856, %v852
      %v1057 = vpack.c.b16 %v857, %v853
      %v1058 = vpack.c.b16 %v858, %v854
      %v1059 = vpack.c.b16 %v859, %v855
      %v1060 = vpack.c.b16 %v864, %v860
      %v1061 = vpack.c.b16 %v865, %v861
      %v1062 = vpack.c.b16 %v866, %v862
      %v1063 = vpack.c.b16 %v867, %v863
      %v1064 = vpack.c.b16 %v872, %v868
      %v1065 = vpack.c.b16 %v873, %v869
      %v1066 = vpack.c.b16 %v874, %v870
      %v1067 = vpack.c.b16 %v875, %v871
      %v1068 = vpack.c.b16 %v880, %v876
      %v1069 = vpack.c.b16 %v881, %v877
      %v1070 = vpack.c.b16 %v882, %v878
      %v1071 = vpack.c.b16 %v883, %v879
      %v1072 = vpack.c.b16 %v888, %v884
      %v1073 = vpack.c.b16 %v889, %v885
      %v1074 = vpack.c.b16 %v890, %v886
      %v1075 = vpack.c.b16 %v891, %v887
      %v1076 = vpack.c.b16 %v896, %v892
      %v1077 = vpack.c.b16 %v897, %v893
      %v1078 = vpack.c.b16 %v898, %v894
      %v1079 = vpack.c.b16 %v899, %v895
      %v1080 = vpack.c.b16 %v904, %v900
      %v1081 = vpack.c.b16 %v905, %v901
      %v1082 = vpack.c.b16 %v906, %v902
      %v1083 = vpack.c.b16 %v907, %v903
      %v1084 = vpack.c.b16 %v912, %v908
      %v1085 = vpack.c.b16 %v913, %v909
      %v1086 = vpack.c.b16 %v914, %v910
      %v1087 = vpack.c.b16 %v915, %v911
      %v1088 = vpack.c.b16 %v920, %v916
      %v1089 = vpack.c.b16 %v921, %v917
      %v1090 = vpack.c.b16 %v922, %v918
      %v1091 = vpack.c.b16 %v923, %v919
      %v1092 = vpack.c.b16 %v928, %v924
      %v1093 = vpack.c.b16 %v929, %v925
      %v1094 = vpack.c.b16 %v930, %v926
      %v1095 = vpack.c.b16 %v931, %v927
      %v1096 = vpack.c.b16 %v936, %v932
      %v1097 = vpack.c.b16 %v937, %v933
      %v1098 = vpack.c.b16 %v938, %v934
      %v1099 = vpack.c.b16 %v939, %v935
      %v1100 = vpack.c.b16 %v944, %v940
      %v1101 = vpack.c.b16 %v945, %v941
      %v1102 = vpack.c.b16 %v946, %v942
      %v1103 = vpack.c.b16 %v947, %v943
      %v1104 = vpack.c.b16 %v952, %v948
      %v1105 = vpack.c.b16 %v953, %v949
      %v1106 = vpack.c.b16 %v954, %v950
      %v1107 = vpack.c.b16 %v955, %v951
      %v1108 = vpack.c.b16 %v960, %v956
      %v1109 = vpack.c.b16 %v961, %v957
      %v1110 = vpack.c.b16 %v962, %v958
      %v1111 = vpack.c.b16 %v963, %v959
      %v1112 = vpack.c.b16 %v968, %v964
      %v1113 = vpack.c.b16 %v969, %v965
      %v1114 = vpack.c.b16 %v970, %v966
      %v1115 = vpack.c.b16 %v971, %v967
      %v1116 = vpack.c.b16 %v976, %v972
      %v1117 = vpack.c.b16 %v977, %v973
      %v1118 = vpack.c.b16 %v978, %v974
      %v1119 = vpack.c.b16 %v979, %v975
      %v1120 = vpack.c.b16 %v984, %v980
      %v1121 = vpack.c.b16 %v985, %v981
      %v1122 = vpack.c.b16 %v986, %v982
      %v1123 = vpack.c.b16 %v987, %v983
      %v1124 = vpack.c.b16 %v992, %v988
      %v1125 = vpack.c.b16 %v993, %v989
      %v1126 = vpack.c.b16 %v994, %v990
      %v1127 = vpack.c.b16 %v995, %v991
      %v1128 = vpack.c.b16 %v1000, %v996
      %v1129 = vpack.c.b16 %v1001, %v997
      %v1130 = vpack.c.b16 %v1002, %v998
      %v1131 = vpack.c.b16 %v1003, %v999
      %1260 = vmatpush.bf16.msra.mxu0 %v1032
      %1261 = vmatpush.bf16.msra.mxu0 %v1028
      %1262 = vmatpush.bf16.msra.mxu0 %v1024
      %1263 = vmatpush.bf16.msra.mxu0 %v1020
      %1264 = vmatpush.bf16.msra.mxu0 %v1016
      %1265 = vmatpush.bf16.msra.mxu0 %v1012
      %1266 = vmatpush.bf16.msra.mxu0 %v1008
      %1267 = vmatpush.bf16.msra.mxu0 %v1004
      %1268 = vmatmul.bf16.gmra.mxu0 %v594
      %v1269 = vpop.f32.mrf.mxu0
      %v1270 = vadd.f32 0.0, %v1269
      %v1271 = vpop.f32.mrf.mxu0
      %1272 = vdwg.mxu0
      %1273 = vmatpush.bf16.msra.mxu0 %v1064
      %1274 = vmatpush.bf16.msra.mxu0 %v1060
      %1275 = vmatpush.bf16.msra.mxu0 %v1056
      %1276 = vmatpush.bf16.msra.mxu0 %v1052
      %1277 = vmatpush.bf16.msra.mxu0 %v1048
      %1278 = vmatpush.bf16.msra.mxu0 %v1044
      %1279 = vmatpush.bf16.msra.mxu0 %v1040
      %1280 = vmatpush.bf16.msra.mxu0 %v1036
      %1281 = vmatmul.bf16.gmra.mxu0 %v601
      %v1282 = vpop.f32.mrf.mxu0
      %v1283 = vadd.f32 %v1270, %v1282
      %v1284 = vpop.f32.mrf.mxu0
      %1285 = vdwg.mxu0
      %1286 = vmatpush.bf16.msra.mxu0 %v1096
      %1287 = vmatpush.bf16.msra.mxu0 %v1092
      %1288 = vmatpush.bf16.msra.mxu0 %v1088
      %1289 = vmatpush.bf16.msra.mxu0 %v1084
      %1290 = vmatpush.bf16.msra.mxu0 %v1080
      %1291 = vmatpush.bf16.msra.mxu0 %v1076
      %1292 = vmatpush.bf16.msra.mxu0 %v1072
      %1293 = vmatpush.bf16.msra.mxu0 %v1068
      %1294 = vmatmul.bf16.gmra.mxu0 %v608
      %v1295 = vpop.f32.mrf.mxu0
      %v1296 = vadd.f32 %v1283, %v1295
      %v1297 = vpop.f32.mrf.mxu0
      %1298 = vdwg.mxu0
      %1299 = vmatpush.bf16.msra.mxu0 %v1128
      %1300 = vmatpush.bf16.msra.mxu0 %v1124
      %1301 = vmatpush.bf16.msra.mxu0 %v1120
      %1302 = vmatpush.bf16.msra.mxu0 %v1116
      %1303 = vmatpush.bf16.msra.mxu0 %v1112
      %1304 = vmatpush.bf16.msra.mxu0 %v1108
      %1305 = vmatpush.bf16.msra.mxu0 %v1104
      %1306 = vmatpush.bf16.msra.mxu0 %v1100
      %1307 = vmatmul.bf16.gmra.mxu0 %v615
      %v1308 = vpop.f32.mrf.mxu0
      %v1309 = vadd.f32 %v1296, %v1308
      %v1310 = vpop.f32.mrf.mxu0
      %1311 = vdwg.mxu0
      %1312 = vmatpush.bf16.msra.mxu0 %v1033
      %1313 = vmatpush.bf16.msra.mxu0 %v1029
      %1314 = vmatpush.bf16.msra.mxu0 %v1025
      %1315 = vmatpush.bf16.msra.mxu0 %v1021
      %1316 = vmatpush.bf16.msra.mxu0 %v1017
      %1317 = vmatpush.bf16.msra.mxu0 %v1013
      %1318 = vmatpush.bf16.msra.mxu0 %v1009
      %1319 = vmatpush.bf16.msra.mxu0 %v1005
      %1320 = vmatmul.bf16.gmra.mxu0 %v594
      %v1321 = vpop.f32.mrf.mxu0
      %v1322 = vadd.f32 0.0, %v1321
      %v1323 = vpop.f32.mrf.mxu0
      %1324 = vdwg.mxu0
      %1325 = vmatpush.bf16.msra.mxu0 %v1065
      %1326 = vmatpush.bf16.msra.mxu0 %v1061
      %1327 = vmatpush.bf16.msra.mxu0 %v1057
      %1328 = vmatpush.bf16.msra.mxu0 %v1053
      %1329 = vmatpush.bf16.msra.mxu0 %v1049
      %1330 = vmatpush.bf16.msra.mxu0 %v1045
      %1331 = vmatpush.bf16.msra.mxu0 %v1041
      %1332 = vmatpush.bf16.msra.mxu0 %v1037
      %1333 = vmatmul.bf16.gmra.mxu0 %v601
      %v1334 = vpop.f32.mrf.mxu0
      %v1335 = vadd.f32 %v1322, %v1334
      %v1336 = vpop.f32.mrf.mxu0
      %1337 = vdwg.mxu0
      %1338 = vmatpush.bf16.msra.mxu0 %v1097
      %1339 = vmatpush.bf16.msra.mxu0 %v1093
      %1340 = vmatpush.bf16.msra.mxu0 %v1089
      %1341 = vmatpush.bf16.msra.mxu0 %v1085
      %1342 = vmatpush.bf16.msra.mxu0 %v1081
      %1343 = vmatpush.bf16.msra.mxu0 %v1077
      %1344 = vmatpush.bf16.msra.mxu0 %v1073
      %1345 = vmatpush.bf16.msra.mxu0 %v1069
      %1346 = vmatmul.bf16.gmra.mxu0 %v608
      %v1347 = vpop.f32.mrf.mxu0
      %v1348 = vadd.f32 %v1335, %v1347
      %v1349 = vpop.f32.mrf.mxu0
      %1350 = vdwg.mxu0
      %1351 = vmatpush.bf16.msra.mxu0 %v1129
      %1352 = vmatpush.bf16.msra.mxu0 %v1125
      %1353 = vmatpush.bf16.msra.mxu0 %v1121
      %1354 = vmatpush.bf16.msra.mxu0 %v1117
      %1355 = vmatpush.bf16.msra.mxu0 %v1113
      %1356 = vmatpush.bf16.msra.mxu0 %v1109
      %1357 = vmatpush.bf16.msra.mxu0 %v1105
      %1358 = vmatpush.bf16.msra.mxu0 %v1101
      %1359 = vmatmul.bf16.gmra.mxu0 %v615
      %v1360 = vpop.f32.mrf.mxu0
      %v1361 = vadd.f32 %v1348, %v1360
      %v1362 = vpop.f32.mrf.mxu0
      %1363 = vdwg.mxu0
      %1364 = vmatpush.bf16.msra.mxu0 %v1034
      %1365 = vmatpush.bf16.msra.mxu0 %v1030
      %1366 = vmatpush.bf16.msra.mxu0 %v1026
      %1367 = vmatpush.bf16.msra.mxu0 %v1022
      %1368 = vmatpush.bf16.msra.mxu0 %v1018
      %1369 = vmatpush.bf16.msra.mxu0 %v1014
      %1370 = vmatpush.bf16.msra.mxu0 %v1010
      %1371 = vmatpush.bf16.msra.mxu0 %v1006
      %1372 = vmatmul.bf16.gmra.mxu0 %v594
      %v1373 = vpop.f32.mrf.mxu0
      %v1374 = vadd.f32 0.0, %v1373
      %v1375 = vpop.f32.mrf.mxu0
      %1376 = vdwg.mxu0
      %1377 = vmatpush.bf16.msra.mxu0 %v1066
      %1378 = vmatpush.bf16.msra.mxu0 %v1062
      %1379 = vmatpush.bf16.msra.mxu0 %v1058
      %1380 = vmatpush.bf16.msra.mxu0 %v1054
      %1381 = vmatpush.bf16.msra.mxu0 %v1050
      %1382 = vmatpush.bf16.msra.mxu0 %v1046
      %1383 = vmatpush.bf16.msra.mxu0 %v1042
      %1384 = vmatpush.bf16.msra.mxu0 %v1038
      %1385 = vmatmul.bf16.gmra.mxu0 %v601
      %v1386 = vpop.f32.mrf.mxu0
      %v1387 = vadd.f32 %v1374, %v1386
      %v1388 = vpop.f32.mrf.mxu0
      %1389 = vdwg.mxu0
      %1390 = vmatpush.bf16.msra.mxu0 %v1098
      %1391 = vmatpush.bf16.msra.mxu0 %v1094
      %1392 = vmatpush.bf16.msra.mxu0 %v1090
      %1393 = vmatpush.bf16.msra.mxu0 %v1086
      %1394 = vmatpush.bf16.msra.mxu0 %v1082
      %1395 = vmatpush.bf16.msra.mxu0 %v1078
      %1396 = vmatpush.bf16.msra.mxu0 %v1074
      %1397 = vmatpush.bf16.msra.mxu0 %v1070
      %1398 = vmatmul.bf16.gmra.mxu0 %v608
      %v1399 = vpop.f32.mrf.mxu0
      %v1400 = vadd.f32 %v1387, %v1399
      %v1401 = vpop.f32.mrf.mxu0
      %1402 = vdwg.mxu0
      %1403 = vmatpush.bf16.msra.mxu0 %v1130
      %1404 = vmatpush.bf16.msra.mxu0 %v1126
      %1405 = vmatpush.bf16.msra.mxu0 %v1122
      %1406 = vmatpush.bf16.msra.mxu0 %v1118
      %1407 = vmatpush.bf16.msra.mxu0 %v1114
      %1408 = vmatpush.bf16.msra.mxu0 %v1110
      %1409 = vmatpush.bf16.msra.mxu0 %v1106
      %1410 = vmatpush.bf16.msra.mxu0 %v1102
      %1411 = vmatmul.bf16.gmra.mxu0 %v615
      %v1412 = vpop.f32.mrf.mxu0
      %v1413 = vadd.f32 %v1400, %v1412
      %v1414 = vpop.f32.mrf.mxu0
      %1415 = vdwg.mxu0
      %1416 = vmatpush.bf16.msra.mxu0 %v1035
      %1417 = vmatpush.bf16.msra.mxu0 %v1031
      %1418 = vmatpush.bf16.msra.mxu0 %v1027
      %1419 = vmatpush.bf16.msra.mxu0 %v1023
      %1420 = vmatpush.bf16.msra.mxu0 %v1019
      %1421 = vmatpush.bf16.msra.mxu0 %v1015
      %1422 = vmatpush.bf16.msra.mxu0 %v1011
      %1423 = vmatpush.bf16.msra.mxu0 %v1007
      %1424 = vmatmul.bf16.gmra.mxu0 %v594
      %v1425 = vpop.f32.mrf.mxu0
      %v1426 = vadd.f32 0.0, %v1425
      %v1427 = vpop.f32.mrf.mxu0
      %1428 = vdwg.mxu0
      %1429 = vmatpush.bf16.msra.mxu0 %v1067
      %1430 = vmatpush.bf16.msra.mxu0 %v1063
      %1431 = vmatpush.bf16.msra.mxu0 %v1059
      %1432 = vmatpush.bf16.msra.mxu0 %v1055
      %1433 = vmatpush.bf16.msra.mxu0 %v1051
      %1434 = vmatpush.bf16.msra.mxu0 %v1047
      %1435 = vmatpush.bf16.msra.mxu0 %v1043
      %1436 = vmatpush.bf16.msra.mxu0 %v1039
      %1437 = vmatmul.bf16.gmra.mxu0 %v601
      %v1438 = vpop.f32.mrf.mxu0
      %v1439 = vadd.f32 %v1426, %v1438
      %v1440 = vpop.f32.mrf.mxu0
      %1441 = vdwg.mxu0
      %1442 = vmatpush.bf16.msra.mxu0 %v1099
      %1443 = vmatpush.bf16.msra.mxu0 %v1095
      %1444 = vmatpush.bf16.msra.mxu0 %v1091
      %1445 = vmatpush.bf16.msra.mxu0 %v1087
      %1446 = vmatpush.bf16.msra.mxu0 %v1083
      %1447 = vmatpush.bf16.msra.mxu0 %v1079
      %1448 = vmatpush.bf16.msra.mxu0 %v1075
      %1449 = vmatpush.bf16.msra.mxu0 %v1071
      %1450 = vmatmul.bf16.gmra.mxu0 %v608
      %v1451 = vpop.f32.mrf.mxu0
      %v1452 = vadd.f32 %v1439, %v1451
      %v1453 = vpop.f32.mrf.mxu0
      %1454 = vdwg.mxu0
      %1455 = vmatpush.bf16.msra.mxu0 %v1131
      %1456 = vmatpush.bf16.msra.mxu0 %v1127
      %1457 = vmatpush.bf16.msra.mxu0 %v1123
      %1458 = vmatpush.bf16.msra.mxu0 %v1119
      %1459 = vmatpush.bf16.msra.mxu0 %v1115
      %1460 = vmatpush.bf16.msra.mxu0 %v1111
      %1461 = vmatpush.bf16.msra.mxu0 %v1107
      %1462 = vmatpush.bf16.msra.mxu0 %v1103
      %1463 = vmatmul.bf16.gmra.mxu0 %v615
      %v1464 = vpop.f32.mrf.mxu0
      %v1465 = vadd.f32 %v1452, %v1464
      %v1466 = vpop.f32.mrf.mxu0
      %1467 = vdwg.mxu0
      %v1596 = vunpack.c.l.b16 %v319
      %v1597 = vunpack.c.h.b16 %v319
      %v1598 = vunpack.c.l.b16 %v320
      %v1599 = vunpack.c.h.b16 %v320
      %v1600 = vunpack.c.l.b16 %v321
      %v1601 = vunpack.c.h.b16 %v321
      %v1602 = vunpack.c.l.b16 %v322
      %v1603 = vunpack.c.h.b16 %v322
      %v1604 = vunpack.c.l.b16 %v323
      %v1605 = vunpack.c.h.b16 %v323
      %v1606 = vunpack.c.l.b16 %v324
      %v1607 = vunpack.c.h.b16 %v324
      %v1608 = vunpack.c.l.b16 %v325
      %v1609 = vunpack.c.h.b16 %v325
      %v1610 = vunpack.c.l.b16 %v326
      %v1611 = vunpack.c.h.b16 %v326
      %v1612 = vunpack.c.l.b16 %v327
      %v1613 = vunpack.c.h.b16 %v327
      %v1614 = vunpack.c.l.b16 %v328
      %v1615 = vunpack.c.h.b16 %v328
      %v1616 = vunpack.c.l.b16 %v329
      %v1617 = vunpack.c.h.b16 %v329
      %v1618 = vunpack.c.l.b16 %v330
      %v1619 = vunpack.c.h.b16 %v330
      %v1620 = vunpack.c.l.b16 %v331
      %v1621 = vunpack.c.h.b16 %v331
      %v1622 = vunpack.c.l.b16 %v332
      %v1623 = vunpack.c.h.b16 %v332
      %v1624 = vunpack.c.l.b16 %v333
      %v1625 = vunpack.c.h.b16 %v333
      %v1626 = vunpack.c.l.b16 %v334
      %v1627 = vunpack.c.h.b16 %v334
      %v1628 = vunpack.c.l.b16 %v335
      %v1629 = vunpack.c.h.b16 %v335
      %v1630 = vunpack.c.l.b16 %v336
      %v1631 = vunpack.c.h.b16 %v336
      %v1632 = vunpack.c.l.b16 %v337
      %v1633 = vunpack.c.h.b16 %v337
      %v1634 = vunpack.c.l.b16 %v338
      %v1635 = vunpack.c.h.b16 %v338
      %v1636 = vunpack.c.l.b16 %v339
      %v1637 = vunpack.c.h.b16 %v339
      %v1638 = vunpack.c.l.b16 %v340
      %v1639 = vunpack.c.h.b16 %v340
      %v1640 = vunpack.c.l.b16 %v341
      %v1641 = vunpack.c.h.b16 %v341
      %v1642 = vunpack.c.l.b16 %v342
      %v1643 = vunpack.c.h.b16 %v342
      %v1644 = vunpack.c.l.b16 %v343
      %v1645 = vunpack.c.h.b16 %v343
      %v1646 = vunpack.c.l.b16 %v344
      %v1647 = vunpack.c.h.b16 %v344
      %v1648 = vunpack.c.l.b16 %v345
      %v1649 = vunpack.c.h.b16 %v345
      %v1650 = vunpack.c.l.b16 %v346
      %v1651 = vunpack.c.h.b16 %v346
      %v1652 = vunpack.c.l.b16 %v347
      %v1653 = vunpack.c.h.b16 %v347
      %v1654 = vunpack.c.l.b16 %v348
      %v1655 = vunpack.c.h.b16 %v348
      %v1656 = vunpack.c.l.b16 %v349
      %v1657 = vunpack.c.h.b16 %v349
      %v1658 = vunpack.c.l.b16 %v350
      %v1659 = vunpack.c.h.b16 %v350
      %v1660 = vunpack.c.l.b16 %v351
      %v1661 = vunpack.c.h.b16 %v351
      %v1662 = vunpack.c.l.b16 %v352
      %v1663 = vunpack.c.h.b16 %v352
      %v1664 = vunpack.c.l.b16 %v353
      %v1665 = vunpack.c.h.b16 %v353
      %v1666 = vunpack.c.l.b16 %v354
      %v1667 = vunpack.c.h.b16 %v354
      %v1668 = vunpack.c.l.b16 %v355
      %v1669 = vunpack.c.h.b16 %v355
      %v1670 = vunpack.c.l.b16 %v356
      %v1671 = vunpack.c.h.b16 %v356
      %v1672 = vunpack.c.l.b16 %v357
      %v1673 = vunpack.c.h.b16 %v357
      %v1674 = vunpack.c.l.b16 %v358
      %v1675 = vunpack.c.h.b16 %v358
      %v1676 = vunpack.c.l.b16 %v359
      %v1677 = vunpack.c.h.b16 %v359
      %v1678 = vunpack.c.l.b16 %v360
      %v1679 = vunpack.c.h.b16 %v360
      %v1680 = vunpack.c.l.b16 %v361
      %v1681 = vunpack.c.h.b16 %v361
      %v1682 = vunpack.c.l.b16 %v362
      %v1683 = vunpack.c.h.b16 %v362
      %v1684 = vunpack.c.l.b16 %v363
      %v1685 = vunpack.c.h.b16 %v363
      %v1686 = vunpack.c.l.b16 %v364
      %v1687 = vunpack.c.h.b16 %v364
      %v1688 = vunpack.c.l.b16 %v365
      %v1689 = vunpack.c.h.b16 %v365
      %v1690 = vunpack.c.l.b16 %v366
      %v1691 = vunpack.c.h.b16 %v366
      %v1692 = vunpack.c.l.b16 %v367
      %v1693 = vunpack.c.h.b16 %v367
      %v1694 = vunpack.c.l.b16 %v368
      %v1695 = vunpack.c.h.b16 %v368
      %v1696 = vunpack.c.l.b16 %v369
      %v1697 = vunpack.c.h.b16 %v369
      %v1698 = vunpack.c.l.b16 %v370
      %v1699 = vunpack.c.h.b16 %v370
      %v1700 = vunpack.c.l.b16 %v371
      %v1701 = vunpack.c.h.b16 %v371
      %v1702 = vunpack.c.l.b16 %v372
      %v1703 = vunpack.c.h.b16 %v372
      %v1704 = vunpack.c.l.b16 %v373
      %v1705 = vunpack.c.h.b16 %v373
      %v1706 = vunpack.c.l.b16 %v374
      %v1707 = vunpack.c.h.b16 %v374
      %v1708 = vunpack.c.l.b16 %v375
      %v1709 = vunpack.c.h.b16 %v375
      %v1710 = vunpack.c.l.b16 %v376
      %v1711 = vunpack.c.h.b16 %v376
      %v1712 = vunpack.c.l.b16 %v377
      %v1713 = vunpack.c.h.b16 %v377
      %v1714 = vunpack.c.l.b16 %v378
      %v1715 = vunpack.c.h.b16 %v378
      %v1716 = vunpack.c.l.b16 %v379
      %v1717 = vunpack.c.h.b16 %v379
      %v1718 = vunpack.c.l.b16 %v380
      %v1719 = vunpack.c.h.b16 %v380
      %v1720 = vunpack.c.l.b16 %v381
      %v1721 = vunpack.c.h.b16 %v381
      %v1722 = vunpack.c.l.b16 %v382
      %v1723 = vunpack.c.h.b16 %v382
      %v1724 = vunpack.c.l.b16 %v383
      %v1725 = vunpack.c.h.b16 %v383
      %v1726 = vunpack.c.l.b16 %v384
      %v1727 = vunpack.c.h.b16 %v384
      %v1728 = vunpack.c.l.b16 %v385
      %v1729 = vunpack.c.h.b16 %v385
      %v1730 = vunpack.c.l.b16 %v386
      %v1731 = vunpack.c.h.b16 %v386
      %v1732 = vunpack.c.l.b16 %v387
      %v1733 = vunpack.c.h.b16 %v387
      %v1734 = vunpack.c.l.b16 %v388
      %v1735 = vunpack.c.h.b16 %v388
      %v1736 = vunpack.c.l.b16 %v389
      %v1737 = vunpack.c.h.b16 %v389
      %v1738 = vunpack.c.l.b16 %v390
      %v1739 = vunpack.c.h.b16 %v390
      %v1740 = vunpack.c.l.b16 %v391
      %v1741 = vunpack.c.h.b16 %v391
      %v1742 = vunpack.c.l.b16 %v392
      %v1743 = vunpack.c.h.b16 %v392
      %v1744 = vunpack.c.l.b16 %v393
      %v1745 = vunpack.c.h.b16 %v393
      %v1746 = vunpack.c.l.b16 %v394
      %v1747 = vunpack.c.h.b16 %v394
      %v1748 = vunpack.c.l.b16 %v395
      %v1749 = vunpack.c.h.b16 %v395
      %v1750 = vunpack.c.l.b16 %v396
      %v1751 = vunpack.c.h.b16 %v396
      %v1752 = vunpack.c.l.b16 %v397
      %v1753 = vunpack.c.h.b16 %v397
      %v1754 = vunpack.c.l.b16 %v398
      %v1755 = vunpack.c.h.b16 %v398
      %v1756 = vunpack.c.l.b16 %v399
      %v1757 = vunpack.c.h.b16 %v399
      %v1758 = vunpack.c.l.b16 %v400
      %v1759 = vunpack.c.h.b16 %v400
      %v1760 = vunpack.c.l.b16 %v401
      %v1761 = vunpack.c.h.b16 %v401
      %v1762 = vunpack.c.l.b16 %v402
      %v1763 = vunpack.c.h.b16 %v402
      %v1764 = vunpack.c.l.b16 %v403
      %v1765 = vunpack.c.h.b16 %v403
      %v1766 = vunpack.c.l.b16 %v404
      %v1767 = vunpack.c.h.b16 %v404
      %v1768 = vunpack.c.l.b16 %v405
      %v1769 = vunpack.c.h.b16 %v405
      %v1770 = vunpack.c.l.b16 %v406
      %v1771 = vunpack.c.h.b16 %v406
      %v1772 = vunpack.c.l.b16 %v407
      %v1773 = vunpack.c.h.b16 %v407
      %v1774 = vunpack.c.l.b16 %v408
      %v1775 = vunpack.c.h.b16 %v408
      %v1776 = vunpack.c.l.b16 %v409
      %v1777 = vunpack.c.h.b16 %v409
      %v1778 = vunpack.c.l.b16 %v410
      %v1779 = vunpack.c.h.b16 %v410
      %v1780 = vunpack.c.l.b16 %v411
      %v1781 = vunpack.c.h.b16 %v411
      %v1782 = vunpack.c.l.b16 %v412
      %v1783 = vunpack.c.h.b16 %v412
      %v1784 = vunpack.c.l.b16 %v413
      %v1785 = vunpack.c.h.b16 %v413
      %v1786 = vunpack.c.l.b16 %v414
      %v1787 = vunpack.c.h.b16 %v414
      %v1788 = vunpack.c.l.b16 %v415
      %v1789 = vunpack.c.h.b16 %v415
      %v1790 = vunpack.c.l.b16 %v416
      %v1791 = vunpack.c.h.b16 %v416
      %v1792 = vunpack.c.l.b16 %v417
      %v1793 = vunpack.c.h.b16 %v417
      %v1794 = vunpack.c.l.b16 %v418
      %v1795 = vunpack.c.h.b16 %v418
      %v1796 = vunpack.c.l.b16 %v419
      %v1797 = vunpack.c.h.b16 %v419
      %v1798 = vunpack.c.l.b16 %v420
      %v1799 = vunpack.c.h.b16 %v420
      %v1800 = vunpack.c.l.b16 %v421
      %v1801 = vunpack.c.h.b16 %v421
      %v1802 = vunpack.c.l.b16 %v422
      %v1803 = vunpack.c.h.b16 %v422
      %v1804 = vunpack.c.l.b16 %v423
      %v1805 = vunpack.c.h.b16 %v423
      %v1806 = vunpack.c.l.b16 %v424
      %v1807 = vunpack.c.h.b16 %v424
      %v1808 = vunpack.c.l.b16 %v425
      %v1809 = vunpack.c.h.b16 %v425
      %v1810 = vunpack.c.l.b16 %v426
      %v1811 = vunpack.c.h.b16 %v426
      %v1812 = vunpack.c.l.b16 %v427
      %v1813 = vunpack.c.h.b16 %v427
      %v1814 = vunpack.c.l.b16 %v428
      %v1815 = vunpack.c.h.b16 %v428
      %v1816 = vunpack.c.l.b16 %v429
      %v1817 = vunpack.c.h.b16 %v429
      %v1818 = vunpack.c.l.b16 %v430
      %v1819 = vunpack.c.h.b16 %v430
      %v1820 = vunpack.c.l.b16 %v431
      %v1821 = vunpack.c.h.b16 %v431
      %v1822 = vunpack.c.l.b16 %v432
      %v1823 = vunpack.c.h.b16 %v432
      %v1824 = vunpack.c.l.b16 %v433
      %v1825 = vunpack.c.h.b16 %v433
      %v1826 = vunpack.c.l.b16 %v434
      %v1827 = vunpack.c.h.b16 %v434
      %v1828 = vunpack.c.l.b16 %v435
      %v1829 = vunpack.c.h.b16 %v435
      %v1830 = vunpack.c.l.b16 %v436
      %v1831 = vunpack.c.h.b16 %v436
      %v1832 = vunpack.c.l.b16 %v437
      %v1833 = vunpack.c.h.b16 %v437
      %v1834 = vunpack.c.l.b16 %v438
      %v1835 = vunpack.c.h.b16 %v438
      %v1836 = vunpack.c.l.b16 %v439
      %v1837 = vunpack.c.h.b16 %v439
      %v1838 = vunpack.c.l.b16 %v440
      %v1839 = vunpack.c.h.b16 %v440
      %v1840 = vunpack.c.l.b16 %v441
      %v1841 = vunpack.c.h.b16 %v441
      %v1842 = vunpack.c.l.b16 %v442
      %v1843 = vunpack.c.h.b16 %v442
      %v1844 = vunpack.c.l.b16 %v443
      %v1845 = vunpack.c.h.b16 %v443
      %v1846 = vunpack.c.l.b16 %v444
      %v1847 = vunpack.c.h.b16 %v444
      %v1848 = vunpack.c.l.b16 %v445
      %v1849 = vunpack.c.h.b16 %v445
      %v1850 = vunpack.c.l.b16 %v446
      %v1851 = vunpack.c.h.b16 %v446
      %v1852 = vpack.c.b16 %v1600, %v1596
      %v1853 = vpack.c.b16 %v1601, %v1597
      %v1854 = vpack.c.b16 %v1602, %v1598
      %v1855 = vpack.c.b16 %v1603, %v1599
      %v1856 = vpack.c.b16 %v1608, %v1604
      %v1857 = vpack.c.b16 %v1609, %v1605
      %v1858 = vpack.c.b16 %v1610, %v1606
      %v1859 = vpack.c.b16 %v1611, %v1607
      %v1860 = vpack.c.b16 %v1616, %v1612
      %v1861 = vpack.c.b16 %v1617, %v1613
      %v1862 = vpack.c.b16 %v1618, %v1614
      %v1863 = vpack.c.b16 %v1619, %v1615
      %v1864 = vpack.c.b16 %v1624, %v1620
      %v1865 = vpack.c.b16 %v1625, %v1621
      %v1866 = vpack.c.b16 %v1626, %v1622
      %v1867 = vpack.c.b16 %v1627, %v1623
      %v1868 = vpack.c.b16 %v1632, %v1628
      %v1869 = vpack.c.b16 %v1633, %v1629
      %v1870 = vpack.c.b16 %v1634, %v1630
      %v1871 = vpack.c.b16 %v1635, %v1631
      %v1872 = vpack.c.b16 %v1640, %v1636
      %v1873 = vpack.c.b16 %v1641, %v1637
      %v1874 = vpack.c.b16 %v1642, %v1638
      %v1875 = vpack.c.b16 %v1643, %v1639
      %v1876 = vpack.c.b16 %v1648, %v1644
      %v1877 = vpack.c.b16 %v1649, %v1645
      %v1878 = vpack.c.b16 %v1650, %v1646
      %v1879 = vpack.c.b16 %v1651, %v1647
      %v1880 = vpack.c.b16 %v1656, %v1652
      %v1881 = vpack.c.b16 %v1657, %v1653
      %v1882 = vpack.c.b16 %v1658, %v1654
      %v1883 = vpack.c.b16 %v1659, %v1655
      %v1884 = vpack.c.b16 %v1664, %v1660
      %v1885 = vpack.c.b16 %v1665, %v1661
      %v1886 = vpack.c.b16 %v1666, %v1662
      %v1887 = vpack.c.b16 %v1667, %v1663
      %v1888 = vpack.c.b16 %v1672, %v1668
      %v1889 = vpack.c.b16 %v1673, %v1669
      %v1890 = vpack.c.b16 %v1674, %v1670
      %v1891 = vpack.c.b16 %v1675, %v1671
      %v1892 = vpack.c.b16 %v1680, %v1676
      %v1893 = vpack.c.b16 %v1681, %v1677
      %v1894 = vpack.c.b16 %v1682, %v1678
      %v1895 = vpack.c.b16 %v1683, %v1679
      %v1896 = vpack.c.b16 %v1688, %v1684
      %v1897 = vpack.c.b16 %v1689, %v1685
      %v1898 = vpack.c.b16 %v1690, %v1686
      %v1899 = vpack.c.b16 %v1691, %v1687
      %v1900 = vpack.c.b16 %v1696, %v1692
      %v1901 = vpack.c.b16 %v1697, %v1693
      %v1902 = vpack.c.b16 %v1698, %v1694
      %v1903 = vpack.c.b16 %v1699, %v1695
      %v1904 = vpack.c.b16 %v1704, %v1700
      %v1905 = vpack.c.b16 %v1705, %v1701
      %v1906 = vpack.c.b16 %v1706, %v1702
      %v1907 = vpack.c.b16 %v1707, %v1703
      %v1908 = vpack.c.b16 %v1712, %v1708
      %v1909 = vpack.c.b16 %v1713, %v1709
      %v1910 = vpack.c.b16 %v1714, %v1710
      %v1911 = vpack.c.b16 %v1715, %v1711
      %v1912 = vpack.c.b16 %v1720, %v1716
      %v1913 = vpack.c.b16 %v1721, %v1717
      %v1914 = vpack.c.b16 %v1722, %v1718
      %v1915 = vpack.c.b16 %v1723, %v1719
      %v1916 = vpack.c.b16 %v1728, %v1724
      %v1917 = vpack.c.b16 %v1729, %v1725
      %v1918 = vpack.c.b16 %v1730, %v1726
      %v1919 = vpack.c.b16 %v1731, %v1727
      %v1920 = vpack.c.b16 %v1736, %v1732
      %v1921 = vpack.c.b16 %v1737, %v1733
      %v1922 = vpack.c.b16 %v1738, %v1734
      %v1923 = vpack.c.b16 %v1739, %v1735
      %v1924 = vpack.c.b16 %v1744, %v1740
      %v1925 = vpack.c.b16 %v1745, %v1741
      %v1926 = vpack.c.b16 %v1746, %v1742
      %v1927 = vpack.c.b16 %v1747, %v1743
      %v1928 = vpack.c.b16 %v1752, %v1748
      %v1929 = vpack.c.b16 %v1753, %v1749
      %v1930 = vpack.c.b16 %v1754, %v1750
      %v1931 = vpack.c.b16 %v1755, %v1751
      %v1932 = vpack.c.b16 %v1760, %v1756
      %v1933 = vpack.c.b16 %v1761, %v1757
      %v1934 = vpack.c.b16 %v1762, %v1758
      %v1935 = vpack.c.b16 %v1763, %v1759
      %v1936 = vpack.c.b16 %v1768, %v1764
      %v1937 = vpack.c.b16 %v1769, %v1765
      %v1938 = vpack.c.b16 %v1770, %v1766
      %v1939 = vpack.c.b16 %v1771, %v1767
      %v1940 = vpack.c.b16 %v1776, %v1772
      %v1941 = vpack.c.b16 %v1777, %v1773
      %v1942 = vpack.c.b16 %v1778, %v1774
      %v1943 = vpack.c.b16 %v1779, %v1775
      %v1944 = vpack.c.b16 %v1784, %v1780
      %v1945 = vpack.c.b16 %v1785, %v1781
      %v1946 = vpack.c.b16 %v1786, %v1782
      %v1947 = vpack.c.b16 %v1787, %v1783
      %v1948 = vpack.c.b16 %v1792, %v1788
      %v1949 = vpack.c.b16 %v1793, %v1789
      %v1950 = vpack.c.b16 %v1794, %v1790
      %v1951 = vpack.c.b16 %v1795, %v1791
      %v1952 = vpack.c.b16 %v1800, %v1796
      %v1953 = vpack.c.b16 %v1801, %v1797
      %v1954 = vpack.c.b16 %v1802, %v1798
      %v1955 = vpack.c.b16 %v1803, %v1799
      %v1956 = vpack.c.b16 %v1808, %v1804
      %v1957 = vpack.c.b16 %v1809, %v1805
      %v1958 = vpack.c.b16 %v1810, %v1806
      %v1959 = vpack.c.b16 %v1811, %v1807
      %v1960 = vpack.c.b16 %v1816, %v1812
      %v1961 = vpack.c.b16 %v1817, %v1813
      %v1962 = vpack.c.b16 %v1818, %v1814
      %v1963 = vpack.c.b16 %v1819, %v1815
      %v1964 = vpack.c.b16 %v1824, %v1820
      %v1965 = vpack.c.b16 %v1825, %v1821
      %v1966 = vpack.c.b16 %v1826, %v1822
      %v1967 = vpack.c.b16 %v1827, %v1823
      %v1968 = vpack.c.b16 %v1832, %v1828
      %v1969 = vpack.c.b16 %v1833, %v1829
      %v1970 = vpack.c.b16 %v1834, %v1830
      %v1971 = vpack.c.b16 %v1835, %v1831
      %v1972 = vpack.c.b16 %v1840, %v1836
      %v1973 = vpack.c.b16 %v1841, %v1837
      %v1974 = vpack.c.b16 %v1842, %v1838
      %v1975 = vpack.c.b16 %v1843, %v1839
      %v1976 = vpack.c.b16 %v1848, %v1844
      %v1977 = vpack.c.b16 %v1849, %v1845
      %v1978 = vpack.c.b16 %v1850, %v1846
      %v1979 = vpack.c.b16 %v1851, %v1847
      %2108 = vmatpush.bf16.msra.mxu0 %v1880
      %2109 = vmatpush.bf16.msra.mxu0 %v1876
      %2110 = vmatpush.bf16.msra.mxu0 %v1872
      %2111 = vmatpush.bf16.msra.mxu0 %v1868
      %2112 = vmatpush.bf16.msra.mxu0 %v1864
      %2113 = vmatpush.bf16.msra.mxu0 %v1860
      %2114 = vmatpush.bf16.msra.mxu0 %v1856
      %2115 = vmatpush.bf16.msra.mxu0 %v1852
      %2116 = vmatmul.bf16.gmra.mxu0 %v315
      %v2117 = vpop.f32.mrf.mxu0
      %v2118 = vadd.f32 %v1309, %v2117
      %v2119 = vpop.f32.mrf.mxu0
      %2120 = vdwg.mxu0
      %2121 = vmatpush.bf16.msra.mxu0 %v1912
      %2122 = vmatpush.bf16.msra.mxu0 %v1908
      %2123 = vmatpush.bf16.msra.mxu0 %v1904
      %2124 = vmatpush.bf16.msra.mxu0 %v1900
      %2125 = vmatpush.bf16.msra.mxu0 %v1896
      %2126 = vmatpush.bf16.msra.mxu0 %v1892
      %2127 = vmatpush.bf16.msra.mxu0 %v1888
      %2128 = vmatpush.bf16.msra.mxu0 %v1884
      %2129 = vmatmul.bf16.gmra.mxu0 %v316
      %v2130 = vpop.f32.mrf.mxu0
      %v2131 = vadd.f32 %v2118, %v2130
      %v2132 = vpop.f32.mrf.mxu0
      %2133 = vdwg.mxu0
      %2134 = vmatpush.bf16.msra.mxu0 %v1944
      %2135 = vmatpush.bf16.msra.mxu0 %v1940
      %2136 = vmatpush.bf16.msra.mxu0 %v1936
      %2137 = vmatpush.bf16.msra.mxu0 %v1932
      %2138 = vmatpush.bf16.msra.mxu0 %v1928
      %2139 = vmatpush.bf16.msra.mxu0 %v1924
      %2140 = vmatpush.bf16.msra.mxu0 %v1920
      %2141 = vmatpush.bf16.msra.mxu0 %v1916
      %2142 = vmatmul.bf16.gmra.mxu0 %v317
      %v2143 = vpop.f32.mrf.mxu0
      %v2144 = vadd.f32 %v2131, %v2143
      %v2145 = vpop.f32.mrf.mxu0
      %2146 = vdwg.mxu0
      %2147 = vmatpush.bf16.msra.mxu0 %v1976
      %2148 = vmatpush.bf16.msra.mxu0 %v1972
      %2149 = vmatpush.bf16.msra.mxu0 %v1968
      %2150 = vmatpush.bf16.msra.mxu0 %v1964
      %2151 = vmatpush.bf16.msra.mxu0 %v1960
      %2152 = vmatpush.bf16.msra.mxu0 %v1956
      %2153 = vmatpush.bf16.msra.mxu0 %v1952
      %2154 = vmatpush.bf16.msra.mxu0 %v1948
      %2155 = vmatmul.bf16.gmra.mxu0 %v318
      %v2156 = vpop.f32.mrf.mxu0
      %v2157 = vadd.f32 %v2144, %v2156
      %v2158 = vpop.f32.mrf.mxu0
      %2159 = vdwg.mxu0
      %2160 = vmatpush.bf16.msra.mxu0 %v1881
      %2161 = vmatpush.bf16.msra.mxu0 %v1877
      %2162 = vmatpush.bf16.msra.mxu0 %v1873
      %2163 = vmatpush.bf16.msra.mxu0 %v1869
      %2164 = vmatpush.bf16.msra.mxu0 %v1865
      %2165 = vmatpush.bf16.msra.mxu0 %v1861
      %2166 = vmatpush.bf16.msra.mxu0 %v1857
      %2167 = vmatpush.bf16.msra.mxu0 %v1853
      %2168 = vmatmul.bf16.gmra.mxu0 %v315
      %v2169 = vpop.f32.mrf.mxu0
      %v2170 = vadd.f32 %v1361, %v2169
      %v2171 = vpop.f32.mrf.mxu0
      %2172 = vdwg.mxu0
      %2173 = vmatpush.bf16.msra.mxu0 %v1913
      %2174 = vmatpush.bf16.msra.mxu0 %v1909
      %2175 = vmatpush.bf16.msra.mxu0 %v1905
      %2176 = vmatpush.bf16.msra.mxu0 %v1901
      %2177 = vmatpush.bf16.msra.mxu0 %v1897
      %2178 = vmatpush.bf16.msra.mxu0 %v1893
      %2179 = vmatpush.bf16.msra.mxu0 %v1889
      %2180 = vmatpush.bf16.msra.mxu0 %v1885
      %2181 = vmatmul.bf16.gmra.mxu0 %v316
      %v2182 = vpop.f32.mrf.mxu0
      %v2183 = vadd.f32 %v2170, %v2182
      %v2184 = vpop.f32.mrf.mxu0
      %2185 = vdwg.mxu0
      %2186 = vmatpush.bf16.msra.mxu0 %v1945
      %2187 = vmatpush.bf16.msra.mxu0 %v1941
      %2188 = vmatpush.bf16.msra.mxu0 %v1937
      %2189 = vmatpush.bf16.msra.mxu0 %v1933
      %2190 = vmatpush.bf16.msra.mxu0 %v1929
      %2191 = vmatpush.bf16.msra.mxu0 %v1925
      %2192 = vmatpush.bf16.msra.mxu0 %v1921
      %2193 = vmatpush.bf16.msra.mxu0 %v1917
      %2194 = vmatmul.bf16.gmra.mxu0 %v317
      %v2195 = vpop.f32.mrf.mxu0
      %v2196 = vadd.f32 %v2183, %v2195
      %v2197 = vpop.f32.mrf.mxu0
      %2198 = vdwg.mxu0
      %2199 = vmatpush.bf16.msra.mxu0 %v1977
      %2200 = vmatpush.bf16.msra.mxu0 %v1973
      %2201 = vmatpush.bf16.msra.mxu0 %v1969
      %2202 = vmatpush.bf16.msra.mxu0 %v1965
      %2203 = vmatpush.bf16.msra.mxu0 %v1961
      %2204 = vmatpush.bf16.msra.mxu0 %v1957
      %2205 = vmatpush.bf16.msra.mxu0 %v1953
      %2206 = vmatpush.bf16.msra.mxu0 %v1949
      %2207 = vmatmul.bf16.gmra.mxu0 %v318
      %v2208 = vpop.f32.mrf.mxu0
      %v2209 = vadd.f32 %v2196, %v2208
      %v2210 = vpop.f32.mrf.mxu0
      %2211 = vdwg.mxu0
      %2212 = vmatpush.bf16.msra.mxu0 %v1882
      %2213 = vmatpush.bf16.msra.mxu0 %v1878
      %2214 = vmatpush.bf16.msra.mxu0 %v1874
      %2215 = vmatpush.bf16.msra.mxu0 %v1870
      %2216 = vmatpush.bf16.msra.mxu0 %v1866
      %2217 = vmatpush.bf16.msra.mxu0 %v1862
      %2218 = vmatpush.bf16.msra.mxu0 %v1858
      %2219 = vmatpush.bf16.msra.mxu0 %v1854
      %2220 = vmatmul.bf16.gmra.mxu0 %v315
      %v2221 = vpop.f32.mrf.mxu0
      %v2222 = vadd.f32 %v1413, %v2221
      %v2223 = vpop.f32.mrf.mxu0
      %2224 = vdwg.mxu0
      %2225 = vmatpush.bf16.msra.mxu0 %v1914
      %2226 = vmatpush.bf16.msra.mxu0 %v1910
      %2227 = vmatpush.bf16.msra.mxu0 %v1906
      %2228 = vmatpush.bf16.msra.mxu0 %v1902
      %2229 = vmatpush.bf16.msra.mxu0 %v1898
      %2230 = vmatpush.bf16.msra.mxu0 %v1894
      %2231 = vmatpush.bf16.msra.mxu0 %v1890
      %2232 = vmatpush.bf16.msra.mxu0 %v1886
      %2233 = vmatmul.bf16.gmra.mxu0 %v316
      %v2234 = vpop.f32.mrf.mxu0
      %v2235 = vadd.f32 %v2222, %v2234
      %v2236 = vpop.f32.mrf.mxu0
      %2237 = vdwg.mxu0
      %2238 = vmatpush.bf16.msra.mxu0 %v1946
      %2239 = vmatpush.bf16.msra.mxu0 %v1942
      %2240 = vmatpush.bf16.msra.mxu0 %v1938
      %2241 = vmatpush.bf16.msra.mxu0 %v1934
      %2242 = vmatpush.bf16.msra.mxu0 %v1930
      %2243 = vmatpush.bf16.msra.mxu0 %v1926
      %2244 = vmatpush.bf16.msra.mxu0 %v1922
      %2245 = vmatpush.bf16.msra.mxu0 %v1918
      %2246 = vmatmul.bf16.gmra.mxu0 %v317
      %v2247 = vpop.f32.mrf.mxu0
      %v2248 = vadd.f32 %v2235, %v2247
      %v2249 = vpop.f32.mrf.mxu0
      %2250 = vdwg.mxu0
      %2251 = vmatpush.bf16.msra.mxu0 %v1978
      %2252 = vmatpush.bf16.msra.mxu0 %v1974
      %2253 = vmatpush.bf16.msra.mxu0 %v1970
      %2254 = vmatpush.bf16.msra.mxu0 %v1966
      %2255 = vmatpush.bf16.msra.mxu0 %v1962
      %2256 = vmatpush.bf16.msra.mxu0 %v1958
      %2257 = vmatpush.bf16.msra.mxu0 %v1954
      %2258 = vmatpush.bf16.msra.mxu0 %v1950
      %2259 = vmatmul.bf16.gmra.mxu0 %v318
      %v2260 = vpop.f32.mrf.mxu0
      %v2261 = vadd.f32 %v2248, %v2260
      %v2262 = vpop.f32.mrf.mxu0
      %2263 = vdwg.mxu0
      %2264 = vmatpush.bf16.msra.mxu0 %v1883
      %2265 = vmatpush.bf16.msra.mxu0 %v1879
      %2266 = vmatpush.bf16.msra.mxu0 %v1875
      %2267 = vmatpush.bf16.msra.mxu0 %v1871
      %2268 = vmatpush.bf16.msra.mxu0 %v1867
      %2269 = vmatpush.bf16.msra.mxu0 %v1863
      %2270 = vmatpush.bf16.msra.mxu0 %v1859
      %2271 = vmatpush.bf16.msra.mxu0 %v1855
      %2272 = vmatmul.bf16.gmra.mxu0 %v315
      %v2273 = vpop.f32.mrf.mxu0
      %v2274 = vadd.f32 %v1465, %v2273
      %v2275 = vpop.f32.mrf.mxu0
      %2276 = vdwg.mxu0
      %2277 = vmatpush.bf16.msra.mxu0 %v1915
      %2278 = vmatpush.bf16.msra.mxu0 %v1911
      %2279 = vmatpush.bf16.msra.mxu0 %v1907
      %2280 = vmatpush.bf16.msra.mxu0 %v1903
      %2281 = vmatpush.bf16.msra.mxu0 %v1899
      %2282 = vmatpush.bf16.msra.mxu0 %v1895
      %2283 = vmatpush.bf16.msra.mxu0 %v1891
      %2284 = vmatpush.bf16.msra.mxu0 %v1887
      %2285 = vmatmul.bf16.gmra.mxu0 %v316
      %v2286 = vpop.f32.mrf.mxu0
      %v2287 = vadd.f32 %v2274, %v2286
      %v2288 = vpop.f32.mrf.mxu0
      %2289 = vdwg.mxu0
      %2290 = vmatpush.bf16.msra.mxu0 %v1947
      %2291 = vmatpush.bf16.msra.mxu0 %v1943
      %2292 = vmatpush.bf16.msra.mxu0 %v1939
      %2293 = vmatpush.bf16.msra.mxu0 %v1935
      %2294 = vmatpush.bf16.msra.mxu0 %v1931
      %2295 = vmatpush.bf16.msra.mxu0 %v1927
      %2296 = vmatpush.bf16.msra.mxu0 %v1923
      %2297 = vmatpush.bf16.msra.mxu0 %v1919
      %2298 = vmatmul.bf16.gmra.mxu0 %v317
      %v2299 = vpop.f32.mrf.mxu0
      %v2300 = vadd.f32 %v2287, %v2299
      %v2301 = vpop.f32.mrf.mxu0
      %2302 = vdwg.mxu0
      %2303 = vmatpush.bf16.msra.mxu0 %v1979
      %2304 = vmatpush.bf16.msra.mxu0 %v1975
      %2305 = vmatpush.bf16.msra.mxu0 %v1971
      %2306 = vmatpush.bf16.msra.mxu0 %v1967
      %2307 = vmatpush.bf16.msra.mxu0 %v1963
      %2308 = vmatpush.bf16.msra.mxu0 %v1959
      %2309 = vmatpush.bf16.msra.mxu0 %v1955
      %2310 = vmatpush.bf16.msra.mxu0 %v1951
      %2311 = vmatmul.bf16.gmra.mxu0 %v318
      %v2312 = vpop.f32.mrf.mxu0
      %v2313 = vadd.f32 %v2300, %v2312
      %v2314 = vpop.f32.mrf.mxu0
      %2315 = vdwg.mxu0
      %v2316 = vld [vmem:[#allocation2] sm:$0xfc]
      %v2317 = vld [vmem:[#allocation2 + $0x8] sm:$0xfc]
      %v2318 = vld [vmem:[#allocation2 + $0x10] sm:$0xfc]
      %v2319 = vld [vmem:[#allocation2 + $0x18] sm:$0xfc]
      %v2320 = vld [vmem:[#allocation2 + $0x20] sm:$0x3]
      %v2321 = vld [vmem:[#allocation2 + $0x28] sm:$0x3]
      %v2322 = vld [vmem:[#allocation2 + $0x30] sm:$0x3]
      %v2323 = vld [vmem:[#allocation2 + $0x38] sm:$0x3]
      %v2324 = vpack.c.bf16 %v2320, %v2316
      %v2325 = vpack.c.bf16 %v2321, %v2317
      %v2326 = vpack.c.bf16 %v2322, %v2318
      %v2327 = vpack.c.bf16 %v2323, %v2319
      %s2328 = scalar_lea.vmem %s2, 2048
      %v2329 = vld [vmem:[%s2328] sm:$0xff]
      %v2330 = vld [vmem:[%s2328 + $0x8] sm:$0xff]
      %v2331 = vld [vmem:[%s2328 + $0x10] sm:$0xff]
      %v2332 = vld [vmem:[%s2328 + $0x18] sm:$0xff]
      %v2333 = vld [vmem:[%s2328 + $0x20] sm:$0xff]
      %v2334 = vld [vmem:[%s2328 + $0x28] sm:$0xff]
      %v2335 = vld [vmem:[%s2328 + $0x30] sm:$0xff]
      %v2336 = vld [vmem:[%s2328 + $0x38] sm:$0xff]
      %v2337 = vld [vmem:[%s2328 + $0x40] sm:$0xff]
      %v2338 = vld [vmem:[%s2328 + $0x48] sm:$0xff]
      %v2339 = vld [vmem:[%s2328 + $0x50] sm:$0xff]
      %v2340 = vld [vmem:[%s2328 + $0x58] sm:$0xff]
      %v2341 = vld [vmem:[%s2328 + $0x60] sm:$0xff]
      %v2342 = vld [vmem:[%s2328 + $0x68] sm:$0xff]
      %v2343 = vld [vmem:[%s2328 + $0x70] sm:$0xff]
      %v2344 = vld [vmem:[%s2328 + $0x78] sm:$0xff]
      %v2345 = vld [vmem:[%s2328 + $0x80] sm:$0xff]
      %v2346 = vld [vmem:[%s2328 + $0x88] sm:$0xff]
      %v2347 = vld [vmem:[%s2328 + $0x90] sm:$0xff]
      %v2348 = vld [vmem:[%s2328 + $0x98] sm:$0xff]
      %v2349 = vld [vmem:[%s2328 + $0xa0] sm:$0xff]
      %v2350 = vld [vmem:[%s2328 + $0xa8] sm:$0xff]
      %v2351 = vld [vmem:[%s2328 + $0xb0] sm:$0xff]
      %v2352 = vld [vmem:[%s2328 + $0xb8] sm:$0xff]
      %v2353 = vld [vmem:[%s2328 + $0xc0] sm:$0xff]
      %v2354 = vld [vmem:[%s2328 + $0xc8] sm:$0xff]
      %v2355 = vld [vmem:[%s2328 + $0xd0] sm:$0xff]
      %v2356 = vld [vmem:[%s2328 + $0xd8] sm:$0xff]
      %v2357 = vld [vmem:[%s2328 + $0xe0] sm:$0xff]
      %v2358 = vld [vmem:[%s2328 + $0xe8] sm:$0xff]
      %v2359 = vld [vmem:[%s2328 + $0xf0] sm:$0xff]
      %v2360 = vld [vmem:[%s2328 + $0xf8] sm:$0xff]
      %v2361 = vld [vmem:[%s2328 + $0x100] sm:$0xff]
      %v2362 = vld [vmem:[%s2328 + $0x108] sm:$0xff]
      %v2363 = vld [vmem:[%s2328 + $0x110] sm:$0xff]
      %v2364 = vld [vmem:[%s2328 + $0x118] sm:$0xff]
      %v2365 = vld [vmem:[%s2328 + $0x120] sm:$0xff]
      %v2366 = vld [vmem:[%s2328 + $0x128] sm:$0xff]
      %v2367 = vld [vmem:[%s2328 + $0x130] sm:$0xff]
      %v2368 = vld [vmem:[%s2328 + $0x138] sm:$0xff]
      %v2369 = vld [vmem:[%s2328 + $0x140] sm:$0xff]
      %v2370 = vld [vmem:[%s2328 + $0x148] sm:$0xff]
      %v2371 = vld [vmem:[%s2328 + $0x150] sm:$0xff]
      %v2372 = vld [vmem:[%s2328 + $0x158] sm:$0xff]
      %v2373 = vld [vmem:[%s2328 + $0x160] sm:$0xff]
      %v2374 = vld [vmem:[%s2328 + $0x168] sm:$0xff]
      %v2375 = vld [vmem:[%s2328 + $0x170] sm:$0xff]
      %v2376 = vld [vmem:[%s2328 + $0x178] sm:$0xff]
      %v2377 = vld [vmem:[%s2328 + $0x180] sm:$0xff]
      %v2378 = vld [vmem:[%s2328 + $0x188] sm:$0xff]
      %v2379 = vld [vmem:[%s2328 + $0x190] sm:$0xff]
      %v2380 = vld [vmem:[%s2328 + $0x198] sm:$0xff]
      %v2381 = vld [vmem:[%s2328 + $0x1a0] sm:$0xff]
      %v2382 = vld [vmem:[%s2328 + $0x1a8] sm:$0xff]
      %v2383 = vld [vmem:[%s2328 + $0x1b0] sm:$0xff]
      %v2384 = vld [vmem:[%s2328 + $0x1b8] sm:$0xff]
      %v2385 = vld [vmem:[%s2328 + $0x1c0] sm:$0xff]
      %v2386 = vld [vmem:[%s2328 + $0x1c8] sm:$0xff]
      %v2387 = vld [vmem:[%s2328 + $0x1d0] sm:$0xff]
      %v2388 = vld [vmem:[%s2328 + $0x1d8] sm:$0xff]
      %v2389 = vld [vmem:[%s2328 + $0x1e0] sm:$0xff]
      %v2390 = vld [vmem:[%s2328 + $0x1e8] sm:$0xff]
      %v2391 = vld [vmem:[%s2328 + $0x1f0] sm:$0xff]
      %v2392 = vld [vmem:[%s2328 + $0x1f8] sm:$0xff]
      %v2393 = vld [vmem:[%s2328 + $0x200] sm:$0xff]
      %v2394 = vld [vmem:[%s2328 + $0x208] sm:$0xff]
      %v2395 = vld [vmem:[%s2328 + $0x210] sm:$0xff]
      %v2396 = vld [vmem:[%s2328 + $0x218] sm:$0xff]
      %v2397 = vld [vmem:[%s2328 + $0x220] sm:$0xff]
      %v2398 = vld [vmem:[%s2328 + $0x228] sm:$0xff]
      %v2399 = vld [vmem:[%s2328 + $0x230] sm:$0xff]
      %v2400 = vld [vmem:[%s2328 + $0x238] sm:$0xff]
      %v2401 = vld [vmem:[%s2328 + $0x240] sm:$0xff]
      %v2402 = vld [vmem:[%s2328 + $0x248] sm:$0xff]
      %v2403 = vld [vmem:[%s2328 + $0x250] sm:$0xff]
      %v2404 = vld [vmem:[%s2328 + $0x258] sm:$0xff]
      %v2405 = vld [vmem:[%s2328 + $0x260] sm:$0xff]
      %v2406 = vld [vmem:[%s2328 + $0x268] sm:$0xff]
      %v2407 = vld [vmem:[%s2328 + $0x270] sm:$0xff]
      %v2408 = vld [vmem:[%s2328 + $0x278] sm:$0xff]
      %v2409 = vld [vmem:[%s2328 + $0x280] sm:$0xff]
      %v2410 = vld [vmem:[%s2328 + $0x288] sm:$0xff]
      %v2411 = vld [vmem:[%s2328 + $0x290] sm:$0xff]
      %v2412 = vld [vmem:[%s2328 + $0x298] sm:$0xff]
      %v2413 = vld [vmem:[%s2328 + $0x2a0] sm:$0xff]
      %v2414 = vld [vmem:[%s2328 + $0x2a8] sm:$0xff]
      %v2415 = vld [vmem:[%s2328 + $0x2b0] sm:$0xff]
      %v2416 = vld [vmem:[%s2328 + $0x2b8] sm:$0xff]
      %v2417 = vld [vmem:[%s2328 + $0x2c0] sm:$0xff]
      %v2418 = vld [vmem:[%s2328 + $0x2c8] sm:$0xff]
      %v2419 = vld [vmem:[%s2328 + $0x2d0] sm:$0xff]
      %v2420 = vld [vmem:[%s2328 + $0x2d8] sm:$0xff]
      %v2421 = vld [vmem:[%s2328 + $0x2e0] sm:$0xff]
      %v2422 = vld [vmem:[%s2328 + $0x2e8] sm:$0xff]
      %v2423 = vld [vmem:[%s2328 + $0x2f0] sm:$0xff]
      %v2424 = vld [vmem:[%s2328 + $0x2f8] sm:$0xff]
      %v2425 = vld [vmem:[%s2328 + $0x300] sm:$0xff]
      %v2426 = vld [vmem:[%s2328 + $0x308] sm:$0xff]
      %v2427 = vld [vmem:[%s2328 + $0x310] sm:$0xff]
      %v2428 = vld [vmem:[%s2328 + $0x318] sm:$0xff]
      %v2429 = vld [vmem:[%s2328 + $0x320] sm:$0xff]
      %v2430 = vld [vmem:[%s2328 + $0x328] sm:$0xff]
      %v2431 = vld [vmem:[%s2328 + $0x330] sm:$0xff]
      %v2432 = vld [vmem:[%s2328 + $0x338] sm:$0xff]
      %v2433 = vld [vmem:[%s2328 + $0x340] sm:$0xff]
      %v2434 = vld [vmem:[%s2328 + $0x348] sm:$0xff]
      %v2435 = vld [vmem:[%s2328 + $0x350] sm:$0xff]
      %v2436 = vld [vmem:[%s2328 + $0x358] sm:$0xff]
      %v2437 = vld [vmem:[%s2328 + $0x360] sm:$0xff]
      %v2438 = vld [vmem:[%s2328 + $0x368] sm:$0xff]
      %v2439 = vld [vmem:[%s2328 + $0x370] sm:$0xff]
      %v2440 = vld [vmem:[%s2328 + $0x378] sm:$0xff]
      %v2441 = vld [vmem:[%s2328 + $0x380] sm:$0xff]
      %v2442 = vld [vmem:[%s2328 + $0x388] sm:$0xff]
      %v2443 = vld [vmem:[%s2328 + $0x390] sm:$0xff]
      %v2444 = vld [vmem:[%s2328 + $0x398] sm:$0xff]
      %v2445 = vld [vmem:[%s2328 + $0x3a0] sm:$0xff]
      %v2446 = vld [vmem:[%s2328 + $0x3a8] sm:$0xff]
      %v2447 = vld [vmem:[%s2328 + $0x3b0] sm:$0xff]
      %v2448 = vld [vmem:[%s2328 + $0x3b8] sm:$0xff]
      %v2449 = vld [vmem:[%s2328 + $0x3c0] sm:$0xff]
      %v2450 = vld [vmem:[%s2328 + $0x3c8] sm:$0xff]
      %v2451 = vld [vmem:[%s2328 + $0x3d0] sm:$0xff]
      %v2452 = vld [vmem:[%s2328 + $0x3d8] sm:$0xff]
      %v2453 = vld [vmem:[%s2328 + $0x3e0] sm:$0xff]
      %v2454 = vld [vmem:[%s2328 + $0x3e8] sm:$0xff]
      %v2455 = vld [vmem:[%s2328 + $0x3f0] sm:$0xff]
      %v2456 = vld [vmem:[%s2328 + $0x3f8] sm:$0xff]
      %v2461 = vrot.slane %v2324, 1
      %v2462 = vrot.slane %v2325, 1
      %v2463 = vrot.slane %v2326, 1
      %v2464 = vrot.slane %v2327, 1
      %v2597 = vunpack.c.l.b16 %v2329
      %v2598 = vunpack.c.h.b16 %v2329
      %v2599 = vunpack.c.l.b16 %v2330
      %v2600 = vunpack.c.h.b16 %v2330
      %v2601 = vunpack.c.l.b16 %v2331
      %v2602 = vunpack.c.h.b16 %v2331
      %v2603 = vunpack.c.l.b16 %v2332
      %v2604 = vunpack.c.h.b16 %v2332
      %v2605 = vunpack.c.l.b16 %v2333
      %v2606 = vunpack.c.h.b16 %v2333
      %v2607 = vunpack.c.l.b16 %v2334
      %v2608 = vunpack.c.h.b16 %v2334
      %v2609 = vunpack.c.l.b16 %v2335
      %v2610 = vunpack.c.h.b16 %v2335
      %v2611 = vunpack.c.l.b16 %v2336
      %v2612 = vunpack.c.h.b16 %v2336
      %v2613 = vunpack.c.l.b16 %v2337
      %v2614 = vunpack.c.h.b16 %v2337
      %v2615 = vunpack.c.l.b16 %v2338
      %v2616 = vunpack.c.h.b16 %v2338
      %v2617 = vunpack.c.l.b16 %v2339
      %v2618 = vunpack.c.h.b16 %v2339
      %v2619 = vunpack.c.l.b16 %v2340
      %v2620 = vunpack.c.h.b16 %v2340
      %v2621 = vunpack.c.l.b16 %v2341
      %v2622 = vunpack.c.h.b16 %v2341
      %v2623 = vunpack.c.l.b16 %v2342
      %v2624 = vunpack.c.h.b16 %v2342
      %v2625 = vunpack.c.l.b16 %v2343
      %v2626 = vunpack.c.h.b16 %v2343
      %v2627 = vunpack.c.l.b16 %v2344
      %v2628 = vunpack.c.h.b16 %v2344
      %v2629 = vunpack.c.l.b16 %v2345
      %v2630 = vunpack.c.h.b16 %v2345
      %v2631 = vunpack.c.l.b16 %v2346
      %v2632 = vunpack.c.h.b16 %v2346
      %v2633 = vunpack.c.l.b16 %v2347
      %v2634 = vunpack.c.h.b16 %v2347
      %v2635 = vunpack.c.l.b16 %v2348
      %v2636 = vunpack.c.h.b16 %v2348
      %v2637 = vunpack.c.l.b16 %v2349
      %v2638 = vunpack.c.h.b16 %v2349
      %v2639 = vunpack.c.l.b16 %v2350
      %v2640 = vunpack.c.h.b16 %v2350
      %v2641 = vunpack.c.l.b16 %v2351
      %v2642 = vunpack.c.h.b16 %v2351
      %v2643 = vunpack.c.l.b16 %v2352
      %v2644 = vunpack.c.h.b16 %v2352
      %v2645 = vunpack.c.l.b16 %v2353
      %v2646 = vunpack.c.h.b16 %v2353
      %v2647 = vunpack.c.l.b16 %v2354
      %v2648 = vunpack.c.h.b16 %v2354
      %v2649 = vunpack.c.l.b16 %v2355
      %v2650 = vunpack.c.h.b16 %v2355
      %v2651 = vunpack.c.l.b16 %v2356
      %v2652 = vunpack.c.h.b16 %v2356
      %v2653 = vunpack.c.l.b16 %v2357
      %v2654 = vunpack.c.h.b16 %v2357
      %v2655 = vunpack.c.l.b16 %v2358
      %v2656 = vunpack.c.h.b16 %v2358
      %v2657 = vunpack.c.l.b16 %v2359
      %v2658 = vunpack.c.h.b16 %v2359
      %v2659 = vunpack.c.l.b16 %v2360
      %v2660 = vunpack.c.h.b16 %v2360
      %v2661 = vunpack.c.l.b16 %v2361
      %v2662 = vunpack.c.h.b16 %v2361
      %v2663 = vunpack.c.l.b16 %v2362
      %v2664 = vunpack.c.h.b16 %v2362
      %v2665 = vunpack.c.l.b16 %v2363
      %v2666 = vunpack.c.h.b16 %v2363
      %v2667 = vunpack.c.l.b16 %v2364
      %v2668 = vunpack.c.h.b16 %v2364
      %v2669 = vunpack.c.l.b16 %v2365
      %v2670 = vunpack.c.h.b16 %v2365
      %v2671 = vunpack.c.l.b16 %v2366
      %v2672 = vunpack.c.h.b16 %v2366
      %v2673 = vunpack.c.l.b16 %v2367
      %v2674 = vunpack.c.h.b16 %v2367
      %v2675 = vunpack.c.l.b16 %v2368
      %v2676 = vunpack.c.h.b16 %v2368
      %v2677 = vunpack.c.l.b16 %v2369
      %v2678 = vunpack.c.h.b16 %v2369
      %v2679 = vunpack.c.l.b16 %v2370
      %v2680 = vunpack.c.h.b16 %v2370
      %v2681 = vunpack.c.l.b16 %v2371
      %v2682 = vunpack.c.h.b16 %v2371
      %v2683 = vunpack.c.l.b16 %v2372
      %v2684 = vunpack.c.h.b16 %v2372
      %v2685 = vunpack.c.l.b16 %v2373
      %v2686 = vunpack.c.h.b16 %v2373
      %v2687 = vunpack.c.l.b16 %v2374
      %v2688 = vunpack.c.h.b16 %v2374
      %v2689 = vunpack.c.l.b16 %v2375
      %v2690 = vunpack.c.h.b16 %v2375
      %v2691 = vunpack.c.l.b16 %v2376
      %v2692 = vunpack.c.h.b16 %v2376
      %v2693 = vunpack.c.l.b16 %v2377
      %v2694 = vunpack.c.h.b16 %v2377
      %v2695 = vunpack.c.l.b16 %v2378
      %v2696 = vunpack.c.h.b16 %v2378
      %v2697 = vunpack.c.l.b16 %v2379
      %v2698 = vunpack.c.h.b16 %v2379
      %v2699 = vunpack.c.l.b16 %v2380
      %v2700 = vunpack.c.h.b16 %v2380
      %v2701 = vunpack.c.l.b16 %v2381
      %v2702 = vunpack.c.h.b16 %v2381
      %v2703 = vunpack.c.l.b16 %v2382
      %v2704 = vunpack.c.h.b16 %v2382
      %v2705 = vunpack.c.l.b16 %v2383
      %v2706 = vunpack.c.h.b16 %v2383
      %v2707 = vunpack.c.l.b16 %v2384
      %v2708 = vunpack.c.h.b16 %v2384
      %v2709 = vunpack.c.l.b16 %v2385
      %v2710 = vunpack.c.h.b16 %v2385
      %v2711 = vunpack.c.l.b16 %v2386
      %v2712 = vunpack.c.h.b16 %v2386
      %v2713 = vunpack.c.l.b16 %v2387
      %v2714 = vunpack.c.h.b16 %v2387
      %v2715 = vunpack.c.l.b16 %v2388
      %v2716 = vunpack.c.h.b16 %v2388
      %v2717 = vunpack.c.l.b16 %v2389
      %v2718 = vunpack.c.h.b16 %v2389
      %v2719 = vunpack.c.l.b16 %v2390
      %v2720 = vunpack.c.h.b16 %v2390
      %v2721 = vunpack.c.l.b16 %v2391
      %v2722 = vunpack.c.h.b16 %v2391
      %v2723 = vunpack.c.l.b16 %v2392
      %v2724 = vunpack.c.h.b16 %v2392
      %v2725 = vunpack.c.l.b16 %v2393
      %v2726 = vunpack.c.h.b16 %v2393
      %v2727 = vunpack.c.l.b16 %v2394
      %v2728 = vunpack.c.h.b16 %v2394
      %v2729 = vunpack.c.l.b16 %v2395
      %v2730 = vunpack.c.h.b16 %v2395
      %v2731 = vunpack.c.l.b16 %v2396
      %v2732 = vunpack.c.h.b16 %v2396
      %v2733 = vunpack.c.l.b16 %v2397
      %v2734 = vunpack.c.h.b16 %v2397
      %v2735 = vunpack.c.l.b16 %v2398
      %v2736 = vunpack.c.h.b16 %v2398
      %v2737 = vunpack.c.l.b16 %v2399
      %v2738 = vunpack.c.h.b16 %v2399
      %v2739 = vunpack.c.l.b16 %v2400
      %v2740 = vunpack.c.h.b16 %v2400
      %v2741 = vunpack.c.l.b16 %v2401
      %v2742 = vunpack.c.h.b16 %v2401
      %v2743 = vunpack.c.l.b16 %v2402
      %v2744 = vunpack.c.h.b16 %v2402
      %v2745 = vunpack.c.l.b16 %v2403
      %v2746 = vunpack.c.h.b16 %v2403
      %v2747 = vunpack.c.l.b16 %v2404
      %v2748 = vunpack.c.h.b16 %v2404
      %v2749 = vunpack.c.l.b16 %v2405
      %v2750 = vunpack.c.h.b16 %v2405
      %v2751 = vunpack.c.l.b16 %v2406
      %v2752 = vunpack.c.h.b16 %v2406
      %v2753 = vunpack.c.l.b16 %v2407
      %v2754 = vunpack.c.h.b16 %v2407
      %v2755 = vunpack.c.l.b16 %v2408
      %v2756 = vunpack.c.h.b16 %v2408
      %v2757 = vunpack.c.l.b16 %v2409
      %v2758 = vunpack.c.h.b16 %v2409
      %v2759 = vunpack.c.l.b16 %v2410
      %v2760 = vunpack.c.h.b16 %v2410
      %v2761 = vunpack.c.l.b16 %v2411
      %v2762 = vunpack.c.h.b16 %v2411
      %v2763 = vunpack.c.l.b16 %v2412
      %v2764 = vunpack.c.h.b16 %v2412
      %v2765 = vunpack.c.l.b16 %v2413
      %v2766 = vunpack.c.h.b16 %v2413
      %v2767 = vunpack.c.l.b16 %v2414
      %v2768 = vunpack.c.h.b16 %v2414
      %v2769 = vunpack.c.l.b16 %v2415
      %v2770 = vunpack.c.h.b16 %v2415
      %v2771 = vunpack.c.l.b16 %v2416
      %v2772 = vunpack.c.h.b16 %v2416
      %v2773 = vunpack.c.l.b16 %v2417
      %v2774 = vunpack.c.h.b16 %v2417
      %v2775 = vunpack.c.l.b16 %v2418
      %v2776 = vunpack.c.h.b16 %v2418
      %v2777 = vunpack.c.l.b16 %v2419
      %v2778 = vunpack.c.h.b16 %v2419
      %v2779 = vunpack.c.l.b16 %v2420
      %v2780 = vunpack.c.h.b16 %v2420
      %v2781 = vunpack.c.l.b16 %v2421
      %v2782 = vunpack.c.h.b16 %v2421
      %v2783 = vunpack.c.l.b16 %v2422
      %v2784 = vunpack.c.h.b16 %v2422
      %v2785 = vunpack.c.l.b16 %v2423
      %v2786 = vunpack.c.h.b16 %v2423
      %v2787 = vunpack.c.l.b16 %v2424
      %v2788 = vunpack.c.h.b16 %v2424
      %v2789 = vunpack.c.l.b16 %v2425
      %v2790 = vunpack.c.h.b16 %v2425
      %v2791 = vunpack.c.l.b16 %v2426
      %v2792 = vunpack.c.h.b16 %v2426
      %v2793 = vunpack.c.l.b16 %v2427
      %v2794 = vunpack.c.h.b16 %v2427
      %v2795 = vunpack.c.l.b16 %v2428
      %v2796 = vunpack.c.h.b16 %v2428
      %v2797 = vunpack.c.l.b16 %v2429
      %v2798 = vunpack.c.h.b16 %v2429
      %v2799 = vunpack.c.l.b16 %v2430
      %v2800 = vunpack.c.h.b16 %v2430
      %v2801 = vunpack.c.l.b16 %v2431
      %v2802 = vunpack.c.h.b16 %v2431
      %v2803 = vunpack.c.l.b16 %v2432
      %v2804 = vunpack.c.h.b16 %v2432
      %v2805 = vunpack.c.l.b16 %v2433
      %v2806 = vunpack.c.h.b16 %v2433
      %v2807 = vunpack.c.l.b16 %v2434
      %v2808 = vunpack.c.h.b16 %v2434
      %v2809 = vunpack.c.l.b16 %v2435
      %v2810 = vunpack.c.h.b16 %v2435
      %v2811 = vunpack.c.l.b16 %v2436
      %v2812 = vunpack.c.h.b16 %v2436
      %v2813 = vunpack.c.l.b16 %v2437
      %v2814 = vunpack.c.h.b16 %v2437
      %v2815 = vunpack.c.l.b16 %v2438
      %v2816 = vunpack.c.h.b16 %v2438
      %v2817 = vunpack.c.l.b16 %v2439
      %v2818 = vunpack.c.h.b16 %v2439
      %v2819 = vunpack.c.l.b16 %v2440
      %v2820 = vunpack.c.h.b16 %v2440
      %v2821 = vunpack.c.l.b16 %v2441
      %v2822 = vunpack.c.h.b16 %v2441
      %v2823 = vunpack.c.l.b16 %v2442
      %v2824 = vunpack.c.h.b16 %v2442
      %v2825 = vunpack.c.l.b16 %v2443
      %v2826 = vunpack.c.h.b16 %v2443
      %v2827 = vunpack.c.l.b16 %v2444
      %v2828 = vunpack.c.h.b16 %v2444
      %v2829 = vunpack.c.l.b16 %v2445
      %v2830 = vunpack.c.h.b16 %v2445
      %v2831 = vunpack.c.l.b16 %v2446
      %v2832 = vunpack.c.h.b16 %v2446
      %v2833 = vunpack.c.l.b16 %v2447
      %v2834 = vunpack.c.h.b16 %v2447
      %v2835 = vunpack.c.l.b16 %v2448
      %v2836 = vunpack.c.h.b16 %v2448
      %v2837 = vunpack.c.l.b16 %v2449
      %v2838 = vunpack.c.h.b16 %v2449
      %v2839 = vunpack.c.l.b16 %v2450
      %v2840 = vunpack.c.h.b16 %v2450
      %v2841 = vunpack.c.l.b16 %v2451
      %v2842 = vunpack.c.h.b16 %v2451
      %v2843 = vunpack.c.l.b16 %v2452
      %v2844 = vunpack.c.h.b16 %v2452
      %v2845 = vunpack.c.l.b16 %v2453
      %v2846 = vunpack.c.h.b16 %v2453
      %v2847 = vunpack.c.l.b16 %v2454
      %v2848 = vunpack.c.h.b16 %v2454
      %v2849 = vunpack.c.l.b16 %v2455
      %v2850 = vunpack.c.h.b16 %v2455
      %v2851 = vunpack.c.l.b16 %v2456
      %v2852 = vunpack.c.h.b16 %v2456
      %v2853 = vpack.c.b16 %v2601, %v2597
      %v2854 = vpack.c.b16 %v2602, %v2598
      %v2855 = vpack.c.b16 %v2603, %v2599
      %v2856 = vpack.c.b16 %v2604, %v2600
      %v2857 = vpack.c.b16 %v2609, %v2605
      %v2858 = vpack.c.b16 %v2610, %v2606
      %v2859 = vpack.c.b16 %v2611, %v2607
      %v2860 = vpack.c.b16 %v2612, %v2608
      %v2861 = vpack.c.b16 %v2617, %v2613
      %v2862 = vpack.c.b16 %v2618, %v2614
      %v2863 = vpack.c.b16 %v2619, %v2615
      %v2864 = vpack.c.b16 %v2620, %v2616
      %v2865 = vpack.c.b16 %v2625, %v2621
      %v2866 = vpack.c.b16 %v2626, %v2622
      %v2867 = vpack.c.b16 %v2627, %v2623
      %v2868 = vpack.c.b16 %v2628, %v2624
      %v2869 = vpack.c.b16 %v2633, %v2629
      %v2870 = vpack.c.b16 %v2634, %v2630
      %v2871 = vpack.c.b16 %v2635, %v2631
      %v2872 = vpack.c.b16 %v2636, %v2632
      %v2873 = vpack.c.b16 %v2641, %v2637
      %v2874 = vpack.c.b16 %v2642, %v2638
      %v2875 = vpack.c.b16 %v2643, %v2639
      %v2876 = vpack.c.b16 %v2644, %v2640
      %v2877 = vpack.c.b16 %v2649, %v2645
      %v2878 = vpack.c.b16 %v2650, %v2646
      %v2879 = vpack.c.b16 %v2651, %v2647
      %v2880 = vpack.c.b16 %v2652, %v2648
      %v2881 = vpack.c.b16 %v2657, %v2653
      %v2882 = vpack.c.b16 %v2658, %v2654
      %v2883 = vpack.c.b16 %v2659, %v2655
      %v2884 = vpack.c.b16 %v2660, %v2656
      %v2885 = vpack.c.b16 %v2665, %v2661
      %v2886 = vpack.c.b16 %v2666, %v2662
      %v2887 = vpack.c.b16 %v2667, %v2663
      %v2888 = vpack.c.b16 %v2668, %v2664
      %v2889 = vpack.c.b16 %v2673, %v2669
      %v2890 = vpack.c.b16 %v2674, %v2670
      %v2891 = vpack.c.b16 %v2675, %v2671
      %v2892 = vpack.c.b16 %v2676, %v2672
      %v2893 = vpack.c.b16 %v2681, %v2677
      %v2894 = vpack.c.b16 %v2682, %v2678
      %v2895 = vpack.c.b16 %v2683, %v2679
      %v2896 = vpack.c.b16 %v2684, %v2680
      %v2897 = vpack.c.b16 %v2689, %v2685
      %v2898 = vpack.c.b16 %v2690, %v2686
      %v2899 = vpack.c.b16 %v2691, %v2687
      %v2900 = vpack.c.b16 %v2692, %v2688
      %v2901 = vpack.c.b16 %v2697, %v2693
      %v2902 = vpack.c.b16 %v2698, %v2694
      %v2903 = vpack.c.b16 %v2699, %v2695
      %v2904 = vpack.c.b16 %v2700, %v2696
      %v2905 = vpack.c.b16 %v2705, %v2701
      %v2906 = vpack.c.b16 %v2706, %v2702
      %v2907 = vpack.c.b16 %v2707, %v2703
      %v2908 = vpack.c.b16 %v2708, %v2704
      %v2909 = vpack.c.b16 %v2713, %v2709
      %v2910 = vpack.c.b16 %v2714, %v2710
      %v2911 = vpack.c.b16 %v2715, %v2711
      %v2912 = vpack.c.b16 %v2716, %v2712
      %v2913 = vpack.c.b16 %v2721, %v2717
      %v2914 = vpack.c.b16 %v2722, %v2718
      %v2915 = vpack.c.b16 %v2723, %v2719
      %v2916 = vpack.c.b16 %v2724, %v2720
      %v2917 = vpack.c.b16 %v2729, %v2725
      %v2918 = vpack.c.b16 %v2730, %v2726
      %v2919 = vpack.c.b16 %v2731, %v2727
      %v2920 = vpack.c.b16 %v2732, %v2728
      %v2921 = vpack.c.b16 %v2737, %v2733
      %v2922 = vpack.c.b16 %v2738, %v2734
      %v2923 = vpack.c.b16 %v2739, %v2735
      %v2924 = vpack.c.b16 %v2740, %v2736
      %v2925 = vpack.c.b16 %v2745, %v2741
      %v2926 = vpack.c.b16 %v2746, %v2742
      %v2927 = vpack.c.b16 %v2747, %v2743
      %v2928 = vpack.c.b16 %v2748, %v2744
      %v2929 = vpack.c.b16 %v2753, %v2749
      %v2930 = vpack.c.b16 %v2754, %v2750
      %v2931 = vpack.c.b16 %v2755, %v2751
      %v2932 = vpack.c.b16 %v2756, %v2752
      %v2933 = vpack.c.b16 %v2761, %v2757
      %v2934 = vpack.c.b16 %v2762, %v2758
      %v2935 = vpack.c.b16 %v2763, %v2759
      %v2936 = vpack.c.b16 %v2764, %v2760
      %v2937 = vpack.c.b16 %v2769, %v2765
      %v2938 = vpack.c.b16 %v2770, %v2766
      %v2939 = vpack.c.b16 %v2771, %v2767
      %v2940 = vpack.c.b16 %v2772, %v2768
      %v2941 = vpack.c.b16 %v2777, %v2773
      %v2942 = vpack.c.b16 %v2778, %v2774
      %v2943 = vpack.c.b16 %v2779, %v2775
      %v2944 = vpack.c.b16 %v2780, %v2776
      %v2945 = vpack.c.b16 %v2785, %v2781
      %v2946 = vpack.c.b16 %v2786, %v2782
      %v2947 = vpack.c.b16 %v2787, %v2783
      %v2948 = vpack.c.b16 %v2788, %v2784
      %v2949 = vpack.c.b16 %v2793, %v2789
      %v2950 = vpack.c.b16 %v2794, %v2790
      %v2951 = vpack.c.b16 %v2795, %v2791
      %v2952 = vpack.c.b16 %v2796, %v2792
      %v2953 = vpack.c.b16 %v2801, %v2797
      %v2954 = vpack.c.b16 %v2802, %v2798
      %v2955 = vpack.c.b16 %v2803, %v2799
      %v2956 = vpack.c.b16 %v2804, %v2800
      %v2957 = vpack.c.b16 %v2809, %v2805
      %v2958 = vpack.c.b16 %v2810, %v2806
      %v2959 = vpack.c.b16 %v2811, %v2807
      %v2960 = vpack.c.b16 %v2812, %v2808
      %v2961 = vpack.c.b16 %v2817, %v2813
      %v2962 = vpack.c.b16 %v2818, %v2814
      %v2963 = vpack.c.b16 %v2819, %v2815
      %v2964 = vpack.c.b16 %v2820, %v2816
      %v2965 = vpack.c.b16 %v2825, %v2821
      %v2966 = vpack.c.b16 %v2826, %v2822
      %v2967 = vpack.c.b16 %v2827, %v2823
      %v2968 = vpack.c.b16 %v2828, %v2824
      %v2969 = vpack.c.b16 %v2833, %v2829
      %v2970 = vpack.c.b16 %v2834, %v2830
      %v2971 = vpack.c.b16 %v2835, %v2831
      %v2972 = vpack.c.b16 %v2836, %v2832
      %v2973 = vpack.c.b16 %v2841, %v2837
      %v2974 = vpack.c.b16 %v2842, %v2838
      %v2975 = vpack.c.b16 %v2843, %v2839
      %v2976 = vpack.c.b16 %v2844, %v2840
      %v2977 = vpack.c.b16 %v2849, %v2845
      %v2978 = vpack.c.b16 %v2850, %v2846
      %v2979 = vpack.c.b16 %v2851, %v2847
      %v2980 = vpack.c.b16 %v2852, %v2848
      %3109 = vmatpush.bf16.msra.mxu0 %v2881
      %3110 = vmatpush.bf16.msra.mxu0 %v2877
      %3111 = vmatpush.bf16.msra.mxu0 %v2873
      %3112 = vmatpush.bf16.msra.mxu0 %v2869
      %3113 = vmatpush.bf16.msra.mxu0 %v2865
      %3114 = vmatpush.bf16.msra.mxu0 %v2861
      %3115 = vmatpush.bf16.msra.mxu0 %v2857
      %3116 = vmatpush.bf16.msra.mxu0 %v2853
      %3117 = vmatmul.bf16.gmra.mxu0 %v2461
      %v3118 = vpop.f32.mrf.mxu0
      %v3119 = vadd.f32 0.0, %v3118
      %v3120 = vpop.f32.mrf.mxu0
      %3121 = vdwg.mxu0
      %3122 = vmatpush.bf16.msra.mxu0 %v2913
      %3123 = vmatpush.bf16.msra.mxu0 %v2909
      %3124 = vmatpush.bf16.msra.mxu0 %v2905
      %3125 = vmatpush.bf16.msra.mxu0 %v2901
      %3126 = vmatpush.bf16.msra.mxu0 %v2897
      %3127 = vmatpush.bf16.msra.mxu0 %v2893
      %3128 = vmatpush.bf16.msra.mxu0 %v2889
      %3129 = vmatpush.bf16.msra.mxu0 %v2885
      %3130 = vmatmul.bf16.gmra.mxu0 %v2462
      %v3131 = vpop.f32.mrf.mxu0
      %v3132 = vadd.f32 %v3119, %v3131
      %v3133 = vpop.f32.mrf.mxu0
      %3134 = vdwg.mxu0
      %3135 = vmatpush.bf16.msra.mxu0 %v2945
      %3136 = vmatpush.bf16.msra.mxu0 %v2941
      %3137 = vmatpush.bf16.msra.mxu0 %v2937
      %3138 = vmatpush.bf16.msra.mxu0 %v2933
      %3139 = vmatpush.bf16.msra.mxu0 %v2929
      %3140 = vmatpush.bf16.msra.mxu0 %v2925
      %3141 = vmatpush.bf16.msra.mxu0 %v2921
      %3142 = vmatpush.bf16.msra.mxu0 %v2917
      %3143 = vmatmul.bf16.gmra.mxu0 %v2463
      %v3144 = vpop.f32.mrf.mxu0
      %v3145 = vadd.f32 %v3132, %v3144
      %v3146 = vpop.f32.mrf.mxu0
      %3147 = vdwg.mxu0
      %3148 = vmatpush.bf16.msra.mxu0 %v2977
      %3149 = vmatpush.bf16.msra.mxu0 %v2973
      %3150 = vmatpush.bf16.msra.mxu0 %v2969
      %3151 = vmatpush.bf16.msra.mxu0 %v2965
      %3152 = vmatpush.bf16.msra.mxu0 %v2961
      %3153 = vmatpush.bf16.msra.mxu0 %v2957
      %3154 = vmatpush.bf16.msra.mxu0 %v2953
      %3155 = vmatpush.bf16.msra.mxu0 %v2949
      %3156 = vmatmul.bf16.gmra.mxu0 %v2464
      %v3157 = vpop.f32.mrf.mxu0
      %v3158 = vadd.f32 %v3145, %v3157
      %v3159 = vpop.f32.mrf.mxu0
      %3160 = vdwg.mxu0
      %3161 = vmatpush.bf16.msra.mxu0 %v2882
      %3162 = vmatpush.bf16.msra.mxu0 %v2878
      %3163 = vmatpush.bf16.msra.mxu0 %v2874
      %3164 = vmatpush.bf16.msra.mxu0 %v2870
      %3165 = vmatpush.bf16.msra.mxu0 %v2866
      %3166 = vmatpush.bf16.msra.mxu0 %v2862
      %3167 = vmatpush.bf16.msra.mxu0 %v2858
      %3168 = vmatpush.bf16.msra.mxu0 %v2854
      %3169 = vmatmul.bf16.gmra.mxu0 %v2461
      %v3170 = vpop.f32.mrf.mxu0
      %v3171 = vadd.f32 0.0, %v3170
      %v3172 = vpop.f32.mrf.mxu0
      %3173 = vdwg.mxu0
      %3174 = vmatpush.bf16.msra.mxu0 %v2914
      %3175 = vmatpush.bf16.msra.mxu0 %v2910
      %3176 = vmatpush.bf16.msra.mxu0 %v2906
      %3177 = vmatpush.bf16.msra.mxu0 %v2902
      %3178 = vmatpush.bf16.msra.mxu0 %v2898
      %3179 = vmatpush.bf16.msra.mxu0 %v2894
      %3180 = vmatpush.bf16.msra.mxu0 %v2890
      %3181 = vmatpush.bf16.msra.mxu0 %v2886
      %3182 = vmatmul.bf16.gmra.mxu0 %v2462
      %v3183 = vpop.f32.mrf.mxu0
      %v3184 = vadd.f32 %v3171, %v3183
      %v3185 = vpop.f32.mrf.mxu0
      %3186 = vdwg.mxu0
      %3187 = vmatpush.bf16.msra.mxu0 %v2946
      %3188 = vmatpush.bf16.msra.mxu0 %v2942
      %3189 = vmatpush.bf16.msra.mxu0 %v2938
      %3190 = vmatpush.bf16.msra.mxu0 %v2934
      %3191 = vmatpush.bf16.msra.mxu0 %v2930
      %3192 = vmatpush.bf16.msra.mxu0 %v2926
      %3193 = vmatpush.bf16.msra.mxu0 %v2922
      %3194 = vmatpush.bf16.msra.mxu0 %v2918
      %3195 = vmatmul.bf16.gmra.mxu0 %v2463
      %v3196 = vpop.f32.mrf.mxu0
      %v3197 = vadd.f32 %v3184, %v3196
      %v3198 = vpop.f32.mrf.mxu0
      %3199 = vdwg.mxu0
      %3200 = vmatpush.bf16.msra.mxu0 %v2978
      %3201 = vmatpush.bf16.msra.mxu0 %v2974
      %3202 = vmatpush.bf16.msra.mxu0 %v2970
      %3203 = vmatpush.bf16.msra.mxu0 %v2966
      %3204 = vmatpush.bf16.msra.mxu0 %v2962
      %3205 = vmatpush.bf16.msra.mxu0 %v2958
      %3206 = vmatpush.bf16.msra.mxu0 %v2954
      %3207 = vmatpush.bf16.msra.mxu0 %v2950
      %3208 = vmatmul.bf16.gmra.mxu0 %v2464
      %v3209 = vpop.f32.mrf.mxu0
      %v3210 = vadd.f32 %v3197, %v3209
      %v3211 = vpop.f32.mrf.mxu0
      %3212 = vdwg.mxu0
      %3213 = vmatpush.bf16.msra.mxu0 %v2883
      %3214 = vmatpush.bf16.msra.mxu0 %v2879
      %3215 = vmatpush.bf16.msra.mxu0 %v2875
      %3216 = vmatpush.bf16.msra.mxu0 %v2871
      %3217 = vmatpush.bf16.msra.mxu0 %v2867
      %3218 = vmatpush.bf16.msra.mxu0 %v2863
      %3219 = vmatpush.bf16.msra.mxu0 %v2859
      %3220 = vmatpush.bf16.msra.mxu0 %v2855
      %3221 = vmatmul.bf16.gmra.mxu0 %v2461
      %v3222 = vpop.f32.mrf.mxu0
      %v3223 = vadd.f32 0.0, %v3222
      %v3224 = vpop.f32.mrf.mxu0
      %3225 = vdwg.mxu0
      %3226 = vmatpush.bf16.msra.mxu0 %v2915
      %3227 = vmatpush.bf16.msra.mxu0 %v2911
      %3228 = vmatpush.bf16.msra.mxu0 %v2907
      %3229 = vmatpush.bf16.msra.mxu0 %v2903
      %3230 = vmatpush.bf16.msra.mxu0 %v2899
      %3231 = vmatpush.bf16.msra.mxu0 %v2895
      %3232 = vmatpush.bf16.msra.mxu0 %v2891
      %3233 = vmatpush.bf16.msra.mxu0 %v2887
      %3234 = vmatmul.bf16.gmra.mxu0 %v2462
      %v3235 = vpop.f32.mrf.mxu0
      %v3236 = vadd.f32 %v3223, %v3235
      %v3237 = vpop.f32.mrf.mxu0
      %3238 = vdwg.mxu0
      %3239 = vmatpush.bf16.msra.mxu0 %v2947
      %3240 = vmatpush.bf16.msra.mxu0 %v2943
      %3241 = vmatpush.bf16.msra.mxu0 %v2939
      %3242 = vmatpush.bf16.msra.mxu0 %v2935
      %3243 = vmatpush.bf16.msra.mxu0 %v2931
      %3244 = vmatpush.bf16.msra.mxu0 %v2927
      %3245 = vmatpush.bf16.msra.mxu0 %v2923
      %3246 = vmatpush.bf16.msra.mxu0 %v2919
      %3247 = vmatmul.bf16.gmra.mxu0 %v2463
      %v3248 = vpop.f32.mrf.mxu0
      %v3249 = vadd.f32 %v3236, %v3248
      %v3250 = vpop.f32.mrf.mxu0
      %3251 = vdwg.mxu0
      %3252 = vmatpush.bf16.msra.mxu0 %v2979
      %3253 = vmatpush.bf16.msra.mxu0 %v2975
      %3254 = vmatpush.bf16.msra.mxu0 %v2971
      %3255 = vmatpush.bf16.msra.mxu0 %v2967
      %3256 = vmatpush.bf16.msra.mxu0 %v2963
      %3257 = vmatpush.bf16.msra.mxu0 %v2959
      %3258 = vmatpush.bf16.msra.mxu0 %v2955
      %3259 = vmatpush.bf16.msra.mxu0 %v2951
      %3260 = vmatmul.bf16.gmra.mxu0 %v2464
      %v3261 = vpop.f32.mrf.mxu0
      %v3262 = vadd.f32 %v3249, %v3261
      %v3263 = vpop.f32.mrf.mxu0
      %3264 = vdwg.mxu0
      %3265 = vmatpush.bf16.msra.mxu0 %v2884
      %3266 = vmatpush.bf16.msra.mxu0 %v2880
      %3267 = vmatpush.bf16.msra.mxu0 %v2876
      %3268 = vmatpush.bf16.msra.mxu0 %v2872
      %3269 = vmatpush.bf16.msra.mxu0 %v2868
      %3270 = vmatpush.bf16.msra.mxu0 %v2864
      %3271 = vmatpush.bf16.msra.mxu0 %v2860
      %3272 = vmatpush.bf16.msra.mxu0 %v2856
      %3273 = vmatmul.bf16.gmra.mxu0 %v2461
      %v3274 = vpop.f32.mrf.mxu0
      %v3275 = vadd.f32 0.0, %v3274
      %v3276 = vpop.f32.mrf.mxu0
      %3277 = vdwg.mxu0
      %3278 = vmatpush.bf16.msra.mxu0 %v2916
      %3279 = vmatpush.bf16.msra.mxu0 %v2912
      %3280 = vmatpush.bf16.msra.mxu0 %v2908
      %3281 = vmatpush.bf16.msra.mxu0 %v2904
      %3282 = vmatpush.bf16.msra.mxu0 %v2900
      %3283 = vmatpush.bf16.msra.mxu0 %v2896
      %3284 = vmatpush.bf16.msra.mxu0 %v2892
      %3285 = vmatpush.bf16.msra.mxu0 %v2888
      %3286 = vmatmul.bf16.gmra.mxu0 %v2462
      %v3287 = vpop.f32.mrf.mxu0
      %v3288 = vadd.f32 %v3275, %v3287
      %v3289 = vpop.f32.mrf.mxu0
      %3290 = vdwg.mxu0
      %3291 = vmatpush.bf16.msra.mxu0 %v2948
      %3292 = vmatpush.bf16.msra.mxu0 %v2944
      %3293 = vmatpush.bf16.msra.mxu0 %v2940
      %3294 = vmatpush.bf16.msra.mxu0 %v2936
      %3295 = vmatpush.bf16.msra.mxu0 %v2932
      %3296 = vmatpush.bf16.msra.mxu0 %v2928
      %3297 = vmatpush.bf16.msra.mxu0 %v2924
      %3298 = vmatpush.bf16.msra.mxu0 %v2920
      %3299 = vmatmul.bf16.gmra.mxu0 %v2463
      %v3300 = vpop.f32.mrf.mxu0
      %v3301 = vadd.f32 %v3288, %v3300
      %v3302 = vpop.f32.mrf.mxu0
      %3303 = vdwg.mxu0
      %3304 = vmatpush.bf16.msra.mxu0 %v2980
      %3305 = vmatpush.bf16.msra.mxu0 %v2976
      %3306 = vmatpush.bf16.msra.mxu0 %v2972
      %3307 = vmatpush.bf16.msra.mxu0 %v2968
      %3308 = vmatpush.bf16.msra.mxu0 %v2964
      %3309 = vmatpush.bf16.msra.mxu0 %v2960
      %3310 = vmatpush.bf16.msra.mxu0 %v2956
      %3311 = vmatpush.bf16.msra.mxu0 %v2952
      %3312 = vmatmul.bf16.gmra.mxu0 %v2464
      %v3313 = vpop.f32.mrf.mxu0
      %v3314 = vadd.f32 %v3301, %v3313
      %v3315 = vpop.f32.mrf.mxu0
      %3316 = vdwg.mxu0
      %v3317 = vadd.f32 %v2157, %v3158
      %v3318 = vadd.f32 %v2209, %v3210
      %v3319 = vadd.f32 %v2261, %v3262
      %v3320 = vadd.f32 %v2313, %v3314
      %v3321 = vld [vmem:[%s239] sm:$0xff]
      %v3322 = vld [vmem:[%s239 + $0x8] sm:$0xff]
      %v3323 = vld [vmem:[%s4] sm:$0xff]
      %v3324 = vld [vmem:[%s4 + $0x8] sm:$0xff]
      %v3325 = vld [vmem:[%s4 + $0x10] sm:$0xff]
      %v3326 = vld [vmem:[%s4 + $0x18] sm:$0xff]
      %v3327 = vld [vmem:[%s4 + $0x20] sm:$0xff]
      %v3328 = vld [vmem:[%s4 + $0x28] sm:$0xff]
      %v3329 = vld [vmem:[%s4 + $0x30] sm:$0xff]
      %v3330 = vld [vmem:[%s4 + $0x38] sm:$0xff]
      %v3331 = vld [vmem:[%s4 + $0x40] sm:$0xff]
      %v3332 = vld [vmem:[%s4 + $0x48] sm:$0xff]
      %v3333 = vld [vmem:[%s4 + $0x50] sm:$0xff]
      %v3334 = vld [vmem:[%s4 + $0x58] sm:$0xff]
      %v3335 = vld [vmem:[%s4 + $0x60] sm:$0xff]
      %v3336 = vld [vmem:[%s4 + $0x68] sm:$0xff]
      %v3337 = vld [vmem:[%s4 + $0x70] sm:$0xff]
      %v3338 = vld [vmem:[%s4 + $0x78] sm:$0xff]
      %v3339 = vld [vmem:[%s4 + $0x80] sm:$0xff]
      %v3340 = vld [vmem:[%s4 + $0x88] sm:$0xff]
      %v3341 = vld [vmem:[%s4 + $0x90] sm:$0xff]
      %v3342 = vld [vmem:[%s4 + $0x98] sm:$0xff]
      %v3343 = vld [vmem:[%s4 + $0xa0] sm:$0xff]
      %v3344 = vld [vmem:[%s4 + $0xa8] sm:$0xff]
      %v3345 = vld [vmem:[%s4 + $0xb0] sm:$0xff]
      %v3346 = vld [vmem:[%s4 + $0xb8] sm:$0xff]
      %v3347 = vld [vmem:[%s4 + $0xc0] sm:$0xff]
      %v3348 = vld [vmem:[%s4 + $0xc8] sm:$0xff]
      %v3349 = vld [vmem:[%s4 + $0xd0] sm:$0xff]
      %v3350 = vld [vmem:[%s4 + $0xd8] sm:$0xff]
      %v3351 = vld [vmem:[%s4 + $0xe0] sm:$0xff]
      %v3352 = vld [vmem:[%s4 + $0xe8] sm:$0xff]
      %v3353 = vld [vmem:[%s4 + $0xf0] sm:$0xff]
      %v3354 = vld [vmem:[%s4 + $0xf8] sm:$0xff]
      %v3355 = vld [vmem:[%s4 + $0x100] sm:$0xff]
      %v3356 = vld [vmem:[%s4 + $0x108] sm:$0xff]
      %v3357 = vld [vmem:[%s4 + $0x110] sm:$0xff]
      %v3358 = vld [vmem:[%s4 + $0x118] sm:$0xff]
      %v3359 = vld [vmem:[%s4 + $0x120] sm:$0xff]
      %v3360 = vld [vmem:[%s4 + $0x128] sm:$0xff]
      %v3361 = vld [vmem:[%s4 + $0x130] sm:$0xff]
      %v3362 = vld [vmem:[%s4 + $0x138] sm:$0xff]
      %v3363 = vld [vmem:[%s4 + $0x140] sm:$0xff]
      %v3364 = vld [vmem:[%s4 + $0x148] sm:$0xff]
      %v3365 = vld [vmem:[%s4 + $0x150] sm:$0xff]
      %v3366 = vld [vmem:[%s4 + $0x158] sm:$0xff]
      %v3367 = vld [vmem:[%s4 + $0x160] sm:$0xff]
      %v3368 = vld [vmem:[%s4 + $0x168] sm:$0xff]
      %v3369 = vld [vmem:[%s4 + $0x170] sm:$0xff]
      %v3370 = vld [vmem:[%s4 + $0x178] sm:$0xff]
      %v3371 = vld [vmem:[%s4 + $0x180] sm:$0xff]
      %v3372 = vld [vmem:[%s4 + $0x188] sm:$0xff]
      %v3373 = vld [vmem:[%s4 + $0x190] sm:$0xff]
      %v3374 = vld [vmem:[%s4 + $0x198] sm:$0xff]
      %v3375 = vld [vmem:[%s4 + $0x1a0] sm:$0xff]
      %v3376 = vld [vmem:[%s4 + $0x1a8] sm:$0xff]
      %v3377 = vld [vmem:[%s4 + $0x1b0] sm:$0xff]
      %v3378 = vld [vmem:[%s4 + $0x1b8] sm:$0xff]
      %v3379 = vld [vmem:[%s4 + $0x1c0] sm:$0xff]
      %v3380 = vld [vmem:[%s4 + $0x1c8] sm:$0xff]
      %v3381 = vld [vmem:[%s4 + $0x1d0] sm:$0xff]
      %v3382 = vld [vmem:[%s4 + $0x1d8] sm:$0xff]
      %v3383 = vld [vmem:[%s4 + $0x1e0] sm:$0xff]
      %v3384 = vld [vmem:[%s4 + $0x1e8] sm:$0xff]
      %v3385 = vld [vmem:[%s4 + $0x1f0] sm:$0xff]
      %v3386 = vld [vmem:[%s4 + $0x1f8] sm:$0xff]
      %v3387 = vld [vmem:[%s4 + $0x200] sm:$0xff]
      %v3388 = vld [vmem:[%s4 + $0x208] sm:$0xff]
      %v3389 = vld [vmem:[%s4 + $0x210] sm:$0xff]
      %v3390 = vld [vmem:[%s4 + $0x218] sm:$0xff]
      %v3391 = vld [vmem:[%s4 + $0x220] sm:$0xff]
      %v3392 = vld [vmem:[%s4 + $0x228] sm:$0xff]
      %v3393 = vld [vmem:[%s4 + $0x230] sm:$0xff]
      %v3394 = vld [vmem:[%s4 + $0x238] sm:$0xff]
      %v3395 = vld [vmem:[%s4 + $0x240] sm:$0xff]
      %v3396 = vld [vmem:[%s4 + $0x248] sm:$0xff]
      %v3397 = vld [vmem:[%s4 + $0x250] sm:$0xff]
      %v3398 = vld [vmem:[%s4 + $0x258] sm:$0xff]
      %v3399 = vld [vmem:[%s4 + $0x260] sm:$0xff]
      %v3400 = vld [vmem:[%s4 + $0x268] sm:$0xff]
      %v3401 = vld [vmem:[%s4 + $0x270] sm:$0xff]
      %v3402 = vld [vmem:[%s4 + $0x278] sm:$0xff]
      %v3403 = vld [vmem:[%s4 + $0x280] sm:$0xff]
      %v3404 = vld [vmem:[%s4 + $0x288] sm:$0xff]
      %v3405 = vld [vmem:[%s4 + $0x290] sm:$0xff]
      %v3406 = vld [vmem:[%s4 + $0x298] sm:$0xff]
      %v3407 = vld [vmem:[%s4 + $0x2a0] sm:$0xff]
      %v3408 = vld [vmem:[%s4 + $0x2a8] sm:$0xff]
      %v3409 = vld [vmem:[%s4 + $0x2b0] sm:$0xff]
      %v3410 = vld [vmem:[%s4 + $0x2b8] sm:$0xff]
      %v3411 = vld [vmem:[%s4 + $0x2c0] sm:$0xff]
      %v3412 = vld [vmem:[%s4 + $0x2c8] sm:$0xff]
      %v3413 = vld [vmem:[%s4 + $0x2d0] sm:$0xff]
      %v3414 = vld [vmem:[%s4 + $0x2d8] sm:$0xff]
      %v3415 = vld [vmem:[%s4 + $0x2e0] sm:$0xff]
      %v3416 = vld [vmem:[%s4 + $0x2e8] sm:$0xff]
      %v3417 = vld [vmem:[%s4 + $0x2f0] sm:$0xff]
      %v3418 = vld [vmem:[%s4 + $0x2f8] sm:$0xff]
      %v3419 = vld [vmem:[%s4 + $0x300] sm:$0xff]
      %v3420 = vld [vmem:[%s4 + $0x308] sm:$0xff]
      %v3421 = vld [vmem:[%s4 + $0x310] sm:$0xff]
      %v3422 = vld [vmem:[%s4 + $0x318] sm:$0xff]
      %v3423 = vld [vmem:[%s4 + $0x320] sm:$0xff]
      %v3424 = vld [vmem:[%s4 + $0x328] sm:$0xff]
      %v3425 = vld [vmem:[%s4 + $0x330] sm:$0xff]
      %v3426 = vld [vmem:[%s4 + $0x338] sm:$0xff]
      %v3427 = vld [vmem:[%s4 + $0x340] sm:$0xff]
      %v3428 = vld [vmem:[%s4 + $0x348] sm:$0xff]
      %v3429 = vld [vmem:[%s4 + $0x350] sm:$0xff]
      %v3430 = vld [vmem:[%s4 + $0x358] sm:$0xff]
      %v3431 = vld [vmem:[%s4 + $0x360] sm:$0xff]
      %v3432 = vld [vmem:[%s4 + $0x368] sm:$0xff]
      %v3433 = vld [vmem:[%s4 + $0x370] sm:$0xff]
      %v3434 = vld [vmem:[%s4 + $0x378] sm:$0xff]
      %v3435 = vld [vmem:[%s4 + $0x380] sm:$0xff]
      %v3436 = vld [vmem:[%s4 + $0x388] sm:$0xff]
      %v3437 = vld [vmem:[%s4 + $0x390] sm:$0xff]
      %v3438 = vld [vmem:[%s4 + $0x398] sm:$0xff]
      %v3439 = vld [vmem:[%s4 + $0x3a0] sm:$0xff]
      %v3440 = vld [vmem:[%s4 + $0x3a8] sm:$0xff]
      %v3441 = vld [vmem:[%s4 + $0x3b0] sm:$0xff]
      %v3442 = vld [vmem:[%s4 + $0x3b8] sm:$0xff]
      %v3443 = vld [vmem:[%s4 + $0x3c0] sm:$0xff]
      %v3444 = vld [vmem:[%s4 + $0x3c8] sm:$0xff]
      %v3445 = vld [vmem:[%s4 + $0x3d0] sm:$0xff]
      %v3446 = vld [vmem:[%s4 + $0x3d8] sm:$0xff]
      %v3447 = vld [vmem:[%s4 + $0x3e0] sm:$0xff]
      %v3448 = vld [vmem:[%s4 + $0x3e8] sm:$0xff]
      %v3449 = vld [vmem:[%s4 + $0x3f0] sm:$0xff]
      %v3450 = vld [vmem:[%s4 + $0x3f8] sm:$0xff]
      %3451 = vmatpush.msra.mxu0 %v3383
      %3452 = vmatpush.msra.mxu0 %v3379
      %3453 = vmatpush.msra.mxu0 %v3375
      %3454 = vmatpush.msra.mxu0 %v3371
      %3455 = vmatpush.msra.mxu0 %v3367
      %3456 = vmatpush.msra.mxu0 %v3363
      %3457 = vmatpush.msra.mxu0 %v3359
      %3458 = vmatpush.msra.mxu0 %v3355
      %3459 = vmatpush.msra.mxu0 %v3351
      %3460 = vmatpush.msra.mxu0 %v3347
      %3461 = vmatpush.msra.mxu0 %v3343
      %3462 = vmatpush.msra.mxu0 %v3339
      %3463 = vmatpush.msra.mxu0 %v3335
      %3464 = vmatpush.msra.mxu0 %v3331
      %3465 = vmatpush.msra.mxu0 %v3327
      %3466 = vmatpush.msra.mxu0 %v3323
      %3467 = vmatmul.f32.gmra.mxu0 %v3321
      %v3468 = vpop.f32.mrf.mxu0
      %v3469 = vadd.f32 0.0, %v3468
      %3470 = vdwg.mxu0
      %3471 = vmatpush.msra.mxu0 %v3447
      %3472 = vmatpush.msra.mxu0 %v3443
      %3473 = vmatpush.msra.mxu0 %v3439
      %3474 = vmatpush.msra.mxu0 %v3435
      %3475 = vmatpush.msra.mxu0 %v3431
      %3476 = vmatpush.msra.mxu0 %v3427
      %3477 = vmatpush.msra.mxu0 %v3423
      %3478 = vmatpush.msra.mxu0 %v3419
      %3479 = vmatpush.msra.mxu0 %v3415
      %3480 = vmatpush.msra.mxu0 %v3411
      %3481 = vmatpush.msra.mxu0 %v3407
      %3482 = vmatpush.msra.mxu0 %v3403
      %3483 = vmatpush.msra.mxu0 %v3399
      %3484 = vmatpush.msra.mxu0 %v3395
      %3485 = vmatpush.msra.mxu0 %v3391
      %3486 = vmatpush.msra.mxu0 %v3387
      %3487 = vmatmul.f32.gmra.mxu0 %v3322
      %v3488 = vpop.f32.mrf.mxu0
      %v3489 = vadd.f32 %v3469, %v3488
      %3490 = vdwg.mxu0
      %3491 = vmatpush.msra.mxu0 %v3384
      %3492 = vmatpush.msra.mxu0 %v3380
      %3493 = vmatpush.msra.mxu0 %v3376
      %3494 = vmatpush.msra.mxu0 %v3372
      %3495 = vmatpush.msra.mxu0 %v3368
      %3496 = vmatpush.msra.mxu0 %v3364
      %3497 = vmatpush.msra.mxu0 %v3360
      %3498 = vmatpush.msra.mxu0 %v3356
      %3499 = vmatpush.msra.mxu0 %v3352
      %3500 = vmatpush.msra.mxu0 %v3348
      %3501 = vmatpush.msra.mxu0 %v3344
      %3502 = vmatpush.msra.mxu0 %v3340
      %3503 = vmatpush.msra.mxu0 %v3336
      %3504 = vmatpush.msra.mxu0 %v3332
      %3505 = vmatpush.msra.mxu0 %v3328
      %3506 = vmatpush.msra.mxu0 %v3324
      %3507 = vmatmul.f32.gmra.mxu0 %v3321
      %v3508 = vpop.f32.mrf.mxu0
      %v3509 = vadd.f32 0.0, %v3508
      %3510 = vdwg.mxu0
      %3511 = vmatpush.msra.mxu0 %v3448
      %3512 = vmatpush.msra.mxu0 %v3444
      %3513 = vmatpush.msra.mxu0 %v3440
      %3514 = vmatpush.msra.mxu0 %v3436
      %3515 = vmatpush.msra.mxu0 %v3432
      %3516 = vmatpush.msra.mxu0 %v3428
      %3517 = vmatpush.msra.mxu0 %v3424
      %3518 = vmatpush.msra.mxu0 %v3420
      %3519 = vmatpush.msra.mxu0 %v3416
      %3520 = vmatpush.msra.mxu0 %v3412
      %3521 = vmatpush.msra.mxu0 %v3408
      %3522 = vmatpush.msra.mxu0 %v3404
      %3523 = vmatpush.msra.mxu0 %v3400
      %3524 = vmatpush.msra.mxu0 %v3396
      %3525 = vmatpush.msra.mxu0 %v3392
      %3526 = vmatpush.msra.mxu0 %v3388
      %3527 = vmatmul.f32.gmra.mxu0 %v3322
      %v3528 = vpop.f32.mrf.mxu0
      %v3529 = vadd.f32 %v3509, %v3528
      %3530 = vdwg.mxu0
      %3531 = vmatpush.msra.mxu0 %v3385
      %3532 = vmatpush.msra.mxu0 %v3381
      %3533 = vmatpush.msra.mxu0 %v3377
      %3534 = vmatpush.msra.mxu0 %v3373
      %3535 = vmatpush.msra.mxu0 %v3369
      %3536 = vmatpush.msra.mxu0 %v3365
      %3537 = vmatpush.msra.mxu0 %v3361
      %3538 = vmatpush.msra.mxu0 %v3357
      %3539 = vmatpush.msra.mxu0 %v3353
      %3540 = vmatpush.msra.mxu0 %v3349
      %3541 = vmatpush.msra.mxu0 %v3345
      %3542 = vmatpush.msra.mxu0 %v3341
      %3543 = vmatpush.msra.mxu0 %v3337
      %3544 = vmatpush.msra.mxu0 %v3333
      %3545 = vmatpush.msra.mxu0 %v3329
      %3546 = vmatpush.msra.mxu0 %v3325
      %3547 = vmatmul.f32.gmra.mxu0 %v3321
      %v3548 = vpop.f32.mrf.mxu0
      %v3549 = vadd.f32 0.0, %v3548
      %3550 = vdwg.mxu0
      %3551 = vmatpush.msra.mxu0 %v3449
      %3552 = vmatpush.msra.mxu0 %v3445
      %3553 = vmatpush.msra.mxu0 %v3441
      %3554 = vmatpush.msra.mxu0 %v3437
      %3555 = vmatpush.msra.mxu0 %v3433
      %3556 = vmatpush.msra.mxu0 %v3429
      %3557 = vmatpush.msra.mxu0 %v3425
      %3558 = vmatpush.msra.mxu0 %v3421
      %3559 = vmatpush.msra.mxu0 %v3417
      %3560 = vmatpush.msra.mxu0 %v3413
      %3561 = vmatpush.msra.mxu0 %v3409
      %3562 = vmatpush.msra.mxu0 %v3405
      %3563 = vmatpush.msra.mxu0 %v3401
      %3564 = vmatpush.msra.mxu0 %v3397
      %3565 = vmatpush.msra.mxu0 %v3393
      %3566 = vmatpush.msra.mxu0 %v3389
      %3567 = vmatmul.f32.gmra.mxu0 %v3322
      %v3568 = vpop.f32.mrf.mxu0
      %v3569 = vadd.f32 %v3549, %v3568
      %3570 = vdwg.mxu0
      %3571 = vmatpush.msra.mxu0 %v3386
      %3572 = vmatpush.msra.mxu0 %v3382
      %3573 = vmatpush.msra.mxu0 %v3378
      %3574 = vmatpush.msra.mxu0 %v3374
      %3575 = vmatpush.msra.mxu0 %v3370
      %3576 = vmatpush.msra.mxu0 %v3366
      %3577 = vmatpush.msra.mxu0 %v3362
      %3578 = vmatpush.msra.mxu0 %v3358
      %3579 = vmatpush.msra.mxu0 %v3354
      %3580 = vmatpush.msra.mxu0 %v3350
      %3581 = vmatpush.msra.mxu0 %v3346
      %3582 = vmatpush.msra.mxu0 %v3342
      %3583 = vmatpush.msra.mxu0 %v3338
      %3584 = vmatpush.msra.mxu0 %v3334
      %3585 = vmatpush.msra.mxu0 %v3330
      %3586 = vmatpush.msra.mxu0 %v3326
      %3587 = vmatmul.f32.gmra.mxu0 %v3321
      %v3588 = vpop.f32.mrf.mxu0
      %v3589 = vadd.f32 0.0, %v3588
      %3590 = vdwg.mxu0
      %3591 = vmatpush.msra.mxu0 %v3450
      %3592 = vmatpush.msra.mxu0 %v3446
      %3593 = vmatpush.msra.mxu0 %v3442
      %3594 = vmatpush.msra.mxu0 %v3438
      %3595 = vmatpush.msra.mxu0 %v3434
      %3596 = vmatpush.msra.mxu0 %v3430
      %3597 = vmatpush.msra.mxu0 %v3426
      %3598 = vmatpush.msra.mxu0 %v3422
      %3599 = vmatpush.msra.mxu0 %v3418
      %3600 = vmatpush.msra.mxu0 %v3414
      %3601 = vmatpush.msra.mxu0 %v3410
      %3602 = vmatpush.msra.mxu0 %v3406
      %3603 = vmatpush.msra.mxu0 %v3402
      %3604 = vmatpush.msra.mxu0 %v3398
      %3605 = vmatpush.msra.mxu0 %v3394
      %3606 = vmatpush.msra.mxu0 %v3390
      %3607 = vmatmul.f32.gmra.mxu0 %v3322
      %v3608 = vpop.f32.mrf.mxu0
      %v3609 = vadd.f32 %v3589, %v3608
      %3610 = vdwg.mxu0
      %v3611 = vadd.f32 %v3317, %v3489
      %v3612 = vadd.f32 %v3318, %v3529
      %v3613 = vadd.f32 %v3319, %v3569
      %v3614 = vadd.f32 %v3320, %v3609
      %3615 = vst [vmem:[%s244] sm:$0xff] %v3611
      %3616 = vst [vmem:[%s244 + $0x8] sm:$0xff] %v3612
      %3617 = vst [vmem:[%s244 + $0x10] sm:$0xff] %v3613
      %3618 = vst [vmem:[%s244 + $0x18] sm:$0xff] %v3614
      %p3619 = scmp.lt.s32.totalorder %s16, 1
      %s3620 = scalar_select %p3619, %s16, 1
      %s3621 = smul.addr %s3620, 4
      %s3622 = smul.addr %s3621, 8
      %s3623 = scalar_lea.vmem %s5, %s3622
      // Predicated region
      $region41: #{resnet_block_forward.3} parent=39 // pred_check
        %p3624 = pneg %p149
      $region42: #{resnet_block_forward.3} parent=39 // pred_check_branch
        %3626 = sbr.rel (%p3624) target = $region44
      $region43: #{resnet_block_forward.3} parent=39 // pred_region
        _
      $region44: #{resnet_block_forward.3} parent=39 // pred_fallthru
        _
    $region40: #{resnet_block_forward.3} parent=5 // pred_fallthru
      _
    %p3627 = scmp.le.s32.totalorder 2, %s11
    // Predicated region
    $region45: #{resnet_block_forward.3} parent=5 // pred_check
      %p3628 = pneg %p3627
    $region46: #{resnet_block_forward.3} parent=5 // pred_check_branch
      %3630 = sbr.rel (%p3628) target = $region48
    $region47: #{resnet_block_forward.3} parent=5 // pred_region
      %s3631 = ssub.s32 %s11, 2
      // Predicated region
      $region49: #{resnet_block_forward.3} parent=47 // pred_check
        %p3632 = pneg %p155
      $region50: #{resnet_block_forward.3} parent=47 // pred_check_branch
        %3634 = sbr.rel (%p3632) target = $region52
      $region51: #{resnet_block_forward.3} parent=47 // pred_region
        %p3635 = scmp.lt.s32.totalorder %s17, 1
        %s3636 = scalar_select %p3635, %s17, 1
        %s3637 = smul.addr %s3636, 4
        %s3638 = smul.addr %s3637, 8
        %s3639 = scalar_lea.vmem %s5, %s3638
      $region52: #{resnet_block_forward.3} parent=47 // pred_fallthru
        _
    $region48: #{resnet_block_forward.3} parent=5 // pred_fallthru
      _
  $region6: #{resnet_block_forward.3} parent=0 // loop_footer
    %s15 = sadd.s32 1, %s11
  $region7: #{resnet_block_forward.3} parent=0 // loop_footer_branch
    %10 = sbr.rel target = $region3
  $region8: #{resnet_block_forward.3} parent=0 // loop_exit
    _

</llo_original>
